<compile_context>
chip_gen: v5e
topology: v5e:2x2
jax: 0.10.0
libtpu: 0.0.40
codegen_flags: <defaults>
</compile_context>

<pallas_src>
import functools

import numpy as np
import jax
import jax.numpy as jnp
from jax.experimental import pallas as pl
from jax.experimental.pallas import tpu as pltpu

LANES = 128          # lane width of the flat board slabs
OFF = 16             # lane offset where the flattened 9x9 padded board starts
PADDED = 81          # 9*9 flattened zero-padded board
C1_OUT = 4           # conv1 output channels
C2_OUT = 6           # conv2 output channels


# ----------------------------------------------------------------------------
# Fused kernel: conv1 -> conv2 -> FC head  +  embedding -> LSTM -> ReLU
# ----------------------------------------------------------------------------
def _mem_c4_kernel(
    # activations
    xb_ref,          # (2B, 128) f32 : [prev boards ; curr boards], zero-padded 9x9 flat
    extras_ref,      # (B, 128)  f32 : lane0 = gameOver, lane1 = player
    xe_ref,          # (B, 16)   i32 : explanation token ids (first seq_len valid)
    # conv-as-matmul parameters
    m1_ref,          # (128, C1_OUT*128)
    b1_ref,          # (1, C1_OUT*128)
    mask1_ref,       # (1, C1_OUT*128)  interior mask tiled per channel
    m2_ref,          # (C1_OUT*128, C2_OUT*128)
    b2_ref,          # (1, C2_OUT*128)
    # fused FCL_1 / hidden_fc / output_fc
    wfc1_ref,        # (1664, 64)
    bfc1_ref,        # (1, 64)
    wfc2_ref,        # (64, 32)
    bfc2_ref,        # (1, 32)
    wfc3_ref,        # (32, 16)
    bfc3_ref,        # (1, 16)
    # LSTM (bias folded + sigmoid-scale pre-folded)
    embih_ref,       # (V, 4H)
    whh_ref,         # (H, 4H)
    # output
    out_ref,         # (B, 128) : state in lanes 0:16, expl in lanes 16:32
    *, seq_len,
):
    f32 = jnp.float32
    bsz = extras_ref.shape[0]
    hid = whh_ref.shape[0]

    # ---- conv1 + ReLU (+interior mask) and conv2 + ReLU: two MXU matmuls ----
    x = xb_ref[...]                                                  # (2B, 128)
    h1 = jnp.maximum(
        jnp.dot(x, m1_ref[...], preferred_element_type=f32) + b1_ref[...], 0.0
    ) * mask1_ref[...]                                               # (2B, 512)
    h2 = jnp.maximum(
        jnp.dot(h1, m2_ref[...], preferred_element_type=f32) + b2_ref[...], 0.0
    )                                                                # (2B, 768)
    # (lanes outside the 49-lane interior carry garbage but have zero weight below)

    # ---- FCL_1 fused into one dot, then hidden_fc / output_fc ----------------
    lhs = jnp.concatenate([extras_ref[...], h2[:bsz, :], h2[bsz:, :]], axis=1)  # (B, 1664)
    hfc1 = jnp.maximum(
        jnp.dot(lhs, wfc1_ref[...], preferred_element_type=f32) + bfc1_ref[...], 0.0)
    hfc2 = jnp.maximum(
        jnp.dot(hfc1, wfc2_ref[...], preferred_element_type=f32) + bfc2_ref[...], 0.0)
    state = jnp.dot(hfc2, wfc3_ref[...], preferred_element_type=f32) + bfc3_ref[...]  # (B, 16)

    # ---- explanation branch: hoisted embedding matmul + unrolled LSTM --------
    vocab = embih_ref.shape[0]
    ids = xe_ref[...]                                                # (B, 16) int32
    iota_v = jax.lax.broadcasted_iota(jnp.int32, (bsz, vocab), 1)
    # All seq_len one-hot lookups in one (T*B, V) x (V, 4H) matmul (step-major rows).
    onehots = [(iota_v == ids[:, t:t + 1]).astype(f32) for t in range(seq_len)]
    onehot_all = jnp.concatenate(onehots, axis=0)                    # (T*B, V)
    xg_all = jnp.dot(onehot_all, embih_ref[...], preferred_element_type=f32)  # (T*B, 4H)

    w_hh_t = whh_ref[...]                                            # (H, 4H) pre-scaled
    h_t = jnp.zeros((bsz, hid), f32)
    c_t = jnp.zeros((bsz, hid), f32)
    for t in range(seq_len):
        gates = xg_all[t * bsz:(t + 1) * bsz, :] + jnp.dot(
            h_t, w_hh_t, preferred_element_type=f32)                 # (B, 4H), pre-scaled
        tg = jnp.tanh(gates)               # one EUP push for all 4 gates
        i_g = 0.5 * tg[:, 0 * hid:1 * hid] + 0.5   # sigmoid via tanh (scale pre-folded)
        f_g = 0.5 * tg[:, 1 * hid:2 * hid] + 0.5
        g_g = tg[:, 2 * hid:3 * hid]
        o_g = 0.5 * tg[:, 3 * hid:4 * hid] + 0.5
        c_t = f_g * c_t + i_g * g_g
        h_t = o_g * jnp.tanh(c_t)
    expl = jnp.maximum(h_t, 0.0)                                     # (B, 16)

    # ---- lane-dense packed output --------------------------------------------
    pad = jnp.zeros((bsz, LANES - 32), f32)
    out_ref[...] = jnp.concatenate([state, expl, pad], axis=1).astype(out_ref.dtype)


# ----------------------------------------------------------------------------
# Glue: torch.masked_select + one-time parameter layout transform
# ----------------------------------------------------------------------------
def _masked_select(x, mask, n_rows, n_per_row):
    """torch.masked_select(x, mask).reshape(n_rows, n_per_row)  (flat order)."""
    # TODO(synk): data-dependent gather has no clean Pallas equivalent; plain-JAX glue.
    idx = jnp.nonzero(mask.reshape(-1), size=n_rows * n_per_row)[0]
    return x.reshape(-1)[idx].reshape(n_rows, n_per_row)


def prepare_params(params):
    """One-time transform of PyTorch-layout parameters to kernel layouts."""
    (w_conv1, b_conv1, w_conv2, b_conv2, w_fc1, b_fc1, w_fc2, b_fc2,
     w_fc3, b_fc3, emb, w_ih, w_hh, b_ih, b_hh) = params

    n1 = w_fc1.shape[0]                                     # 64
    hid = w_hh.shape[1]                                     # 16
    pix = np.arange(49)
    lane_q = OFF + (pix // 7 + 1) * 9 + (pix % 7 + 1)       # interior lane of each pixel
    t_offsets = [(di - 1) * 9 + (dj - 1) for di in range(3) for dj in range(3)]

    def shift_mat(t):
        """S[p, q] = 1 iff p == q + t (so (x @ S)[:, q] = x[:, q + t], zero-fill OOB)."""
        s = np.zeros((LANES, LANES), np.float32)
        q = np.arange(LANES)
        p = q + t
        ok = (p >= 0) & (p < LANES)
        s[p[ok], q[ok]] = 1.0
        return s

    w1 = np.asarray(w_conv1, np.float32).reshape(C1_OUT, 9)
    w2 = np.asarray(w_conv2, np.float32).reshape(C2_OUT, C1_OUT, 9)

    m1 = np.zeros((LANES, C1_OUT * LANES), np.float32)
    m2 = np.zeros((C1_OUT * LANES, C2_OUT * LANES), np.float32)
    for k, t in enumerate(t_offsets):
        s = shift_mat(t)
        for co in range(C1_OUT):
            m1[:, co * LANES:(co + 1) * LANES] += w1[co, k] * s
        for ci in range(C1_OUT):
            for co in range(C2_OUT):
                m2[ci * LANES:(ci + 1) * LANES,
                   co * LANES:(co + 1) * LANES] += w2[co, ci, k] * s

    b1_cat = np.repeat(np.asarray(b_conv1, np.float32), LANES)[None, :]       # (1, 512)
    b2_cat = np.repeat(np.asarray(b_conv2, np.float32), LANES)[None, :]       # (1, 768)
    interior = np.zeros((LANES,), np.float32)
    interior[lane_q] = 1.0
    mask1 = np.tile(interior, C1_OUT)[None, :]                                # (1, 512)

    # Fused FCL_1 weight (1664, 64): rows [extras(128) | prev h2 (6*128) | curr h2 (6*128)].
    wfc1 = np.asarray(w_fc1, np.float32)
    w_fused = np.zeros((LANES * (1 + 2 * C2_OUT), n1), np.float32)
    w_fused[0, :] = wfc1[:, 588]                                              # gameOver
    w_fused[1, :] = wfc1[:, 589]                                              # player
    w_pb = np.transpose(wfc1[:, 0:294].reshape(n1, C2_OUT, 49), (1, 2, 0))    # (6, 49, 64)
    w_cb = np.transpose(wfc1[:, 294:588].reshape(n1, C2_OUT, 49), (1, 2, 0))
    for co in range(C2_OUT):
        w_fused[LANES * (1 + co) + lane_q, :] = w_pb[co]
        w_fused[LANES * (1 + C2_OUT + co) + lane_q, :] = w_cb[co]

    # LSTM: fold (b_ih + b_hh) into the input-projection table, and pre-scale the
    # i/f/o column groups by 0.5 (sigmoid(x) = 0.5*tanh(0.5x)+0.5) on BOTH the
    # table and the recurrent weight so the kernel needs a single tanh per step.
    col_scale = np.full((4 * hid,), 0.5, np.float32)
    col_scale[2 * hid:3 * hid] = 1.0                                          # g-gate uses plain tanh
    emb_np = np.asarray(emb, np.float32)
    w_ih_np = np.asarray(w_ih, np.float32)
    b_sum = np.asarray(b_ih, np.float32) + np.asarray(b_hh, np.float32)
    emb_ih = (emb_np @ w_ih_np.T + b_sum[None, :]) * col_scale[None, :]       # (V, 4H)
    w_hh_scaled = np.asarray(w_hh, np.float32).T * col_scale[None, :]         # (H, 4H)

    return dict(
        m1=jnp.asarray(m1), b1=jnp.asarray(b1_cat), mask1=jnp.asarray(mask1),
        m2=jnp.asarray(m2), b2=jnp.asarray(b2_cat),
        w_fc1f=jnp.asarray(w_fused),
        b_fc1=jnp.asarray(b_fc1, jnp.float32).reshape(1, -1),
        w_fc2t=jnp.asarray(w_fc2, jnp.float32).T,
        b_fc2=jnp.asarray(b_fc2, jnp.float32).reshape(1, -1),
        w_fc3t=jnp.asarray(w_fc3, jnp.float32).T,
        b_fc3=jnp.asarray(b_fc3, jnp.float32).reshape(1, -1),
        emb_ih=jnp.asarray(emb_ih),
        w_hht=jnp.asarray(w_hh_scaled),
    )


def mem_c4_forward(kp, x_prevBoard, x_currBoard, x_gameOver, x_player, x_explanation,
                   mask_prevB, mask_currB, mask_gameOver, mask_player, mask_explanation,
                   *, seq_len=11):
    B = x_prevBoard.shape[0]

    # --- torch.masked_select glue (data-dependent gathers) ---
    x_e = _masked_select(x_explanation, mask_explanation, B, seq_len)
    x_pb = _masked_select(x_prevBoard, mask_prevB, B, 49)
    x_cb = _masked_select(x_currBoard, mask_currB, B, 49)
    x_go = _masked_select(x_gameOver, mask_gameOver, B, 1)
    x_p = _masked_select(x_player, mask_player, B, 1)

    # --- layout plumbing at the kernel boundary ---
    boards = jnp.concatenate([x_pb, x_cb], axis=0).astype(jnp.float32).reshape(2 * B, 7, 7)
    padded = jnp.pad(boards, ((0, 0), (1, 1), (1, 1))).reshape(2 * B, PADDED)
    xb = jnp.zeros((2 * B, LANES), jnp.float32).at[:, OFF:OFF + PADDED].set(padded)

    extras = (jnp.zeros((B, LANES), jnp.float32)
              .at[:, 0].set(x_go[:, 0].astype(jnp.float32))
              .at[:, 1].set(x_p[:, 0].astype(jnp.float32)))
    xe = jnp.zeros((B, 16), jnp.int32).at[:, :seq_len].set(x_e.astype(jnp.int32))

    n_state = kp["w_fc3t"].shape[1]
    n_expl = kp["w_hht"].shape[0]
    vocab = kp["emb_ih"].shape[0]

    operands = (xb, extras, xe,
                kp["m1"], kp["b1"], kp["mask1"], kp["m2"], kp["b2"],
                kp["w_fc1f"], kp["b_fc1"], kp["w_fc2t"], kp["b_fc2"],
                kp["w_fc3t"], kp["b_fc3"], kp["emb_ih"], kp["w_hht"])

    flops = int(2 * ((2 * B) * LANES * (C1_OUT * LANES)
                     + (2 * B) * (C1_OUT * LANES) * (C2_OUT * LANES)
                     + B * (LANES * (1 + 2 * C2_OUT)) * 64
                     + B * 64 * 32 + B * 32 * 16
                     + seq_len * B * vocab * 4 * n_expl
                     + seq_len * B * n_expl * 4 * n_expl))
    transcendentals = int(B * seq_len * (4 * n_expl + n_expl))
    bytes_accessed = int(sum(int(o.size) * o.dtype.itemsize for o in operands)
                         + B * LANES * 4)

    vmem = pl.BlockSpec(memory_space=pltpu.MemorySpace.VMEM)

    packed = pl.pallas_call(
        functools.partial(_mem_c4_kernel, seq_len=seq_len),
        out_shape=jax.ShapeDtypeStruct((B, LANES), jnp.float32),
        in_specs=[vmem] * len(operands),
        out_specs=vmem,
        cost_estimate=pl.CostEstimate(flops=flops, transcendentals=transcendentals,
                                      bytes_accessed=bytes_accessed),
    )(*operands)

    return packed[:, :n_state], packed[:, n_state:n_state + n_expl]


# ----------------------------------------------------------------------------
# Pure-JAX reference (ground truth for the PyTorch semantics)
# ----------------------------------------------------------------------------
def reference_forward(params, x_prevBoard, x_currBoard, x_gameOver, x_player, x_explanation,
                      mask_prevB, mask_currB, mask_gameOver, mask_player, mask_explanation,
                      *, seq_len=11):
    (w_conv1, b_conv1, w_conv2, b_conv2, w_fc1, b_fc1, w_fc2, b_fc2,
     w_fc3, b_fc3, emb, w_ih, w_hh, b_ih, b_hh) = params
    B = x_prevBoard.shape[0]
    hi = jax.lax.Precision.HIGHEST

    x_e = _masked_select(x_explanation, mask_explanation, B, seq_len)
    x_pb = _masked_select(x_prevBoard, mask_prevB, B, 49).reshape(B, 1, 7, 7)
    x_cb = _masked_select(x_currBoard, mask_currB, B, 49).reshape(B, 1, 7, 7)
    x_go = _masked_select(x_gameOver, mask_gameOver, B, 1).astype(jnp.float32)
    x_p = _masked_select(x_player, mask_player, B, 1).astype(jnp.float32)

    def conv_relu(x, w, b):
        y = jax.lax.conv_general_dilated(
            x, w, (1, 1), [(1, 1), (1, 1)],
            dimension_numbers=("NCHW", "OIHW", "NCHW"), precision=hi)
        return jnp.maximum(y + b[None, :, None, None], 0.0)

    pb2 = conv_relu(conv_relu(x_pb.astype(jnp.float32), w_conv1, b_conv1), w_conv2, b_conv2)
    cb2 = conv_relu(conv_relu(x_cb.astype(jnp.float32), w_conv1, b_conv1), w_conv2, b_conv2)
    flat = jnp.concatenate([pb2.reshape(B, -1), cb2.reshape(B, -1), x_go, x_p], axis=1)
    h1 = jnp.maximum(jnp.dot(flat, w_fc1.T, precision=hi) + b_fc1, 0.0)
    h2 = jnp.maximum(jnp.dot(h1, w_fc2.T, precision=hi) + b_fc2, 0.0)
    state = jnp.dot(h2, w_fc3.T, precision=hi) + b_fc3

    hid = w_hh.shape[1]
    xseq = emb[x_e.astype(jnp.int32)]                                  # (B, T, E)
    h = jnp.zeros((B, hid), jnp.float32)
    c = jnp.zeros((B, hid), jnp.float32)
    for t in range(seq_len):
        g = (jnp.dot(xseq[:, t], w_ih.T, precision=hi) + b_ih
             + jnp.dot(h, w_hh.T, precision=hi) + b_hh)
        i_g = jax.nn.sigmoid(g[:, 0 * hid:1 * hid])
        f_g = jax.nn.sigmoid(g[:, 1 * hid:2 * hid])
        g_g = jnp.tanh(g[:, 2 * hid:3 * hid])
        o_g = jax.nn.sigmoid(g[:, 3 * hid:4 * hid])
        c = f_g * c + i_g * g_g
        h = o_g * jnp.tanh(c)
    expl = jnp.maximum(h, 0.0)
    return state, expl


# ----------------------------------------------------------------------------
# main
# ----------------------------------------------------------------------------
if __name__ == "__main__":
    B = 4
    VOCAB = 32
    SEQ = 11

    key = jax.random.PRNGKey(0)
    ks = jax.random.split(key, 16)

    # ---- module inputs (padded tensors + masks, as MEM_C4.forward expects) ----
    x_prevBoard = jax.random.normal(ks[0], (B, 8, 8), jnp.float32)
    x_currBoard = jax.random.normal(ks[1], (B, 8, 8), jnp.float32)
    board_mask = jnp.zeros((8, 8), bool).at[:7, :7].set(True)
    mask_prevB = jnp.broadcast_to(board_mask, (B, 8, 8))
    mask_currB = mask_prevB
    x_gameOver = jax.random.normal(ks[2], (B, 2), jnp.float32)
    x_player = jax.random.normal(ks[3], (B, 2), jnp.float32)
    mask_gameOver = jnp.zeros((B, 2), bool).at[:, 0].set(True)
    mask_player = mask_gameOver
    x_explanation = jax.random.randint(ks[4], (B, 16), 1, VOCAB, dtype=jnp.int32)
    mask_explanation = jnp.zeros((B, 16), bool).at[:, 2:2 + SEQ].set(True)

    inputs = (x_prevBoard, x_currBoard, x_gameOver, x_player, x_explanation,
              mask_prevB, mask_currB, mask_gameOver, mask_player, mask_explanation)

    # ---- parameters (PyTorch layouts) ----
    w_conv1 = 0.2 * jax.random.normal(ks[5], (C1_OUT, 1, 3, 3), jnp.float32)
    b_conv1 = 0.1 * jax.random.normal(ks[6], (C1_OUT,), jnp.float32)
    w_conv2 = 0.2 * jax.random.normal(ks[7], (C2_OUT, C1_OUT, 3, 3), jnp.float32)
    b_conv2 = 0.1 * jax.random.normal(ks[8], (C2_OUT,), jnp.float32)
    w_fc1 = 0.05 * jax.random.normal(ks[9], (64, 590), jnp.float32)
    b_fc1 = 0.05 * jax.random.normal(ks[10], (64,), jnp.float32)
    w_fc2 = 0.1 * jax.random.normal(ks[11], (32, 64), jnp.float32)
    b_fc2 = 0.1 * jax.random.normal(ks[12], (32,), jnp.float32)
    w_fc3 = 0.1 * jax.random.normal(ks[13], (16, 32), jnp.float32)
    b_fc3 = 0.1 * jax.random.normal(ks[14], (16,), jnp.float32)
    kemb = jax.random.split(ks[15], 5)
    emb = 0.5 * jax.random.normal(kemb[0], (VOCAB, 32), jnp.float32)
    emb = emb.at[0].set(0.0)                                 # padding_idx=0
    w_ih = 0.2 * jax.random.normal(kemb[1], (4 * 16, 32), jnp.float32)
    w_hh = 0.2 * jax.random.normal(kemb[2], (4 * 16, 16), jnp.float32)
    b_ih = 0.1 * jax.random.normal(kemb[3], (4 * 16,), jnp.float32)
    b_hh = 0.1 * jax.random.normal(kemb[4], (4 * 16,), jnp.float32)

    params = (w_conv1, b_conv1, w_conv2, b_conv2, w_fc1, b_fc1, w_fc2, b_fc2,
              w_fc3, b_fc3, emb, w_ih, w_hh, b_ih, b_hh)

    kparams = prepare_params(params)                         # one-time layout transform
    state, expl = mem_c4_forward(kparams, *inputs, seq_len=SEQ)
    state, expl = jax.block_until_ready((state, expl))

    ref_state, ref_expl = reference_forward(params, *inputs, seq_len=SEQ)
    ref_state, ref_expl = jax.block_until_ready((ref_state, ref_expl))

    assert state.shape == (B, 16) and expl.shape == (B, 16), (state.shape, expl.shape)
    assert state.dtype == jnp.float32 and expl.dtype == jnp.float32
    err_s = float(jnp.max(jnp.abs(state - ref_state)))
    err_e = float(jnp.max(jnp.abs(expl - ref_expl)))
    if not (jnp.allclose(state, ref_state, atol=2e-3, rtol=2e-3)
            and jnp.allclose(expl, ref_expl, atol=2e-3, rtol=2e-3)):
        raise AssertionError(f"mismatch: state err={err_s}, expl err={err_e}")

    print("KERNEL_OK")
</pallas_src>

<mosaic_0001>
module attributes {stable_mosaic.version = 11 : i64} {
  func.func @_mem_c4_kernel(%arg0: memref<8x128xf32, #tpu.memory_space<vmem>>, %arg1: memref<4x128xf32, #tpu.memory_space<vmem>>, %arg2: memref<4x16xi32, #tpu.memory_space<vmem>>, %arg3: memref<128x512xf32, #tpu.memory_space<vmem>>, %arg4: memref<1x512xf32, #tpu.memory_space<vmem>>, %arg5: memref<1x512xf32, #tpu.memory_space<vmem>>, %arg6: memref<512x768xf32, #tpu.memory_space<vmem>>, %arg7: memref<1x768xf32, #tpu.memory_space<vmem>>, %arg8: memref<1664x64xf32, #tpu.memory_space<vmem>>, %arg9: memref<1x64xf32, #tpu.memory_space<vmem>>, %arg10: memref<64x32xf32, #tpu.memory_space<vmem>>, %arg11: memref<1x32xf32, #tpu.memory_space<vmem>>, %arg12: memref<32x16xf32, #tpu.memory_space<vmem>>, %arg13: memref<1x16xf32, #tpu.memory_space<vmem>>, %arg14: memref<32x64xf32, #tpu.memory_space<vmem>>, %arg15: memref<16x64xf32, #tpu.memory_space<vmem>>, %arg16: memref<4x128xf32, #tpu.memory_space<vmem>>) attributes {dimension_semantics = [], scalar_prefetch = 0 : i64, scratch_operands = 0 : i64, tpu.core_type = #tpu.core_type<tc>} {
    %c0 = arith.constant 0 : index
    %c0_0 = arith.constant 0 : index
    %0 = vector.load %arg0[%c0, %c0_0] : memref<8x128xf32, #tpu.memory_space<vmem>>, vector<8x128xf32>
    %c0_1 = arith.constant 0 : index
    %c0_2 = arith.constant 0 : index
    %1 = vector.load %arg3[%c0_1, %c0_2] : memref<128x512xf32, #tpu.memory_space<vmem>>, vector<128x512xf32>
    %cst = arith.constant dense<0.000000e+00> : vector<8x512xf32>
    %2 = tpu.matmul %0, %1, %cst {dimension_numbers = #tpu.dot_dimension_numbers<[1], [0], [0], [1], [0, 0, 1, 1], [], []>} : vector<8x128xf32>, vector<128x512xf32>, vector<8x512xf32> -> vector<8x512xf32>
    %c0_3 = arith.constant 0 : index
    %c0_4 = arith.constant 0 : index
    %3 = vector.load %arg4[%c0_3, %c0_4] : memref<1x512xf32, #tpu.memory_space<vmem>>, vector<1x512xf32>
    %4 = vector.broadcast %3 : vector<1x512xf32> to vector<8x512xf32>
    %5 = arith.addf %2, %4 : vector<8x512xf32>
    %cst_5 = arith.constant 0.000000e+00 : f32
    %6 = vector.broadcast %cst_5 : f32 to vector<8x512xf32>
    %7 = arith.maximumf %5, %6 : vector<8x512xf32>
    %c0_6 = arith.constant 0 : index
    %c0_7 = arith.constant 0 : index
    %8 = vector.load %arg5[%c0_6, %c0_7] : memref<1x512xf32, #tpu.memory_space<vmem>>, vector<1x512xf32>
    %9 = vector.broadcast %8 : vector<1x512xf32> to vector<8x512xf32>
    %10 = arith.mulf %7, %9 : vector<8x512xf32>
    %c0_8 = arith.constant 0 : index
    %c0_9 = arith.constant 0 : index
    %11 = vector.load %arg6[%c0_8, %c0_9] : memref<512x768xf32, #tpu.memory_space<vmem>>, vector<512x768xf32>
    %cst_10 = arith.constant dense<0.000000e+00> : vector<8x768xf32>
    %12 = tpu.matmul %10, %11, %cst_10 {dimension_numbers = #tpu.dot_dimension_numbers<[1], [0], [0], [1], [0, 0, 1, 1], [], []>} : vector<8x512xf32>, vector<512x768xf32>, vector<8x768xf32> -> vector<8x768xf32>
    %c0_11 = arith.constant 0 : index
    %c0_12 = arith.constant 0 : index
    %13 = vector.load %arg7[%c0_11, %c0_12] : memref<1x768xf32, #tpu.memory_space<vmem>>, vector<1x768xf32>
    %14 = vector.broadcast %13 : vector<1x768xf32> to vector<8x768xf32>
    %15 = arith.addf %12, %14 : vector<8x768xf32>
    %cst_13 = arith.constant 0.000000e+00 : f32
    %16 = vector.broadcast %cst_13 : f32 to vector<8x768xf32>
    %17 = arith.maximumf %15, %16 : vector<8x768xf32>
    %c0_14 = arith.constant 0 : index
    %c0_15 = arith.constant 0 : index
    %18 = vector.load %arg1[%c0_14, %c0_15] : memref<4x128xf32, #tpu.memory_space<vmem>>, vector<4x128xf32>
    %19 = vector.extract_strided_slice %17 {offsets = [0, 0], sizes = [4, 768], strides = [1, 1]} : vector<8x768xf32> to vector<4x768xf32>
    %20 = vector.extract_strided_slice %17 {offsets = [4, 0], sizes = [4, 768], strides = [1, 1]} : vector<8x768xf32> to vector<4x768xf32>
    %21 = tpu.concatenate %18, %19, %20 in 1 : vector<4x128xf32>, vector<4x768xf32>, vector<4x768xf32> -> vector<4x1664xf32>
    %c0_16 = arith.constant 0 : index
    %c0_17 = arith.constant 0 : index
    %22 = vector.load %arg8[%c0_16, %c0_17] : memref<1664x64xf32, #tpu.memory_space<vmem>>, vector<1664x64xf32>
    %cst_18 = arith.constant dense<0.000000e+00> : vector<4x64xf32>
    %23 = tpu.matmul %21, %22, %cst_18 {dimension_numbers = #tpu.dot_dimension_numbers<[1], [0], [0], [1], [0, 0, 1, 1], [], []>} : vector<4x1664xf32>, vector<1664x64xf32>, vector<4x64xf32> -> vector<4x64xf32>
    %c0_19 = arith.constant 0 : index
    %c0_20 = arith.constant 0 : index
    %24 = vector.load %arg9[%c0_19, %c0_20] : memref<1x64xf32, #tpu.memory_space<vmem>>, vector<1x64xf32>
    %25 = vector.broadcast %24 : vector<1x64xf32> to vector<4x64xf32>
    %26 = arith.addf %23, %25 : vector<4x64xf32>
    %cst_21 = arith.constant 0.000000e+00 : f32
    %27 = vector.broadcast %cst_21 : f32 to vector<4x64xf32>
    %28 = arith.maximumf %26, %27 : vector<4x64xf32>
    %c0_22 = arith.constant 0 : index
    %c0_23 = arith.constant 0 : index
    %29 = vector.load %arg10[%c0_22, %c0_23] : memref<64x32xf32, #tpu.memory_space<vmem>>, vector<64x32xf32>
    %cst_24 = arith.constant dense<0.000000e+00> : vector<4x32xf32>
    %30 = tpu.matmul %28, %29, %cst_24 {dimension_numbers = #tpu.dot_dimension_numbers<[1], [0], [0], [1], [0, 0, 1, 1], [], []>} : vector<4x64xf32>, vector<64x32xf32>, vector<4x32xf32> -> vector<4x32xf32>
    %c0_25 = arith.constant 0 : index
    %c0_26 = arith.constant 0 : index
    %31 = vector.load %arg11[%c0_25, %c0_26] : memref<1x32xf32, #tpu.memory_space<vmem>>, vector<1x32xf32>
    %32 = vector.broadcast %31 : vector<1x32xf32> to vector<4x32xf32>
    %33 = arith.addf %30, %32 : vector<4x32xf32>
    %cst_27 = arith.constant 0.000000e+00 : f32
    %34 = vector.broadcast %cst_27 : f32 to vector<4x32xf32>
    %35 = arith.maximumf %33, %34 : vector<4x32xf32>
    %c0_28 = arith.constant 0 : index
    %c0_29 = arith.constant 0 : index
    %36 = vector.load %arg12[%c0_28, %c0_29] : memref<32x16xf32, #tpu.memory_space<vmem>>, vector<32x16xf32>
    %cst_30 = arith.constant dense<0.000000e+00> : vector<4x16xf32>
    %37 = tpu.matmul %35, %36, %cst_30 {dimension_numbers = #tpu.dot_dimension_numbers<[1], [0], [0], [1], [0, 0, 1, 1], [], []>} : vector<4x32xf32>, vector<32x16xf32>, vector<4x16xf32> -> vector<4x16xf32>
    %c0_31 = arith.constant 0 : index
    %c0_32 = arith.constant 0 : index
    %38 = vector.load %arg13[%c0_31, %c0_32] : memref<1x16xf32, #tpu.memory_space<vmem>>, vector<1x16xf32>
    %39 = vector.broadcast %38 : vector<1x16xf32> to vector<4x16xf32>
    %40 = arith.addf %37, %39 : vector<4x16xf32>
    %c0_33 = arith.constant 0 : index
    %c0_34 = arith.constant 0 : index
    %41 = vector.load %arg2[%c0_33, %c0_34] : memref<4x16xi32, #tpu.memory_space<vmem>>, vector<4x16xi32>
    %42 = tpu.iota {dimensions = array<i32: 1>} : vector<4x32xi32>
    %43 = vector.extract_strided_slice %41 {offsets = [0, 0], sizes = [4, 1], strides = [1, 1]} : vector<4x16xi32> to vector<4x1xi32>
    %44 = vector.broadcast %43 : vector<4x1xi32> to vector<4x32xi32>
    %45 = arith.cmpi eq, %42, %44 : vector<4x32xi32>
    %46 = arith.extui %45 : vector<4x32xi1> to vector<4x32xi32>
    %47 = arith.sitofp %46 : vector<4x32xi32> to vector<4x32xf32>
    %48 = vector.extract_strided_slice %41 {offsets = [0, 1], sizes = [4, 1], strides = [1, 1]} : vector<4x16xi32> to vector<4x1xi32>
    %49 = vector.broadcast %48 : vector<4x1xi32> to vector<4x32xi32>
    %50 = arith.cmpi eq, %42, %49 : vector<4x32xi32>
    %51 = arith.extui %50 : vector<4x32xi1> to vector<4x32xi32>
    %52 = arith.sitofp %51 : vector<4x32xi32> to vector<4x32xf32>
    %53 = vector.extract_strided_slice %41 {offsets = [0, 2], sizes = [4, 1], strides = [1, 1]} : vector<4x16xi32> to vector<4x1xi32>
    %54 = vector.broadcast %53 : vector<4x1xi32> to vector<4x32xi32>
    %55 = arith.cmpi eq, %42, %54 : vector<4x32xi32>
    %56 = arith.extui %55 : vector<4x32xi1> to vector<4x32xi32>
    %57 = arith.sitofp %56 : vector<4x32xi32> to vector<4x32xf32>
    %58 = vector.extract_strided_slice %41 {offsets = [0, 3], sizes = [4, 1], strides = [1, 1]} : vector<4x16xi32> to vector<4x1xi32>
    %59 = vector.broadcast %58 : vector<4x1xi32> to vector<4x32xi32>
    %60 = arith.cmpi eq, %42, %59 : vector<4x32xi32>
    %61 = arith.extui %60 : vector<4x32xi1> to vector<4x32xi32>
    %62 = arith.sitofp %61 : vector<4x32xi32> to vector<4x32xf32>
    %63 = vector.extract_strided_slice %41 {offsets = [0, 4], sizes = [4, 1], strides = [1, 1]} : vector<4x16xi32> to vector<4x1xi32>
    %64 = vector.broadcast %63 : vector<4x1xi32> to vector<4x32xi32>
    %65 = arith.cmpi eq, %42, %64 : vector<4x32xi32>
    %66 = arith.extui %65 : vector<4x32xi1> to vector<4x32xi32>
    %67 = arith.sitofp %66 : vector<4x32xi32> to vector<4x32xf32>
    %68 = vector.extract_strided_slice %41 {offsets = [0, 5], sizes = [4, 1], strides = [1, 1]} : vector<4x16xi32> to vector<4x1xi32>
    %69 = vector.broadcast %68 : vector<4x1xi32> to vector<4x32xi32>
    %70 = arith.cmpi eq, %42, %69 : vector<4x32xi32>
    %71 = arith.extui %70 : vector<4x32xi1> to vector<4x32xi32>
    %72 = arith.sitofp %71 : vector<4x32xi32> to vector<4x32xf32>
    %73 = vector.extract_strided_slice %41 {offsets = [0, 6], sizes = [4, 1], strides = [1, 1]} : vector<4x16xi32> to vector<4x1xi32>
    %74 = vector.broadcast %73 : vector<4x1xi32> to vector<4x32xi32>
    %75 = arith.cmpi eq, %42, %74 : vector<4x32xi32>
    %76 = arith.extui %75 : vector<4x32xi1> to vector<4x32xi32>
    %77 = arith.sitofp %76 : vector<4x32xi32> to vector<4x32xf32>
    %78 = vector.extract_strided_slice %41 {offsets = [0, 7], sizes = [4, 1], strides = [1, 1]} : vector<4x16xi32> to vector<4x1xi32>
    %79 = vector.broadcast %78 : vector<4x1xi32> to vector<4x32xi32>
    %80 = arith.cmpi eq, %42, %79 : vector<4x32xi32>
    %81 = arith.extui %80 : vector<4x32xi1> to vector<4x32xi32>
    %82 = arith.sitofp %81 : vector<4x32xi32> to vector<4x32xf32>
    %83 = vector.extract_strided_slice %41 {offsets = [0, 8], sizes = [4, 1], strides = [1, 1]} : vector<4x16xi32> to vector<4x1xi32>
    %84 = vector.broadcast %83 : vector<4x1xi32> to vector<4x32xi32>
    %85 = arith.cmpi eq, %42, %84 : vector<4x32xi32>
    %86 = arith.extui %85 : vector<4x32xi1> to vector<4x32xi32>
    %87 = arith.sitofp %86 : vector<4x32xi32> to vector<4x32xf32>
    %88 = vector.extract_strided_slice %41 {offsets = [0, 9], sizes = [4, 1], strides = [1, 1]} : vector<4x16xi32> to vector<4x1xi32>
    %89 = vector.broadcast %88 : vector<4x1xi32> to vector<4x32xi32>
    %90 = arith.cmpi eq, %42, %89 : vector<4x32xi32>
    %91 = arith.extui %90 : vector<4x32xi1> to vector<4x32xi32>
    %92 = arith.sitofp %91 : vector<4x32xi32> to vector<4x32xf32>
    %93 = vector.extract_strided_slice %41 {offsets = [0, 10], sizes = [4, 1], strides = [1, 1]} : vector<4x16xi32> to vector<4x1xi32>
    %94 = vector.broadcast %93 : vector<4x1xi32> to vector<4x32xi32>
    %95 = arith.cmpi eq, %42, %94 : vector<4x32xi32>
    %96 = arith.extui %95 : vector<4x32xi1> to vector<4x32xi32>
    %97 = arith.sitofp %96 : vector<4x32xi32> to vector<4x32xf32>
    %98 = tpu.concatenate %47, %52, %57, %62, %67, %72, %77, %82, %87, %92, %97 in 0 : vector<4x32xf32>, vector<4x32xf32>, vector<4x32xf32>, vector<4x32xf32>, vector<4x32xf32>, vector<4x32xf32>, vector<4x32xf32>, vector<4x32xf32>, vector<4x32xf32>, vector<4x32xf32>, vector<4x32xf32> -> vector<44x32xf32>
    %c0_35 = arith.constant 0 : index
    %c0_36 = arith.constant 0 : index
    %99 = vector.load %arg14[%c0_35, %c0_36] : memref<32x64xf32, #tpu.memory_space<vmem>>, vector<32x64xf32>
    %cst_37 = arith.constant dense<0.000000e+00> : vector<44x64xf32>
    %100 = tpu.matmul %98, %99, %cst_37 {dimension_numbers = #tpu.dot_dimension_numbers<[1], [0], [0], [1], [0, 0, 1, 1], [], []>} : vector<44x32xf32>, vector<32x64xf32>, vector<44x64xf32> -> vector<44x64xf32>
    %c0_38 = arith.constant 0 : index
    %c0_39 = arith.constant 0 : index
    %101 = vector.load %arg15[%c0_38, %c0_39] : memref<16x64xf32, #tpu.memory_space<vmem>>, vector<16x64xf32>
    %cst_40 = arith.constant 0.000000e+00 : f32
    %102 = vector.broadcast %cst_40 : f32 to vector<4x16xf32>
    %cst_41 = arith.constant 0.000000e+00 : f32
    %103 = vector.broadcast %cst_41 : f32 to vector<4x16xf32>
    %104 = vector.extract_strided_slice %100 {offsets = [0, 0], sizes = [4, 64], strides = [1, 1]} : vector<44x64xf32> to vector<4x64xf32>
    %cst_42 = arith.constant dense<0.000000e+00> : vector<4x64xf32>
    %105 = tpu.matmul %102, %101, %cst_42 {dimension_numbers = #tpu.dot_dimension_numbers<[1], [0], [0], [1], [0, 0, 1, 1], [], []>} : vector<4x16xf32>, vector<16x64xf32>, vector<4x64xf32> -> vector<4x64xf32>
    %106 = arith.addf %104, %105 : vector<4x64xf32>
    %107 = math.tanh %106 : vector<4x64xf32>
    %108 = vector.extract_strided_slice %107 {offsets = [0, 0], sizes = [4, 16], strides = [1, 1]} : vector<4x64xf32> to vector<4x16xf32>
    %cst_43 = arith.constant 5.000000e-01 : f32
    %109 = vector.broadcast %cst_43 : f32 to vector<4x16xf32>
    %110 = arith.mulf %109, %108 : vector<4x16xf32>
    %cst_44 = arith.constant 5.000000e-01 : f32
    %111 = vector.broadcast %cst_44 : f32 to vector<4x16xf32>
    %112 = arith.addf %110, %111 : vector<4x16xf32>
    %113 = vector.extract_strided_slice %107 {offsets = [0, 16], sizes = [4, 16], strides = [1, 1]} : vector<4x64xf32> to vector<4x16xf32>
    %cst_45 = arith.constant 5.000000e-01 : f32
    %114 = vector.broadcast %cst_45 : f32 to vector<4x16xf32>
    %115 = arith.mulf %114, %113 : vector<4x16xf32>
    %cst_46 = arith.constant 5.000000e-01 : f32
    %116 = vector.broadcast %cst_46 : f32 to vector<4x16xf32>
    %117 = arith.addf %115, %116 : vector<4x16xf32>
    %118 = vector.extract_strided_slice %107 {offsets = [0, 32], sizes = [4, 16], strides = [1, 1]} : vector<4x64xf32> to vector<4x16xf32>
    %119 = vector.extract_strided_slice %107 {offsets = [0, 48], sizes = [4, 16], strides = [1, 1]} : vector<4x64xf32> to vector<4x16xf32>
    %cst_47 = arith.constant 5.000000e-01 : f32
    %120 = vector.broadcast %cst_47 : f32 to vector<4x16xf32>
    %121 = arith.mulf %120, %119 : vector<4x16xf32>
    %cst_48 = arith.constant 5.000000e-01 : f32
    %122 = vector.broadcast %cst_48 : f32 to vector<4x16xf32>
    %123 = arith.addf %121, %122 : vector<4x16xf32>
    %124 = arith.mulf %117, %103 : vector<4x16xf32>
    %125 = arith.mulf %112, %118 : vector<4x16xf32>
    %126 = arith.addf %124, %125 : vector<4x16xf32>
    %127 = math.tanh %126 : vector<4x16xf32>
    %128 = arith.mulf %123, %127 : vector<4x16xf32>
    %129 = vector.extract_strided_slice %100 {offsets = [4, 0], sizes = [4, 64], strides = [1, 1]} : vector<44x64xf32> to vector<4x64xf32>
    %cst_49 = arith.constant dense<0.000000e+00> : vector<4x64xf32>
    %130 = tpu.matmul %128, %101, %cst_49 {dimension_numbers = #tpu.dot_dimension_numbers<[1], [0], [0], [1], [0, 0, 1, 1], [], []>} : vector<4x16xf32>, vector<16x64xf32>, vector<4x64xf32> -> vector<4x64xf32>
    %131 = arith.addf %129, %130 : vector<4x64xf32>
    %132 = math.tanh %131 : vector<4x64xf32>
    %133 = vector.extract_strided_slice %132 {offsets = [0, 0], sizes = [4, 16], strides = [1, 1]} : vector<4x64xf32> to vector<4x16xf32>
    %cst_50 = arith.constant 5.000000e-01 : f32
    %134 = vector.broadcast %cst_50 : f32 to vector<4x16xf32>
    %135 = arith.mulf %134, %133 : vector<4x16xf32>
    %cst_51 = arith.constant 5.000000e-01 : f32
    %136 = vector.broadcast %cst_51 : f32 to vector<4x16xf32>
    %137 = arith.addf %135, %136 : vector<4x16xf32>
    %138 = vector.extract_strided_slice %132 {offsets = [0, 16], sizes = [4, 16], strides = [1, 1]} : vector<4x64xf32> to vector<4x16xf32>
    %cst_52 = arith.constant 5.000000e-01 : f32
    %139 = vector.broadcast %cst_52 : f32 to vector<4x16xf32>
    %140 = arith.mulf %139, %138 : vector<4x16xf32>
    %cst_53 = arith.constant 5.000000e-01 : f32
    %141 = vector.broadcast %cst_53 : f32 to vector<4x16xf32>
    %142 = arith.addf %140, %141 : vector<4x16xf32>
    %143 = vector.extract_strided_slice %132 {offsets = [0, 32], sizes = [4, 16], strides = [1, 1]} : vector<4x64xf32> to vector<4x16xf32>
    %144 = vector.extract_strided_slice %132 {offsets = [0, 48], sizes = [4, 16], strides = [1, 1]} : vector<4x64xf32> to vector<4x16xf32>
    %cst_54 = arith.constant 5.000000e-01 : f32
    %145 = vector.broadcast %cst_54 : f32 to vector<4x16xf32>
    %146 = arith.mulf %145, %144 : vector<4x16xf32>
    %cst_55 = arith.constant 5.000000e-01 : f32
    %147 = vector.broadcast %cst_55 : f32 to vector<4x16xf32>
    %148 = arith.addf %146, %147 : vector<4x16xf32>
    %149 = arith.mulf %142, %126 : vector<4x16xf32>
    %150 = arith.mulf %137, %143 : vector<4x16xf32>
    %151 = arith.addf %149, %150 : vector<4x16xf32>
    %152 = math.tanh %151 : vector<4x16xf32>
    %153 = arith.mulf %148, %152 : vector<4x16xf32>
    %154 = vector.extract_strided_slice %100 {offsets = [8, 0], sizes = [4, 64], strides = [1, 1]} : vector<44x64xf32> to vector<4x64xf32>
    %cst_56 = arith.constant dense<0.000000e+00> : vector<4x64xf32>
    %155 = tpu.matmul %153, %101, %cst_56 {dimension_numbers = #tpu.dot_dimension_numbers<[1], [0], [0], [1], [0, 0, 1, 1], [], []>} : vector<4x16xf32>, vector<16x64xf32>, vector<4x64xf32> -> vector<4x64xf32>
    %156 = arith.addf %154, %155 : vector<4x64xf32>
    %157 = math.tanh %156 : vector<4x64xf32>
    %158 = vector.extract_strided_slice %157 {offsets = [0, 0], sizes = [4, 16], strides = [1, 1]} : vector<4x64xf32> to vector<4x16xf32>
    %cst_57 = arith.constant 5.000000e-01 : f32
    %159 = vector.broadcast %cst_57 : f32 to vector<4x16xf32>
    %160 = arith.mulf %159, %158 : vector<4x16xf32>
    %cst_58 = arith.constant 5.000000e-01 : f32
    %161 = vector.broadcast %cst_58 : f32 to vector<4x16xf32>
    %162 = arith.addf %160, %161 : vector<4x16xf32>
    %163 = vector.extract_strided_slice %157 {offsets = [0, 16], sizes = [4, 16], strides = [1, 1]} : vector<4x64xf32> to vector<4x16xf32>
    %cst_59 = arith.constant 5.000000e-01 : f32
    %164 = vector.broadcast %cst_59 : f32 to vector<4x16xf32>
    %165 = arith.mulf %164, %163 : vector<4x16xf32>
    %cst_60 = arith.constant 5.000000e-01 : f32
    %166 = vector.broadcast %cst_60 : f32 to vector<4x16xf32>
    %167 = arith.addf %165, %166 : vector<4x16xf32>
    %168 = vector.extract_strided_slice %157 {offsets = [0, 32], sizes = [4, 16], strides = [1, 1]} : vector<4x64xf32> to vector<4x16xf32>
    %169 = vector.extract_strided_slice %157 {offsets = [0, 48], sizes = [4, 16], strides = [1, 1]} : vector<4x64xf32> to vector<4x16xf32>
    %cst_61 = arith.constant 5.000000e-01 : f32
    %170 = vector.broadcast %cst_61 : f32 to vector<4x16xf32>
    %171 = arith.mulf %170, %169 : vector<4x16xf32>
    %cst_62 = arith.constant 5.000000e-01 : f32
    %172 = vector.broadcast %cst_62 : f32 to vector<4x16xf32>
    %173 = arith.addf %171, %172 : vector<4x16xf32>
    %174 = arith.mulf %167, %151 : vector<4x16xf32>
    %175 = arith.mulf %162, %168 : vector<4x16xf32>
    %176 = arith.addf %174, %175 : vector<4x16xf32>
    %177 = math.tanh %176 : vector<4x16xf32>
    %178 = arith.mulf %173, %177 : vector<4x16xf32>
    %179 = vector.extract_strided_slice %100 {offsets = [12, 0], sizes = [4, 64], strides = [1, 1]} : vector<44x64xf32> to vector<4x64xf32>
    %cst_63 = arith.constant dense<0.000000e+00> : vector<4x64xf32>
    %180 = tpu.matmul %178, %101, %cst_63 {dimension_numbers = #tpu.dot_dimension_numbers<[1], [0], [0], [1], [0, 0, 1, 1], [], []>} : vector<4x16xf32>, vector<16x64xf32>, vector<4x64xf32> -> vector<4x64xf32>
    %181 = arith.addf %179, %180 : vector<4x64xf32>
    %182 = math.tanh %181 : vector<4x64xf32>
    %183 = vector.extract_strided_slice %182 {offsets = [0, 0], sizes = [4, 16], strides = [1, 1]} : vector<4x64xf32> to vector<4x16xf32>
    %cst_64 = arith.constant 5.000000e-01 : f32
    %184 = vector.broadcast %cst_64 : f32 to vector<4x16xf32>
    %185 = arith.mulf %184, %183 : vector<4x16xf32>
    %cst_65 = arith.constant 5.000000e-01 : f32
    %186 = vector.broadcast %cst_65 : f32 to vector<4x16xf32>
    %187 = arith.addf %185, %186 : vector<4x16xf32>
    %188 = vector.extract_strided_slice %182 {offsets = [0, 16], sizes = [4, 16], strides = [1, 1]} : vector<4x64xf32> to vector<4x16xf32>
    %cst_66 = arith.constant 5.000000e-01 : f32
    %189 = vector.broadcast %cst_66 : f32 to vector<4x16xf32>
    %190 = arith.mulf %189, %188 : vector<4x16xf32>
    %cst_67 = arith.constant 5.000000e-01 : f32
    %191 = vector.broadcast %cst_67 : f32 to vector<4x16xf32>
    %192 = arith.addf %190, %191 : vector<4x16xf32>
    %193 = vector.extract_strided_slice %182 {offsets = [0, 32], sizes = [4, 16], strides = [1, 1]} : vector<4x64xf32> to vector<4x16xf32>
    %194 = vector.extract_strided_slice %182 {offsets = [0, 48], sizes = [4, 16], strides = [1, 1]} : vector<4x64xf32> to vector<4x16xf32>
    %cst_68 = arith.constant 5.000000e-01 : f32
    %195 = vector.broadcast %cst_68 : f32 to vector<4x16xf32>
    %196 = arith.mulf %195, %194 : vector<4x16xf32>
    %cst_69 = arith.constant 5.000000e-01 : f32
    %197 = vector.broadcast %cst_69 : f32 to vector<4x16xf32>
    %198 = arith.addf %196, %197 : vector<4x16xf32>
    %199 = arith.mulf %192, %176 : vector<4x16xf32>
    %200 = arith.mulf %187, %193 : vector<4x16xf32>
    %201 = arith.addf %199, %200 : vector<4x16xf32>
    %202 = math.tanh %201 : vector<4x16xf32>
    %203 = arith.mulf %198, %202 : vector<4x16xf32>
    %204 = vector.extract_strided_slice %100 {offsets = [16, 0], sizes = [4, 64], strides = [1, 1]} : vector<44x64xf32> to vector<4x64xf32>
    %cst_70 = arith.constant dense<0.000000e+00> : vector<4x64xf32>
    %205 = tpu.matmul %203, %101, %cst_70 {dimension_numbers = #tpu.dot_dimension_numbers<[1], [0], [0], [1], [0, 0, 1, 1], [], []>} : vector<4x16xf32>, vector<16x64xf32>, vector<4x64xf32> -> vector<4x64xf32>
    %206 = arith.addf %204, %205 : vector<4x64xf32>
    %207 = math.tanh %206 : vector<4x64xf32>
    %208 = vector.extract_strided_slice %207 {offsets = [0, 0], sizes = [4, 16], strides = [1, 1]} : vector<4x64xf32> to vector<4x16xf32>
    %cst_71 = arith.constant 5.000000e-01 : f32
    %209 = vector.broadcast %cst_71 : f32 to vector<4x16xf32>
    %210 = arith.mulf %209, %208 : vector<4x16xf32>
    %cst_72 = arith.constant 5.000000e-01 : f32
    %211 = vector.broadcast %cst_72 : f32 to vector<4x16xf32>
    %212 = arith.addf %210, %211 : vector<4x16xf32>
    %213 = vector.extract_strided_slice %207 {offsets = [0, 16], sizes = [4, 16], strides = [1, 1]} : vector<4x64xf32> to vector<4x16xf32>
    %cst_73 = arith.constant 5.000000e-01 : f32
    %214 = vector.broadcast %cst_73 : f32 to vector<4x16xf32>
    %215 = arith.mulf %214, %213 : vector<4x16xf32>
    %cst_74 = arith.constant 5.000000e-01 : f32
    %216 = vector.broadcast %cst_74 : f32 to vector<4x16xf32>
    %217 = arith.addf %215, %216 : vector<4x16xf32>
    %218 = vector.extract_strided_slice %207 {offsets = [0, 32], sizes = [4, 16], strides = [1, 1]} : vector<4x64xf32> to vector<4x16xf32>
    %219 = vector.extract_strided_slice %207 {offsets = [0, 48], sizes = [4, 16], strides = [1, 1]} : vector<4x64xf32> to vector<4x16xf32>
    %cst_75 = arith.constant 5.000000e-01 : f32
    %220 = vector.broadcast %cst_75 : f32 to vector<4x16xf32>
    %221 = arith.mulf %220, %219 : vector<4x16xf32>
    %cst_76 = arith.constant 5.000000e-01 : f32
    %222 = vector.broadcast %cst_76 : f32 to vector<4x16xf32>
    %223 = arith.addf %221, %222 : vector<4x16xf32>
    %224 = arith.mulf %217, %201 : vector<4x16xf32>
    %225 = arith.mulf %212, %218 : vector<4x16xf32>
    %226 = arith.addf %224, %225 : vector<4x16xf32>
    %227 = math.tanh %226 : vector<4x16xf32>
    %228 = arith.mulf %223, %227 : vector<4x16xf32>
    %229 = vector.extract_strided_slice %100 {offsets = [20, 0], sizes = [4, 64], strides = [1, 1]} : vector<44x64xf32> to vector<4x64xf32>
    %cst_77 = arith.constant dense<0.000000e+00> : vector<4x64xf32>
    %230 = tpu.matmul %228, %101, %cst_77 {dimension_numbers = #tpu.dot_dimension_numbers<[1], [0], [0], [1], [0, 0, 1, 1], [], []>} : vector<4x16xf32>, vector<16x64xf32>, vector<4x64xf32> -> vector<4x64xf32>
    %231 = arith.addf %229, %230 : vector<4x64xf32>
    %232 = math.tanh %231 : vector<4x64xf32>
    %233 = vector.extract_strided_slice %232 {offsets = [0, 0], sizes = [4, 16], strides = [1, 1]} : vector<4x64xf32> to vector<4x16xf32>
    %cst_78 = arith.constant 5.000000e-01 : f32
    %234 = vector.broadcast %cst_78 : f32 to vector<4x16xf32>
    %235 = arith.mulf %234, %233 : vector<4x16xf32>
    %cst_79 = arith.constant 5.000000e-01 : f32
    %236 = vector.broadcast %cst_79 : f32 to vector<4x16xf32>
    %237 = arith.addf %235, %236 : vector<4x16xf32>
    %238 = vector.extract_strided_slice %232 {offsets = [0, 16], sizes = [4, 16], strides = [1, 1]} : vector<4x64xf32> to vector<4x16xf32>
    %cst_80 = arith.constant 5.000000e-01 : f32
    %239 = vector.broadcast %cst_80 : f32 to vector<4x16xf32>
    %240 = arith.mulf %239, %238 : vector<4x16xf32>
    %cst_81 = arith.constant 5.000000e-01 : f32
    %241 = vector.broadcast %cst_81 : f32 to vector<4x16xf32>
    %242 = arith.addf %240, %241 : vector<4x16xf32>
    %243 = vector.extract_strided_slice %232 {offsets = [0, 32], sizes = [4, 16], strides = [1, 1]} : vector<4x64xf32> to vector<4x16xf32>
    %244 = vector.extract_strided_slice %232 {offsets = [0, 48], sizes = [4, 16], strides = [1, 1]} : vector<4x64xf32> to vector<4x16xf32>
    %cst_82 = arith.constant 5.000000e-01 : f32
    %245 = vector.broadcast %cst_82 : f32 to vector<4x16xf32>
    %246 = arith.mulf %245, %244 : vector<4x16xf32>
    %cst_83 = arith.constant 5.000000e-01 : f32
    %247 = vector.broadcast %cst_83 : f32 to vector<4x16xf32>
    %248 = arith.addf %246, %247 : vector<4x16xf32>
    %249 = arith.mulf %242, %226 : vector<4x16xf32>
    %250 = arith.mulf %237, %243 : vector<4x16xf32>
    %251 = arith.addf %249, %250 : vector<4x16xf32>
    %252 = math.tanh %251 : vector<4x16xf32>
    %253 = arith.mulf %248, %252 : vector<4x16xf32>
    %254 = vector.extract_strided_slice %100 {offsets = [24, 0], sizes = [4, 64], strides = [1, 1]} : vector<44x64xf32> to vector<4x64xf32>
    %cst_84 = arith.constant dense<0.000000e+00> : vector<4x64xf32>
    %255 = tpu.matmul %253, %101, %cst_84 {dimension_numbers = #tpu.dot_dimension_numbers<[1], [0], [0], [1], [0, 0, 1, 1], [], []>} : vector<4x16xf32>, vector<16x64xf32>, vector<4x64xf32> -> vector<4x64xf32>
    %256 = arith.addf %254, %255 : vector<4x64xf32>
    %257 = math.tanh %256 : vector<4x64xf32>
    %258 = vector.extract_strided_slice %257 {offsets = [0, 0], sizes = [4, 16], strides = [1, 1]} : vector<4x64xf32> to vector<4x16xf32>
    %cst_85 = arith.constant 5.000000e-01 : f32
    %259 = vector.broadcast %cst_85 : f32 to vector<4x16xf32>
    %260 = arith.mulf %259, %258 : vector<4x16xf32>
    %cst_86 = arith.constant 5.000000e-01 : f32
    %261 = vector.broadcast %cst_86 : f32 to vector<4x16xf32>
    %262 = arith.addf %260, %261 : vector<4x16xf32>
    %263 = vector.extract_strided_slice %257 {offsets = [0, 16], sizes = [4, 16], strides = [1, 1]} : vector<4x64xf32> to vector<4x16xf32>
    %cst_87 = arith.constant 5.000000e-01 : f32
    %264 = vector.broadcast %cst_87 : f32 to vector<4x16xf32>
    %265 = arith.mulf %264, %263 : vector<4x16xf32>
    %cst_88 = arith.constant 5.000000e-01 : f32
    %266 = vector.broadcast %cst_88 : f32 to vector<4x16xf32>
    %267 = arith.addf %265, %266 : vector<4x16xf32>
    %268 = vector.extract_strided_slice %257 {offsets = [0, 32], sizes = [4, 16], strides = [1, 1]} : vector<4x64xf32> to vector<4x16xf32>
    %269 = vector.extract_strided_slice %257 {offsets = [0, 48], sizes = [4, 16], strides = [1, 1]} : vector<4x64xf32> to vector<4x16xf32>
    %cst_89 = arith.constant 5.000000e-01 : f32
    %270 = vector.broadcast %cst_89 : f32 to vector<4x16xf32>
    %271 = arith.mulf %270, %269 : vector<4x16xf32>
    %cst_90 = arith.constant 5.000000e-01 : f32
    %272 = vector.broadcast %cst_90 : f32 to vector<4x16xf32>
    %273 = arith.addf %271, %272 : vector<4x16xf32>
    %274 = arith.mulf %267, %251 : vector<4x16xf32>
    %275 = arith.mulf %262, %268 : vector<4x16xf32>
    %276 = arith.addf %274, %275 : vector<4x16xf32>
    %277 = math.tanh %276 : vector<4x16xf32>
    %278 = arith.mulf %273, %277 : vector<4x16xf32>
    %279 = vector.extract_strided_slice %100 {offsets = [28, 0], sizes = [4, 64], strides = [1, 1]} : vector<44x64xf32> to vector<4x64xf32>
    %cst_91 = arith.constant dense<0.000000e+00> : vector<4x64xf32>
    %280 = tpu.matmul %278, %101, %cst_91 {dimension_numbers = #tpu.dot_dimension_numbers<[1], [0], [0], [1], [0, 0, 1, 1], [], []>} : vector<4x16xf32>, vector<16x64xf32>, vector<4x64xf32> -> vector<4x64xf32>
    %281 = arith.addf %279, %280 : vector<4x64xf32>
    %282 = math.tanh %281 : vector<4x64xf32>
    %283 = vector.extract_strided_slice %282 {offsets = [0, 0], sizes = [4, 16], strides = [1, 1]} : vector<4x64xf32> to vector<4x16xf32>
    %cst_92 = arith.constant 5.000000e-01 : f32
    %284 = vector.broadcast %cst_92 : f32 to vector<4x16xf32>
    %285 = arith.mulf %284, %283 : vector<4x16xf32>
    %cst_93 = arith.constant 5.000000e-01 : f32
    %286 = vector.broadcast %cst_93 : f32 to vector<4x16xf32>
    %287 = arith.addf %285, %286 : vector<4x16xf32>
    %288 = vector.extract_strided_slice %282 {offsets = [0, 16], sizes = [4, 16], strides = [1, 1]} : vector<4x64xf32> to vector<4x16xf32>
    %cst_94 = arith.constant 5.000000e-01 : f32
    %289 = vector.broadcast %cst_94 : f32 to vector<4x16xf32>
    %290 = arith.mulf %289, %288 : vector<4x16xf32>
    %cst_95 = arith.constant 5.000000e-01 : f32
    %291 = vector.broadcast %cst_95 : f32 to vector<4x16xf32>
    %292 = arith.addf %290, %291 : vector<4x16xf32>
    %293 = vector.extract_strided_slice %282 {offsets = [0, 32], sizes = [4, 16], strides = [1, 1]} : vector<4x64xf32> to vector<4x16xf32>
    %294 = vector.extract_strided_slice %282 {offsets = [0, 48], sizes = [4, 16], strides = [1, 1]} : vector<4x64xf32> to vector<4x16xf32>
    %cst_96 = arith.constant 5.000000e-01 : f32
    %295 = vector.broadcast %cst_96 : f32 to vector<4x16xf32>
    %296 = arith.mulf %295, %294 : vector<4x16xf32>
    %cst_97 = arith.constant 5.000000e-01 : f32
    %297 = vector.broadcast %cst_97 : f32 to vector<4x16xf32>
    %298 = arith.addf %296, %297 : vector<4x16xf32>
    %299 = arith.mulf %292, %276 : vector<4x16xf32>
    %300 = arith.mulf %287, %293 : vector<4x16xf32>
    %301 = arith.addf %299, %300 : vector<4x16xf32>
    %302 = math.tanh %301 : vector<4x16xf32>
    %303 = arith.mulf %298, %302 : vector<4x16xf32>
    %304 = vector.extract_strided_slice %100 {offsets = [32, 0], sizes = [4, 64], strides = [1, 1]} : vector<44x64xf32> to vector<4x64xf32>
    %cst_98 = arith.constant dense<0.000000e+00> : vector<4x64xf32>
    %305 = tpu.matmul %303, %101, %cst_98 {dimension_numbers = #tpu.dot_dimension_numbers<[1], [0], [0], [1], [0, 0, 1, 1], [], []>} : vector<4x16xf32>, vector<16x64xf32>, vector<4x64xf32> -> vector<4x64xf32>
    %306 = arith.addf %304, %305 : vector<4x64xf32>
    %307 = math.tanh %306 : vector<4x64xf32>
    %308 = vector.extract_strided_slice %307 {offsets = [0, 0], sizes = [4, 16], strides = [1, 1]} : vector<4x64xf32> to vector<4x16xf32>
    %cst_99 = arith.constant 5.000000e-01 : f32
    %309 = vector.broadcast %cst_99 : f32 to vector<4x16xf32>
    %310 = arith.mulf %309, %308 : vector<4x16xf32>
    %cst_100 = arith.constant 5.000000e-01 : f32
    %311 = vector.broadcast %cst_100 : f32 to vector<4x16xf32>
    %312 = arith.addf %310, %311 : vector<4x16xf32>
    %313 = vector.extract_strided_slice %307 {offsets = [0, 16], sizes = [4, 16], strides = [1, 1]} : vector<4x64xf32> to vector<4x16xf32>
    %cst_101 = arith.constant 5.000000e-01 : f32
    %314 = vector.broadcast %cst_101 : f32 to vector<4x16xf32>
    %315 = arith.mulf %314, %313 : vector<4x16xf32>
    %cst_102 = arith.constant 5.000000e-01 : f32
    %316 = vector.broadcast %cst_102 : f32 to vector<4x16xf32>
    %317 = arith.addf %315, %316 : vector<4x16xf32>
    %318 = vector.extract_strided_slice %307 {offsets = [0, 32], sizes = [4, 16], strides = [1, 1]} : vector<4x64xf32> to vector<4x16xf32>
    %319 = vector.extract_strided_slice %307 {offsets = [0, 48], sizes = [4, 16], strides = [1, 1]} : vector<4x64xf32> to vector<4x16xf32>
    %cst_103 = arith.constant 5.000000e-01 : f32
    %320 = vector.broadcast %cst_103 : f32 to vector<4x16xf32>
    %321 = arith.mulf %320, %319 : vector<4x16xf32>
    %cst_104 = arith.constant 5.000000e-01 : f32
    %322 = vector.broadcast %cst_104 : f32 to vector<4x16xf32>
    %323 = arith.addf %321, %322 : vector<4x16xf32>
    %324 = arith.mulf %317, %301 : vector<4x16xf32>
    %325 = arith.mulf %312, %318 : vector<4x16xf32>
    %326 = arith.addf %324, %325 : vector<4x16xf32>
    %327 = math.tanh %326 : vector<4x16xf32>
    %328 = arith.mulf %323, %327 : vector<4x16xf32>
    %329 = vector.extract_strided_slice %100 {offsets = [36, 0], sizes = [4, 64], strides = [1, 1]} : vector<44x64xf32> to vector<4x64xf32>
    %cst_105 = arith.constant dense<0.000000e+00> : vector<4x64xf32>
    %330 = tpu.matmul %328, %101, %cst_105 {dimension_numbers = #tpu.dot_dimension_numbers<[1], [0], [0], [1], [0, 0, 1, 1], [], []>} : vector<4x16xf32>, vector<16x64xf32>, vector<4x64xf32> -> vector<4x64xf32>
    %331 = arith.addf %329, %330 : vector<4x64xf32>
    %332 = math.tanh %331 : vector<4x64xf32>
    %333 = vector.extract_strided_slice %332 {offsets = [0, 0], sizes = [4, 16], strides = [1, 1]} : vector<4x64xf32> to vector<4x16xf32>
    %cst_106 = arith.constant 5.000000e-01 : f32
    %334 = vector.broadcast %cst_106 : f32 to vector<4x16xf32>
    %335 = arith.mulf %334, %333 : vector<4x16xf32>
    %cst_107 = arith.constant 5.000000e-01 : f32
    %336 = vector.broadcast %cst_107 : f32 to vector<4x16xf32>
    %337 = arith.addf %335, %336 : vector<4x16xf32>
    %338 = vector.extract_strided_slice %332 {offsets = [0, 16], sizes = [4, 16], strides = [1, 1]} : vector<4x64xf32> to vector<4x16xf32>
    %cst_108 = arith.constant 5.000000e-01 : f32
    %339 = vector.broadcast %cst_108 : f32 to vector<4x16xf32>
    %340 = arith.mulf %339, %338 : vector<4x16xf32>
    %cst_109 = arith.constant 5.000000e-01 : f32
    %341 = vector.broadcast %cst_109 : f32 to vector<4x16xf32>
    %342 = arith.addf %340, %341 : vector<4x16xf32>
    %343 = vector.extract_strided_slice %332 {offsets = [0, 32], sizes = [4, 16], strides = [1, 1]} : vector<4x64xf32> to vector<4x16xf32>
    %344 = vector.extract_strided_slice %332 {offsets = [0, 48], sizes = [4, 16], strides = [1, 1]} : vector<4x64xf32> to vector<4x16xf32>
    %cst_110 = arith.constant 5.000000e-01 : f32
    %345 = vector.broadcast %cst_110 : f32 to vector<4x16xf32>
    %346 = arith.mulf %345, %344 : vector<4x16xf32>
    %cst_111 = arith.constant 5.000000e-01 : f32
    %347 = vector.broadcast %cst_111 : f32 to vector<4x16xf32>
    %348 = arith.addf %346, %347 : vector<4x16xf32>
    %349 = arith.mulf %342, %326 : vector<4x16xf32>
    %350 = arith.mulf %337, %343 : vector<4x16xf32>
    %351 = arith.addf %349, %350 : vector<4x16xf32>
    %352 = math.tanh %351 : vector<4x16xf32>
    %353 = arith.mulf %348, %352 : vector<4x16xf32>
    %354 = vector.extract_strided_slice %100 {offsets = [40, 0], sizes = [4, 64], strides = [1, 1]} : vector<44x64xf32> to vector<4x64xf32>
    %cst_112 = arith.constant dense<0.000000e+00> : vector<4x64xf32>
    %355 = tpu.matmul %353, %101, %cst_112 {dimension_numbers = #tpu.dot_dimension_numbers<[1], [0], [0], [1], [0, 0, 1, 1], [], []>} : vector<4x16xf32>, vector<16x64xf32>, vector<4x64xf32> -> vector<4x64xf32>
    %356 = arith.addf %354, %355 : vector<4x64xf32>
    %357 = math.tanh %356 : vector<4x64xf32>
    %358 = vector.extract_strided_slice %357 {offsets = [0, 0], sizes = [4, 16], strides = [1, 1]} : vector<4x64xf32> to vector<4x16xf32>
    %cst_113 = arith.constant 5.000000e-01 : f32
    %359 = vector.broadcast %cst_113 : f32 to vector<4x16xf32>
    %360 = arith.mulf %359, %358 : vector<4x16xf32>
    %cst_114 = arith.constant 5.000000e-01 : f32
    %361 = vector.broadcast %cst_114 : f32 to vector<4x16xf32>
    %362 = arith.addf %360, %361 : vector<4x16xf32>
    %363 = vector.extract_strided_slice %357 {offsets = [0, 16], sizes = [4, 16], strides = [1, 1]} : vector<4x64xf32> to vector<4x16xf32>
    %cst_115 = arith.constant 5.000000e-01 : f32
    %364 = vector.broadcast %cst_115 : f32 to vector<4x16xf32>
    %365 = arith.mulf %364, %363 : vector<4x16xf32>
    %cst_116 = arith.constant 5.000000e-01 : f32
    %366 = vector.broadcast %cst_116 : f32 to vector<4x16xf32>
    %367 = arith.addf %365, %366 : vector<4x16xf32>
    %368 = vector.extract_strided_slice %357 {offsets = [0, 32], sizes = [4, 16], strides = [1, 1]} : vector<4x64xf32> to vector<4x16xf32>
    %369 = vector.extract_strided_slice %357 {offsets = [0, 48], sizes = [4, 16], strides = [1, 1]} : vector<4x64xf32> to vector<4x16xf32>
    %cst_117 = arith.constant 5.000000e-01 : f32
    %370 = vector.broadcast %cst_117 : f32 to vector<4x16xf32>
    %371 = arith.mulf %370, %369 : vector<4x16xf32>
    %cst_118 = arith.constant 5.000000e-01 : f32
    %372 = vector.broadcast %cst_118 : f32 to vector<4x16xf32>
    %373 = arith.addf %371, %372 : vector<4x16xf32>
    %374 = arith.mulf %367, %351 : vector<4x16xf32>
    %375 = arith.mulf %362, %368 : vector<4x16xf32>
    %376 = arith.addf %374, %375 : vector<4x16xf32>
    %377 = math.tanh %376 : vector<4x16xf32>
    %378 = arith.mulf %373, %377 : vector<4x16xf32>
    %cst_119 = arith.constant 0.000000e+00 : f32
    %379 = vector.broadcast %cst_119 : f32 to vector<4x16xf32>
    %380 = arith.maximumf %378, %379 : vector<4x16xf32>
    %cst_120 = arith.constant 0.000000e+00 : f32
    %381 = vector.broadcast %cst_120 : f32 to vector<4x96xf32>
    %382 = tpu.concatenate %40, %380, %381 in 1 : vector<4x16xf32>, vector<4x16xf32>, vector<4x96xf32> -> vector<4x128xf32>
    %c0_121 = arith.constant 0 : index
    %c0_122 = arith.constant 0 : index
    %383 = vector.load %arg16[%c0_121, %c0_122] : memref<4x128xf32, #tpu.memory_space<vmem>>, vector<4x128xf32>
    tpu.vector_store %arg16[%c0_121, %c0_122], %382 {strides = array<i32>} : memref<4x128xf32, #tpu.memory_space<vmem>>, vector<4x128xf32>,
    return
  }
}

</mosaic_0001>

<llo_original>
// kernel: tpu_custom_call.1
$region0: #{tpu_custom_call.1}
  #allocation0 [shape = 'u32[]', space=smem, size = 0x4, offset = 0x4, fixed_abs, tag = 'smem constant byte address 0x4 - core index']
  #allocation1 [shape = 'u32[72,128]{1,0:T(1,128)}', space=vmem, size = 0x9000, scoped, tag = 'internal scratch']
  %s0 = inlined_call_operand.hbm [shape: f32[8,128], index: 0, kind: input, shape index: {}]
  %s1 = inlined_call_operand.hbm [shape: f32[4,128], index: 1, kind: input, shape index: {}]
  %s2 = inlined_call_operand.hbm [shape: s32[4,16], index: 2, kind: input, shape index: {}]
  %s3 = inlined_call_operand.vmem [shape: f32[128,512], index: 3, kind: input, shape index: {}]
  %s4 = inlined_call_operand.hbm [shape: f32[1,512], index: 4, kind: input, shape index: {}]
  %s5 = inlined_call_operand.hbm [shape: f32[1,512], index: 5, kind: input, shape index: {}]
  %s6 = inlined_call_operand.hbm [shape: f32[512,768], index: 6, kind: input, shape index: {}]
  %s7 = inlined_call_operand.hbm [shape: f32[1,768], index: 7, kind: input, shape index: {}]
  %s8 = inlined_call_operand.vmem [shape: f32[1664,64], index: 8, kind: input, shape index: {}]
  %s9 = inlined_call_operand.hbm [shape: f32[1,64], index: 9, kind: input, shape index: {}]
  %s10 = inlined_call_operand.vmem [shape: f32[64,32], index: 10, kind: input, shape index: {}]
  %s11 = inlined_call_operand.hbm [shape: f32[1,32], index: 11, kind: input, shape index: {}]
  %s12 = inlined_call_operand.vmem [shape: f32[32,16], index: 12, kind: input, shape index: {}]
  %s13 = inlined_call_operand.hbm [shape: f32[1,16], index: 13, kind: input, shape index: {}]
  %s14 = inlined_call_operand.hbm [shape: f32[32,64], index: 14, kind: input, shape index: {}]
  %s15 = inlined_call_operand.hbm [shape: f32[16,64], index: 15, kind: input, shape index: {}]
  %s16 = inlined_call_operand.hbm [shape: f32[4,128], index: 16, kind: output, shape index: {}]
  %s17 = sld [smem:[#allocation0]]
  $region122: #{tpu_custom_call.1} parent=0
    _
  %s19 = ssub.s32 1, %s17
  %s20 = scalar_select 0, %s19, %s17
  $region1: #{tpu_custom_call.1} parent=0
    #allocation2 [shape = 'u8[4096]{0}', space=vmem, size = 0x1000, scoped, tag = 'input window, operand 0, single buffered']
    #allocation3 [shape = 's32[1]{0}', space=sflag, size = 0x4, scoped, tag = 'scoped memory for tpu_custom_call.1']
    #allocation4 [shape = 's32[1]{0}', space=sflag, size = 0x4, scoped, tag = 'scoped memory for tpu_custom_call.1']
    #allocation5 [shape = 'u8[2048]{0}', space=vmem, size = 0x800, scoped, tag = 'input window, operand 1, single buffered']
    #allocation6 [shape = 's32[1]{0}', space=sflag, size = 0x4, scoped, tag = 'scoped memory for tpu_custom_call.1']
    #allocation7 [shape = 'u8[2048]{0}', space=vmem, size = 0x800, scoped, tag = 'input window, operand 2, single buffered']
    #allocation8 [shape = 'u8[2048]{0}', space=vmem, size = 0x800, scoped, tag = 'input window, operand 4, single buffered']
    #allocation9 [shape = 's32[1]{0}', space=sflag, size = 0x4, scoped, tag = 'scoped memory for tpu_custom_call.1']
    #allocation10 [shape = 'u8[2048]{0}', space=vmem, size = 0x800, scoped, tag = 'input window, operand 5, single buffered']
    #allocation11 [shape = 'u8[1572864]{0}', space=vmem, size = 0x180000, scoped, tag = 'input window, operand 6, single buffered']
    #allocation12 [shape = 's32[1]{0}', space=sflag, size = 0x4, scoped, tag = 'scoped memory for tpu_custom_call.1']
    #allocation13 [shape = 'u8[3072]{0}', space=vmem, size = 0xc00, scoped, tag = 'input window, operand 7, single buffered']
    #allocation14 [shape = 'u8[512]{0}', space=vmem, size = 0x400, scoped, tag = 'input window, operand 9, single buffered']
    #allocation15 [shape = 's32[1]{0}', space=sflag, size = 0x4, scoped, tag = 'scoped memory for tpu_custom_call.1']
    #allocation16 [shape = 'u8[512]{0}', space=vmem, size = 0x400, scoped, tag = 'input window, operand 11, single buffered']
    #allocation17 [shape = 'u8[512]{0}', space=vmem, size = 0x400, scoped, tag = 'input window, operand 13, single buffered']
    #allocation18 [shape = 's32[1]{0}', space=sflag, size = 0x4, scoped, tag = 'scoped memory for tpu_custom_call.1']
    #allocation19 [shape = 'u8[16384]{0}', space=vmem, size = 0x4000, scoped, tag = 'input window, operand 14, single buffered']
    #allocation20 [shape = 'u8[8192]{0}', space=vmem, size = 0x2000, scoped, tag = 'input window, operand 15, single buffered']
    #allocation21 [shape = 's32[1]{0}', space=sflag, size = 0x4, scoped, tag = 'scoped memory for tpu_custom_call.1']
    #allocation22 [shape = 'u8[2048]{0}', space=vmem, size = 0x800, scoped, tag = 'output window, operand 0, single buffered']
    %21 = vsyncpa [#allocation3], 0
    %22 = vsyncpa [#allocation6], 0
    %23 = vsyncpa [#allocation9], 0
    %24 = vsyncpa [#allocation12], 0
    %25 = vsyncpa [#allocation15], 0
    %26 = vsyncpa [#allocation18], 0
    %27 = vsyncpa [#allocation21], 0
    %28 = vsyncpa [#allocation4], 0
    // Predicated region
    $region2: #{tpu_custom_call.1} parent=1 // pred_check
      _
    $region3: #{tpu_custom_call.1} parent=1 // pred_check_branch
      %30 = sbr.rel (0) target = $region5
    $region4: #{tpu_custom_call.1} parent=1 // pred_region
      %32 = vsyncadd [#allocation3], 0
      %s34 = sshll.u32 %s0, 4
      %s35 = int_to_ptr.hbm [resolvable:$true] %s34
      %s36 = sshll.u32 [#allocation2], 4
      %s37 = int_to_ptr.vmem [resolvable:$true] %s36
      %39 = dma.hbm_to_vmem [thread:$0]  %s35, 128, %s37, [#allocation3]
    $region5: #{tpu_custom_call.1} parent=1 // pred_fallthru
      _
    // Predicated region
    $region6: #{tpu_custom_call.1} parent=1 // pred_check
      _
    $region7: #{tpu_custom_call.1} parent=1 // pred_check_branch
      %41 = sbr.rel (0) target = $region9
    $region8: #{tpu_custom_call.1} parent=1 // pred_region
      %43 = vsyncadd [#allocation6], 0
      %s45 = sshll.u32 %s1, 4
      %s46 = int_to_ptr.hbm [resolvable:$true] %s45
      %s47 = sshll.u32 [#allocation5], 4
      %s48 = int_to_ptr.vmem [resolvable:$true] %s47
      %50 = dma.hbm_to_vmem [thread:$0]  %s46, 64, %s48, [#allocation6]
    $region9: #{tpu_custom_call.1} parent=1 // pred_fallthru
      _
    // Predicated region
    $region10: #{tpu_custom_call.1} parent=1 // pred_check
      _
    $region11: #{tpu_custom_call.1} parent=1 // pred_check_branch
      %52 = sbr.rel (0) target = $region13
    $region12: #{tpu_custom_call.1} parent=1 // pred_region
      %54 = vsyncadd [#allocation6], 0
      %s56 = sshll.u32 %s2, 4
      %s57 = int_to_ptr.hbm [resolvable:$true] %s56
      %s58 = sshll.u32 [#allocation7], 4
      %s59 = int_to_ptr.vmem [resolvable:$true] %s58
      %61 = dma.hbm_to_vmem [thread:$0]  %s57, 64, %s59, [#allocation6]
    $region13: #{tpu_custom_call.1} parent=1 // pred_fallthru
      _
    // Predicated region
    $region14: #{tpu_custom_call.1} parent=1 // pred_check
      _
    $region15: #{tpu_custom_call.1} parent=1 // pred_check_branch
      %63 = sbr.rel (0) target = $region17
    $region16: #{tpu_custom_call.1} parent=1 // pred_region
      _
    $region17: #{tpu_custom_call.1} parent=1 // pred_fallthru
      _
    // Predicated region
    $region18: #{tpu_custom_call.1} parent=1 // pred_check
      _
    $region19: #{tpu_custom_call.1} parent=1 // pred_check_branch
      %65 = sbr.rel (0) target = $region21
    $region20: #{tpu_custom_call.1} parent=1 // pred_region
      %67 = vsyncadd [#allocation9], 0
      %s69 = sshll.u32 %s4, 4
      %s70 = int_to_ptr.hbm [resolvable:$true] %s69
      %s71 = sshll.u32 [#allocation8], 4
      %s72 = int_to_ptr.vmem [resolvable:$true] %s71
      %74 = dma.hbm_to_vmem [thread:$0]  %s70, 64, %s72, [#allocation9]
    $region21: #{tpu_custom_call.1} parent=1 // pred_fallthru
      _
    // Predicated region
    $region22: #{tpu_custom_call.1} parent=1 // pred_check
      _
    $region23: #{tpu_custom_call.1} parent=1 // pred_check_branch
      %76 = sbr.rel (0) target = $region25
    $region24: #{tpu_custom_call.1} parent=1 // pred_region
      %78 = vsyncadd [#allocation9], 0
      %s80 = sshll.u32 %s5, 4
      %s81 = int_to_ptr.hbm [resolvable:$true] %s80
      %s82 = sshll.u32 [#allocation10], 4
      %s83 = int_to_ptr.vmem [resolvable:$true] %s82
      %85 = dma.hbm_to_vmem [thread:$0]  %s81, 64, %s83, [#allocation9]
    $region25: #{tpu_custom_call.1} parent=1 // pred_fallthru
      _
    // Predicated region
    $region26: #{tpu_custom_call.1} parent=1 // pred_check
      _
    $region27: #{tpu_custom_call.1} parent=1 // pred_check_branch
      %87 = sbr.rel (0) target = $region29
    $region28: #{tpu_custom_call.1} parent=1 // pred_region
      %89 = vsyncadd [#allocation12], 0
      %s90 = sshll.u32 %s6, 4
      %s91 = int_to_ptr.hbm [resolvable:$true] %s90
      %s92 = sshll.u32 [#allocation11], 4
      %s93 = int_to_ptr.vmem [resolvable:$true] %s92
      %98 = dma.hbm_to_vmem [thread:$0]  %s91, 49152, %s93, [#allocation12], 768, 768, 48
    $region29: #{tpu_custom_call.1} parent=1 // pred_fallthru
      _
    // Predicated region
    $region30: #{tpu_custom_call.1} parent=1 // pred_check
      _
    $region31: #{tpu_custom_call.1} parent=1 // pred_check_branch
      %100 = sbr.rel (0) target = $region33
    $region32: #{tpu_custom_call.1} parent=1 // pred_region
      %102 = vsyncadd [#allocation12], 0
      %s104 = sshll.u32 %s7, 4
      %s105 = int_to_ptr.hbm [resolvable:$true] %s104
      %s106 = sshll.u32 [#allocation13], 4
      %s107 = int_to_ptr.vmem [resolvable:$true] %s106
      %109 = dma.hbm_to_vmem [thread:$0]  %s105, 96, %s107, [#allocation12]
    $region33: #{tpu_custom_call.1} parent=1 // pred_fallthru
      _
    // Predicated region
    $region34: #{tpu_custom_call.1} parent=1 // pred_check
      _
    $region35: #{tpu_custom_call.1} parent=1 // pred_check_branch
      %111 = sbr.rel (0) target = $region37
    $region36: #{tpu_custom_call.1} parent=1 // pred_region
      _
    $region37: #{tpu_custom_call.1} parent=1 // pred_fallthru
      _
    // Predicated region
    $region38: #{tpu_custom_call.1} parent=1 // pred_check
      _
    $region39: #{tpu_custom_call.1} parent=1 // pred_check_branch
      %113 = sbr.rel (0) target = $region41
    $region40: #{tpu_custom_call.1} parent=1 // pred_region
      %115 = vsyncadd [#allocation15], 0
      %s117 = sshll.u32 %s9, 4
      %s118 = int_to_ptr.hbm [resolvable:$true] %s117
      %s119 = sshll.u32 [#allocation14], 4
      %s120 = int_to_ptr.vmem [resolvable:$true] %s119
      %122 = dma.hbm_to_vmem [thread:$0]  %s118, 16, %s120, [#allocation15]
    $region41: #{tpu_custom_call.1} parent=1 // pred_fallthru
      _
    // Predicated region
    $region42: #{tpu_custom_call.1} parent=1 // pred_check
      _
    $region43: #{tpu_custom_call.1} parent=1 // pred_check_branch
      %124 = sbr.rel (0) target = $region45
    $region44: #{tpu_custom_call.1} parent=1 // pred_region
      _
    $region45: #{tpu_custom_call.1} parent=1 // pred_fallthru
      _
    // Predicated region
    $region46: #{tpu_custom_call.1} parent=1 // pred_check
      _
    $region47: #{tpu_custom_call.1} parent=1 // pred_check_branch
      %126 = sbr.rel (0) target = $region49
    $region48: #{tpu_custom_call.1} parent=1 // pred_region
      %128 = vsyncadd [#allocation15], 0
      %s130 = sshll.u32 %s11, 4
      %s131 = int_to_ptr.hbm [resolvable:$true] %s130
      %s132 = sshll.u32 [#allocation16], 4
      %s133 = int_to_ptr.vmem [resolvable:$true] %s132
      %135 = dma.hbm_to_vmem [thread:$0]  %s131, 16, %s133, [#allocation15]
    $region49: #{tpu_custom_call.1} parent=1 // pred_fallthru
      _
    // Predicated region
    $region50: #{tpu_custom_call.1} parent=1 // pred_check
      _
    $region51: #{tpu_custom_call.1} parent=1 // pred_check_branch
      %137 = sbr.rel (0) target = $region53
    $region52: #{tpu_custom_call.1} parent=1 // pred_region
      _
    $region53: #{tpu_custom_call.1} parent=1 // pred_fallthru
      _
    // Predicated region
    $region54: #{tpu_custom_call.1} parent=1 // pred_check
      _
    $region55: #{tpu_custom_call.1} parent=1 // pred_check_branch
      %139 = sbr.rel (0) target = $region57
    $region56: #{tpu_custom_call.1} parent=1 // pred_region
      %141 = vsyncadd [#allocation18], 0
      %s143 = sshll.u32 %s13, 4
      %s144 = int_to_ptr.hbm [resolvable:$true] %s143
      %s145 = sshll.u32 [#allocation17], 4
      %s146 = int_to_ptr.vmem [resolvable:$true] %s145
      %148 = dma.hbm_to_vmem [thread:$0]  %s144, 16, %s146, [#allocation18]
    $region57: #{tpu_custom_call.1} parent=1 // pred_fallthru
      _
    // Predicated region
    $region58: #{tpu_custom_call.1} parent=1 // pred_check
      _
    $region59: #{tpu_custom_call.1} parent=1 // pred_check_branch
      %150 = sbr.rel (0) target = $region61
    $region60: #{tpu_custom_call.1} parent=1 // pred_region
      %152 = vsyncadd [#allocation18], 0
      %s153 = sshll.u32 %s14, 4
      %s154 = int_to_ptr.hbm [resolvable:$true] %s153
      %s155 = sshll.u32 [#allocation19], 4
      %s156 = int_to_ptr.vmem [resolvable:$true] %s155
      %161 = dma.hbm_to_vmem [thread:$0]  %s154, 512, %s156, [#allocation18], 128, 128, 8
    $region61: #{tpu_custom_call.1} parent=1 // pred_fallthru
      _
    // Predicated region
    $region62: #{tpu_custom_call.1} parent=1 // pred_check
      _
    $region63: #{tpu_custom_call.1} parent=1 // pred_check_branch
      %163 = sbr.rel (0) target = $region65
    $region64: #{tpu_custom_call.1} parent=1 // pred_region
      %165 = vsyncadd [#allocation21], 0
      %s166 = sshll.u32 %s15, 4
      %s167 = int_to_ptr.hbm [resolvable:$true] %s166
      %s168 = sshll.u32 [#allocation20], 4
      %s169 = int_to_ptr.vmem [resolvable:$true] %s168
      %174 = dma.hbm_to_vmem [thread:$0]  %s167, 256, %s169, [#allocation21], 128, 128, 8
    $region65: #{tpu_custom_call.1} parent=1 // pred_fallthru
      _
    // Predicated region
    $region66: #{tpu_custom_call.1} parent=1 // pred_check
      _
    $region67: #{tpu_custom_call.1} parent=1 // pred_check_branch
      %176 = sbr.rel (0) target = $region69
    $region68: #{tpu_custom_call.1} parent=1 // pred_region
      %178 = dma.done [#allocation3], 128
    $region69: #{tpu_custom_call.1} parent=1 // pred_fallthru
      _
    // Predicated region
    $region70: #{tpu_custom_call.1} parent=1 // pred_check
      _
    $region71: #{tpu_custom_call.1} parent=1 // pred_check_branch
      %180 = sbr.rel (0) target = $region73
    $region72: #{tpu_custom_call.1} parent=1 // pred_region
      %182 = dma.done [#allocation6], 64
    $region73: #{tpu_custom_call.1} parent=1 // pred_fallthru
      _
    // Predicated region
    $region74: #{tpu_custom_call.1} parent=1 // pred_check
      _
    $region75: #{tpu_custom_call.1} parent=1 // pred_check_branch
      %184 = sbr.rel (0) target = $region77
    $region76: #{tpu_custom_call.1} parent=1 // pred_region
      %186 = dma.done [#allocation6], 64
    $region77: #{tpu_custom_call.1} parent=1 // pred_fallthru
      _
    // Predicated region
    $region78: #{tpu_custom_call.1} parent=1 // pred_check
      _
    $region79: #{tpu_custom_call.1} parent=1 // pred_check_branch
      %188 = sbr.rel (0) target = $region81
    $region80: #{tpu_custom_call.1} parent=1 // pred_region
      %190 = dma.done [#allocation9], 64
    $region81: #{tpu_custom_call.1} parent=1 // pred_fallthru
      _
    // Predicated region
    $region82: #{tpu_custom_call.1} parent=1 // pred_check
      _
    $region83: #{tpu_custom_call.1} parent=1 // pred_check_branch
      %192 = sbr.rel (0) target = $region85
    $region84: #{tpu_custom_call.1} parent=1 // pred_region
      %194 = dma.done [#allocation9], 64
    $region85: #{tpu_custom_call.1} parent=1 // pred_fallthru
      _
    // Predicated region
    $region86: #{tpu_custom_call.1} parent=1 // pred_check
      _
    $region87: #{tpu_custom_call.1} parent=1 // pred_check_branch
      %196 = sbr.rel (0) target = $region89
    $region88: #{tpu_custom_call.1} parent=1 // pred_region
      %198 = dma.done [#allocation12], 49152
    $region89: #{tpu_custom_call.1} parent=1 // pred_fallthru
      _
    // Predicated region
    $region90: #{tpu_custom_call.1} parent=1 // pred_check
      _
    $region91: #{tpu_custom_call.1} parent=1 // pred_check_branch
      %200 = sbr.rel (0) target = $region93
    $region92: #{tpu_custom_call.1} parent=1 // pred_region
      %202 = dma.done [#allocation12], 96
    $region93: #{tpu_custom_call.1} parent=1 // pred_fallthru
      _
    // Predicated region
    $region94: #{tpu_custom_call.1} parent=1 // pred_check
      _
    $region95: #{tpu_custom_call.1} parent=1 // pred_check_branch
      %204 = sbr.rel (0) target = $region97
    $region96: #{tpu_custom_call.1} parent=1 // pred_region
      %206 = dma.done [#allocation15], 16
    $region97: #{tpu_custom_call.1} parent=1 // pred_fallthru
      _
    // Predicated region
    $region98: #{tpu_custom_call.1} parent=1 // pred_check
      _
    $region99: #{tpu_custom_call.1} parent=1 // pred_check_branch
      %208 = sbr.rel (0) target = $region101
    $region100: #{tpu_custom_call.1} parent=1 // pred_region
      %210 = dma.done [#allocation15], 16
    $region101: #{tpu_custom_call.1} parent=1 // pred_fallthru
      _
    // Predicated region
    $region102: #{tpu_custom_call.1} parent=1 // pred_check
      _
    $region103: #{tpu_custom_call.1} parent=1 // pred_check_branch
      %212 = sbr.rel (0) target = $region105
    $region104: #{tpu_custom_call.1} parent=1 // pred_region
      %214 = dma.done [#allocation18], 16
    $region105: #{tpu_custom_call.1} parent=1 // pred_fallthru
      _
    // Predicated region
    $region106: #{tpu_custom_call.1} parent=1 // pred_check
      _
    $region107: #{tpu_custom_call.1} parent=1 // pred_check_branch
      %216 = sbr.rel (0) target = $region109
    $region108: #{tpu_custom_call.1} parent=1 // pred_region
      %218 = dma.done [#allocation18], 512
    $region109: #{tpu_custom_call.1} parent=1 // pred_fallthru
      _
    // Predicated region
    $region110: #{tpu_custom_call.1} parent=1 // pred_check
      _
    $region111: #{tpu_custom_call.1} parent=1 // pred_check_branch
      %220 = sbr.rel (0) target = $region113
    $region112: #{tpu_custom_call.1} parent=1 // pred_region
      %222 = dma.done [#allocation21], 256
    $region113: #{tpu_custom_call.1} parent=1 // pred_fallthru
      _
    %v223 = vld [vmem:[#allocation2] sm:$0xff]
    %v224 = vld [vmem:[%s3] sm:$0xff]
    %v225 = vld [vmem:[%s3 + $0x8] sm:$0xff]
    %v226 = vld [vmem:[%s3 + $0x10] sm:$0xff]
    %v227 = vld [vmem:[%s3 + $0x18] sm:$0xff]
    %v228 = vld [vmem:[%s3 + $0x20] sm:$0xff]
    %v229 = vld [vmem:[%s3 + $0x28] sm:$0xff]
    %v230 = vld [vmem:[%s3 + $0x30] sm:$0xff]
    %v231 = vld [vmem:[%s3 + $0x38] sm:$0xff]
    %v232 = vld [vmem:[%s3 + $0x40] sm:$0xff]
    %v233 = vld [vmem:[%s3 + $0x48] sm:$0xff]
    %v234 = vld [vmem:[%s3 + $0x50] sm:$0xff]
    %v235 = vld [vmem:[%s3 + $0x58] sm:$0xff]
    %v236 = vld [vmem:[%s3 + $0x60] sm:$0xff]
    %v237 = vld [vmem:[%s3 + $0x68] sm:$0xff]
    %v238 = vld [vmem:[%s3 + $0x70] sm:$0xff]
    %v239 = vld [vmem:[%s3 + $0x78] sm:$0xff]
    %v240 = vld [vmem:[%s3 + $0x80] sm:$0xff]
    %v241 = vld [vmem:[%s3 + $0x88] sm:$0xff]
    %v242 = vld [vmem:[%s3 + $0x90] sm:$0xff]
    %v243 = vld [vmem:[%s3 + $0x98] sm:$0xff]
    %v244 = vld [vmem:[%s3 + $0xa0] sm:$0xff]
    %v245 = vld [vmem:[%s3 + $0xa8] sm:$0xff]
    %v246 = vld [vmem:[%s3 + $0xb0] sm:$0xff]
    %v247 = vld [vmem:[%s3 + $0xb8] sm:$0xff]
    %v248 = vld [vmem:[%s3 + $0xc0] sm:$0xff]
    %v249 = vld [vmem:[%s3 + $0xc8] sm:$0xff]
    %v250 = vld [vmem:[%s3 + $0xd0] sm:$0xff]
    %v251 = vld [vmem:[%s3 + $0xd8] sm:$0xff]
    %v252 = vld [vmem:[%s3 + $0xe0] sm:$0xff]
    %v253 = vld [vmem:[%s3 + $0xe8] sm:$0xff]
    %v254 = vld [vmem:[%s3 + $0xf0] sm:$0xff]
    %v255 = vld [vmem:[%s3 + $0xf8] sm:$0xff]
    %v256 = vld [vmem:[%s3 + $0x100] sm:$0xff]
    %v257 = vld [vmem:[%s3 + $0x108] sm:$0xff]
    %v258 = vld [vmem:[%s3 + $0x110] sm:$0xff]
    %v259 = vld [vmem:[%s3 + $0x118] sm:$0xff]
    %v260 = vld [vmem:[%s3 + $0x120] sm:$0xff]
    %v261 = vld [vmem:[%s3 + $0x128] sm:$0xff]
    %v262 = vld [vmem:[%s3 + $0x130] sm:$0xff]
    %v263 = vld [vmem:[%s3 + $0x138] sm:$0xff]
    %v264 = vld [vmem:[%s3 + $0x140] sm:$0xff]
    %v265 = vld [vmem:[%s3 + $0x148] sm:$0xff]
    %v266 = vld [vmem:[%s3 + $0x150] sm:$0xff]
    %v267 = vld [vmem:[%s3 + $0x158] sm:$0xff]
    %v268 = vld [vmem:[%s3 + $0x160] sm:$0xff]
    %v269 = vld [vmem:[%s3 + $0x168] sm:$0xff]
    %v270 = vld [vmem:[%s3 + $0x170] sm:$0xff]
    %v271 = vld [vmem:[%s3 + $0x178] sm:$0xff]
    %v272 = vld [vmem:[%s3 + $0x180] sm:$0xff]
    %v273 = vld [vmem:[%s3 + $0x188] sm:$0xff]
    %v274 = vld [vmem:[%s3 + $0x190] sm:$0xff]
    %v275 = vld [vmem:[%s3 + $0x198] sm:$0xff]
    %v276 = vld [vmem:[%s3 + $0x1a0] sm:$0xff]
    %v277 = vld [vmem:[%s3 + $0x1a8] sm:$0xff]
    %v278 = vld [vmem:[%s3 + $0x1b0] sm:$0xff]
    %v279 = vld [vmem:[%s3 + $0x1b8] sm:$0xff]
    %v280 = vld [vmem:[%s3 + $0x1c0] sm:$0xff]
    %v281 = vld [vmem:[%s3 + $0x1c8] sm:$0xff]
    %v282 = vld [vmem:[%s3 + $0x1d0] sm:$0xff]
    %v283 = vld [vmem:[%s3 + $0x1d8] sm:$0xff]
    %v284 = vld [vmem:[%s3 + $0x1e0] sm:$0xff]
    %v285 = vld [vmem:[%s3 + $0x1e8] sm:$0xff]
    %v286 = vld [vmem:[%s3 + $0x1f0] sm:$0xff]
    %v287 = vld [vmem:[%s3 + $0x1f8] sm:$0xff]
    %v288 = vld [vmem:[#allocation8] sm:$0xf]
    %v290 = vperm.slane %v288, 0
    %v291 = vperm.slane %v288, 1
    %v292 = vperm.slane %v288, 2
    %v293 = vperm.slane %v288, 3
    %298 = vmatpush.msra.mxu0 %v284
    %299 = vmatpush.msra.mxu0 %v280
    %300 = vmatpush.msra.mxu0 %v276
    %301 = vmatpush.msra.mxu0 %v272
    %302 = vmatpush.msra.mxu0 %v268
    %303 = vmatpush.msra.mxu0 %v264
    %304 = vmatpush.msra.mxu0 %v260
    %305 = vmatpush.msra.mxu0 %v256
    %306 = vmatpush.msra.mxu0 %v252
    %307 = vmatpush.msra.mxu0 %v248
    %308 = vmatpush.msra.mxu0 %v244
    %309 = vmatpush.msra.mxu0 %v240
    %310 = vmatpush.msra.mxu0 %v236
    %311 = vmatpush.msra.mxu0 %v232
    %312 = vmatpush.msra.mxu0 %v228
    %313 = vmatpush.msra.mxu0 %v224
    %314 = vmatmul.f32.gmra.mxu0 %v223
    %v315 = vpop.f32.mrf.mxu0
    %v316 = vadd.f32 %v290, %v315
    %317 = vdwg.mxu0
    %318 = vmatpush.msra.mxu0 %v285
    %319 = vmatpush.msra.mxu0 %v281
    %320 = vmatpush.msra.mxu0 %v277
    %321 = vmatpush.msra.mxu0 %v273
    %322 = vmatpush.msra.mxu0 %v269
    %323 = vmatpush.msra.mxu0 %v265
    %324 = vmatpush.msra.mxu0 %v261
    %325 = vmatpush.msra.mxu0 %v257
    %326 = vmatpush.msra.mxu0 %v253
    %327 = vmatpush.msra.mxu0 %v249
    %328 = vmatpush.msra.mxu0 %v245
    %329 = vmatpush.msra.mxu0 %v241
    %330 = vmatpush.msra.mxu0 %v237
    %331 = vmatpush.msra.mxu0 %v233
    %332 = vmatpush.msra.mxu0 %v229
    %333 = vmatpush.msra.mxu0 %v225
    %334 = vmatmul.f32.gmra.mxu0 %v223
    %v335 = vpop.f32.mrf.mxu0
    %v336 = vadd.f32 %v291, %v335
    %337 = vdwg.mxu0
    %338 = vmatpush.msra.mxu0 %v286
    %339 = vmatpush.msra.mxu0 %v282
    %340 = vmatpush.msra.mxu0 %v278
    %341 = vmatpush.msra.mxu0 %v274
    %342 = vmatpush.msra.mxu0 %v270
    %343 = vmatpush.msra.mxu0 %v266
    %344 = vmatpush.msra.mxu0 %v262
    %345 = vmatpush.msra.mxu0 %v258
    %346 = vmatpush.msra.mxu0 %v254
    %347 = vmatpush.msra.mxu0 %v250
    %348 = vmatpush.msra.mxu0 %v246
    %349 = vmatpush.msra.mxu0 %v242
    %350 = vmatpush.msra.mxu0 %v238
    %351 = vmatpush.msra.mxu0 %v234
    %352 = vmatpush.msra.mxu0 %v230
    %353 = vmatpush.msra.mxu0 %v226
    %354 = vmatmul.f32.gmra.mxu0 %v223
    %v355 = vpop.f32.mrf.mxu0
    %v356 = vadd.f32 %v292, %v355
    %357 = vdwg.mxu0
    %358 = vmatpush.msra.mxu0 %v287
    %359 = vmatpush.msra.mxu0 %v283
    %360 = vmatpush.msra.mxu0 %v279
    %361 = vmatpush.msra.mxu0 %v275
    %362 = vmatpush.msra.mxu0 %v271
    %363 = vmatpush.msra.mxu0 %v267
    %364 = vmatpush.msra.mxu0 %v263
    %365 = vmatpush.msra.mxu0 %v259
    %366 = vmatpush.msra.mxu0 %v255
    %367 = vmatpush.msra.mxu0 %v251
    %368 = vmatpush.msra.mxu0 %v247
    %369 = vmatpush.msra.mxu0 %v243
    %370 = vmatpush.msra.mxu0 %v239
    %371 = vmatpush.msra.mxu0 %v235
    %372 = vmatpush.msra.mxu0 %v231
    %373 = vmatpush.msra.mxu0 %v227
    %374 = vmatmul.f32.gmra.mxu0 %v223
    %v375 = vpop.f32.mrf.mxu0
    %v376 = vadd.f32 %v293, %v375
    %377 = vdwg.mxu0
    %v378 = vmax.f32 %v316, 0.0
    %v379 = vmax.f32 %v336, 0.0
    %v380 = vmax.f32 %v356, 0.0
    %v381 = vmax.f32 %v376, 0.0
    %v382 = vld [vmem:[#allocation10] sm:$0xf]
    %v384 = vperm.slane %v382, 0
    %v385 = vperm.slane %v382, 1
    %v386 = vperm.slane %v382, 2
    %v387 = vperm.slane %v382, 3
    %v392 = vmul.f32 %v378, %v384
    %v393 = vmul.f32 %v379, %v385
    %v394 = vmul.f32 %v380, %v386
    %v395 = vmul.f32 %v381, %v387
    %v396 = vld [vmem:[#allocation11] sm:$0xff]
    %v397 = vld [vmem:[#allocation11 + $0x8] sm:$0xff]
    %v398 = vld [vmem:[#allocation11 + $0x10] sm:$0xff]
    %v399 = vld [vmem:[#allocation11 + $0x18] sm:$0xff]
    %v400 = vld [vmem:[#allocation11 + $0x20] sm:$0xff]
    %v401 = vld [vmem:[#allocation11 + $0x28] sm:$0xff]
    %v402 = vld [vmem:[#allocation11 + $0x30] sm:$0xff]
    %v403 = vld [vmem:[#allocation11 + $0x38] sm:$0xff]
    %v404 = vld [vmem:[#allocation11 + $0x40] sm:$0xff]
    %v405 = vld [vmem:[#allocation11 + $0x48] sm:$0xff]
    %v406 = vld [vmem:[#allocation11 + $0x50] sm:$0xff]
    %v407 = vld [vmem:[#allocation11 + $0x58] sm:$0xff]
    %v408 = vld [vmem:[#allocation11 + $0x60] sm:$0xff]
    %v409 = vld [vmem:[#allocation11 + $0x68] sm:$0xff]
    %v410 = vld [vmem:[#allocation11 + $0x70] sm:$0xff]
    %v411 = vld [vmem:[#allocation11 + $0x78] sm:$0xff]
    %v412 = vld [vmem:[#allocation11 + $0x80] sm:$0xff]
    %v413 = vld [vmem:[#allocation11 + $0x88] sm:$0xff]
    %v414 = vld [vmem:[#allocation11 + $0x90] sm:$0xff]
    %v415 = vld [vmem:[#allocation11 + $0x98] sm:$0xff]
    %v416 = vld [vmem:[#allocation11 + $0xa0] sm:$0xff]
    %v417 = vld [vmem:[#allocation11 + $0xa8] sm:$0xff]
    %v418 = vld [vmem:[#allocation11 + $0xb0] sm:$0xff]
    %v419 = vld [vmem:[#allocation11 + $0xb8] sm:$0xff]
    %v420 = vld [vmem:[#allocation11 + $0xc0] sm:$0xff]
    %v421 = vld [vmem:[#allocation11 + $0xc8] sm:$0xff]
    %v422 = vld [vmem:[#allocation11 + $0xd0] sm:$0xff]
    %v423 = vld [vmem:[#allocation11 + $0xd8] sm:$0xff]
    %v424 = vld [vmem:[#allocation11 + $0xe0] sm:$0xff]
    %v425 = vld [vmem:[#allocation11 + $0xe8] sm:$0xff]
    %v426 = vld [vmem:[#allocation11 + $0xf0] sm:$0xff]
    %v427 = vld [vmem:[#allocation11 + $0xf8] sm:$0xff]
    %v428 = vld [vmem:[#allocation11 + $0x100] sm:$0xff]
    %v429 = vld [vmem:[#allocation11 + $0x108] sm:$0xff]
    %v430 = vld [vmem:[#allocation11 + $0x110] sm:$0xff]
    %v431 = vld [vmem:[#allocation11 + $0x118] sm:$0xff]
    %v432 = vld [vmem:[#allocation11 + $0x120] sm:$0xff]
    %v433 = vld [vmem:[#allocation11 + $0x128] sm:$0xff]
    %v434 = vld [vmem:[#allocation11 + $0x130] sm:$0xff]
    %v435 = vld [vmem:[#allocation11 + $0x138] sm:$0xff]
    %v436 = vld [vmem:[#allocation11 + $0x140] sm:$0xff]
    %v437 = vld [vmem:[#allocation11 + $0x148] sm:$0xff]
    %v438 = vld [vmem:[#allocation11 + $0x150] sm:$0xff]
    %v439 = vld [vmem:[#allocation11 + $0x158] sm:$0xff]
    %v440 = vld [vmem:[#allocation11 + $0x160] sm:$0xff]
    %v441 = vld [vmem:[#allocation11 + $0x168] sm:$0xff]
    %v442 = vld [vmem:[#allocation11 + $0x170] sm:$0xff]
    %v443 = vld [vmem:[#allocation11 + $0x178] sm:$0xff]
    %v444 = vld [vmem:[#allocation11 + $0x180] sm:$0xff]
    %v445 = vld [vmem:[#allocation11 + $0x188] sm:$0xff]
    %v446 = vld [vmem:[#allocation11 + $0x190] sm:$0xff]
    %v447 = vld [vmem:[#allocation11 + $0x198] sm:$0xff]
    %v448 = vld [vmem:[#allocation11 + $0x1a0] sm:$0xff]
    %v449 = vld [vmem:[#allocation11 + $0x1a8] sm:$0xff]
    %v450 = vld [vmem:[#allocation11 + $0x1b0] sm:$0xff]
    %v451 = vld [vmem:[#allocation11 + $0x1b8] sm:$0xff]
    %v452 = vld [vmem:[#allocation11 + $0x1c0] sm:$0xff]
    %v453 = vld [vmem:[#allocation11 + $0x1c8] sm:$0xff]
    %v454 = vld [vmem:[#allocation11 + $0x1d0] sm:$0xff]
    %v455 = vld [vmem:[#allocation11 + $0x1d8] sm:$0xff]
    %v456 = vld [vmem:[#allocation11 + $0x1e0] sm:$0xff]
    %v457 = vld [vmem:[#allocation11 + $0x1e8] sm:$0xff]
    %v458 = vld [vmem:[#allocation11 + $0x1f0] sm:$0xff]
    %v459 = vld [vmem:[#allocation11 + $0x1f8] sm:$0xff]
    %v460 = vld [vmem:[#allocation11 + $0x200] sm:$0xff]
    %v461 = vld [vmem:[#allocation11 + $0x208] sm:$0xff]
    %v462 = vld [vmem:[#allocation11 + $0x210] sm:$0xff]
    %v463 = vld [vmem:[#allocation11 + $0x218] sm:$0xff]
    %v464 = vld [vmem:[#allocation11 + $0x220] sm:$0xff]
    %v465 = vld [vmem:[#allocation11 + $0x228] sm:$0xff]
    %v466 = vld [vmem:[#allocation11 + $0x230] sm:$0xff]
    %v467 = vld [vmem:[#allocation11 + $0x238] sm:$0xff]
    %v468 = vld [vmem:[#allocation11 + $0x240] sm:$0xff]
    %v469 = vld [vmem:[#allocation11 + $0x248] sm:$0xff]
    %v470 = vld [vmem:[#allocation11 + $0x250] sm:$0xff]
    %v471 = vld [vmem:[#allocation11 + $0x258] sm:$0xff]
    %v472 = vld [vmem:[#allocation11 + $0x260] sm:$0xff]
    %v473 = vld [vmem:[#allocation11 + $0x268] sm:$0xff]
    %v474 = vld [vmem:[#allocation11 + $0x270] sm:$0xff]
    %v475 = vld [vmem:[#allocation11 + $0x278] sm:$0xff]
    %v476 = vld [vmem:[#allocation11 + $0x280] sm:$0xff]
    %v477 = vld [vmem:[#allocation11 + $0x288] sm:$0xff]
    %v478 = vld [vmem:[#allocation11 + $0x290] sm:$0xff]
    %v479 = vld [vmem:[#allocation11 + $0x298] sm:$0xff]
    %v480 = vld [vmem:[#allocation11 + $0x2a0] sm:$0xff]
    %v481 = vld [vmem:[#allocation11 + $0x2a8] sm:$0xff]
    %v482 = vld [vmem:[#allocation11 + $0x2b0] sm:$0xff]
    %v483 = vld [vmem:[#allocation11 + $0x2b8] sm:$0xff]
    %v484 = vld [vmem:[#allocation11 + $0x2c0] sm:$0xff]
    %v485 = vld [vmem:[#allocation11 + $0x2c8] sm:$0xff]
    %v486 = vld [vmem:[#allocation11 + $0x2d0] sm:$0xff]
    %v487 = vld [vmem:[#allocation11 + $0x2d8] sm:$0xff]
    %v488 = vld [vmem:[#allocation11 + $0x2e0] sm:$0xff]
    %v489 = vld [vmem:[#allocation11 + $0x2e8] sm:$0xff]
    %v490 = vld [vmem:[#allocation11 + $0x2f0] sm:$0xff]
    %v491 = vld [vmem:[#allocation11 + $0x2f8] sm:$0xff]
    %v492 = vld [vmem:[#allocation11 + $0x300] sm:$0xff]
    %v493 = vld [vmem:[#allocation11 + $0x308] sm:$0xff]
    %v494 = vld [vmem:[#allocation11 + $0x310] sm:$0xff]
    %v495 = vld [vmem:[#allocation11 + $0x318] sm:$0xff]
    %v496 = vld [vmem:[#allocation11 + $0x320] sm:$0xff]
    %v497 = vld [vmem:[#allocation11 + $0x328] sm:$0xff]
    %v498 = vld [vmem:[#allocation11 + $0x330] sm:$0xff]
    %v499 = vld [vmem:[#allocation11 + $0x338] sm:$0xff]
    %v500 = vld [vmem:[#allocation11 + $0x340] sm:$0xff]
    %v501 = vld [vmem:[#allocation11 + $0x348] sm:$0xff]
    %v502 = vld [vmem:[#allocation11 + $0x350] sm:$0xff]
    %v503 = vld [vmem:[#allocation11 + $0x358] sm:$0xff]
    %v504 = vld [vmem:[#allocation11 + $0x360] sm:$0xff]
    %v505 = vld [vmem:[#allocation11 + $0x368] sm:$0xff]
    %v506 = vld [vmem:[#allocation11 + $0x370] sm:$0xff]
    %v507 = vld [vmem:[#allocation11 + $0x378] sm:$0xff]
    %v508 = vld [vmem:[#allocation11 + $0x380] sm:$0xff]
    %v509 = vld [vmem:[#allocation11 + $0x388] sm:$0xff]
    %v510 = vld [vmem:[#allocation11 + $0x390] sm:$0xff]
    %v511 = vld [vmem:[#allocation11 + $0x398] sm:$0xff]
    %v512 = vld [vmem:[#allocation11 + $0x3a0] sm:$0xff]
    %v513 = vld [vmem:[#allocation11 + $0x3a8] sm:$0xff]
    %v514 = vld [vmem:[#allocation11 + $0x3b0] sm:$0xff]
    %v515 = vld [vmem:[#allocation11 + $0x3b8] sm:$0xff]
    %v516 = vld [vmem:[#allocation11 + $0x3c0] sm:$0xff]
    %v517 = vld [vmem:[#allocation11 + $0x3c8] sm:$0xff]
    %v518 = vld [vmem:[#allocation11 + $0x3d0] sm:$0xff]
    %v519 = vld [vmem:[#allocation11 + $0x3d8] sm:$0xff]
    %v520 = vld [vmem:[#allocation11 + $0x3e0] sm:$0xff]
    %v521 = vld [vmem:[#allocation11 + $0x3e8] sm:$0xff]
    %v522 = vld [vmem:[#allocation11 + $0x3f0] sm:$0xff]
    %v523 = vld [vmem:[#allocation11 + $0x3f8] sm:$0xff]
    %v524 = vld [vmem:[#allocation11 + $0x400] sm:$0xff]
    %v525 = vld [vmem:[#allocation11 + $0x408] sm:$0xff]
    %v526 = vld [vmem:[#allocation11 + $0x410] sm:$0xff]
    %v527 = vld [vmem:[#allocation11 + $0x418] sm:$0xff]
    %v528 = vld [vmem:[#allocation11 + $0x420] sm:$0xff]
    %v529 = vld [vmem:[#allocation11 + $0x428] sm:$0xff]
    %v530 = vld [vmem:[#allocation11 + $0x430] sm:$0xff]
    %v531 = vld [vmem:[#allocation11 + $0x438] sm:$0xff]
    %v532 = vld [vmem:[#allocation11 + $0x440] sm:$0xff]
    %v533 = vld [vmem:[#allocation11 + $0x448] sm:$0xff]
    %v534 = vld [vmem:[#allocation11 + $0x450] sm:$0xff]
    %v535 = vld [vmem:[#allocation11 + $0x458] sm:$0xff]
    %v536 = vld [vmem:[#allocation11 + $0x460] sm:$0xff]
    %v537 = vld [vmem:[#allocation11 + $0x468] sm:$0xff]
    %v538 = vld [vmem:[#allocation11 + $0x470] sm:$0xff]
    %v539 = vld [vmem:[#allocation11 + $0x478] sm:$0xff]
    %v540 = vld [vmem:[#allocation11 + $0x480] sm:$0xff]
    %v541 = vld [vmem:[#allocation11 + $0x488] sm:$0xff]
    %v542 = vld [vmem:[#allocation11 + $0x490] sm:$0xff]
    %v543 = vld [vmem:[#allocation11 + $0x498] sm:$0xff]
    %v544 = vld [vmem:[#allocation11 + $0x4a0] sm:$0xff]
    %v545 = vld [vmem:[#allocation11 + $0x4a8] sm:$0xff]
    %v546 = vld [vmem:[#allocation11 + $0x4b0] sm:$0xff]
    %v547 = vld [vmem:[#allocation11 + $0x4b8] sm:$0xff]
    %v548 = vld [vmem:[#allocation11 + $0x4c0] sm:$0xff]
    %v549 = vld [vmem:[#allocation11 + $0x4c8] sm:$0xff]
    %v550 = vld [vmem:[#allocation11 + $0x4d0] sm:$0xff]
    %v551 = vld [vmem:[#allocation11 + $0x4d8] sm:$0xff]
    %v552 = vld [vmem:[#allocation11 + $0x4e0] sm:$0xff]
    %v553 = vld [vmem:[#allocation11 + $0x4e8] sm:$0xff]
    %v554 = vld [vmem:[#allocation11 + $0x4f0] sm:$0xff]
    %v555 = vld [vmem:[#allocation11 + $0x4f8] sm:$0xff]
    %v556 = vld [vmem:[#allocation11 + $0x500] sm:$0xff]
    %v557 = vld [vmem:[#allocation11 + $0x508] sm:$0xff]
    %v558 = vld [vmem:[#allocation11 + $0x510] sm:$0xff]
    %v559 = vld [vmem:[#allocation11 + $0x518] sm:$0xff]
    %v560 = vld [vmem:[#allocation11 + $0x520] sm:$0xff]
    %v561 = vld [vmem:[#allocation11 + $0x528] sm:$0xff]
    %v562 = vld [vmem:[#allocation11 + $0x530] sm:$0xff]
    %v563 = vld [vmem:[#allocation11 + $0x538] sm:$0xff]
    %v564 = vld [vmem:[#allocation11 + $0x540] sm:$0xff]
    %v565 = vld [vmem:[#allocation11 + $0x548] sm:$0xff]
    %v566 = vld [vmem:[#allocation11 + $0x550] sm:$0xff]
    %v567 = vld [vmem:[#allocation11 + $0x558] sm:$0xff]
    %v568 = vld [vmem:[#allocation11 + $0x560] sm:$0xff]
    %v569 = vld [vmem:[#allocation11 + $0x568] sm:$0xff]
    %v570 = vld [vmem:[#allocation11 + $0x570] sm:$0xff]
    %v571 = vld [vmem:[#allocation11 + $0x578] sm:$0xff]
    %v572 = vld [vmem:[#allocation11 + $0x580] sm:$0xff]
    %v573 = vld [vmem:[#allocation11 + $0x588] sm:$0xff]
    %v574 = vld [vmem:[#allocation11 + $0x590] sm:$0xff]
    %v575 = vld [vmem:[#allocation11 + $0x598] sm:$0xff]
    %v576 = vld [vmem:[#allocation11 + $0x5a0] sm:$0xff]
    %v577 = vld [vmem:[#allocation11 + $0x5a8] sm:$0xff]
    %v578 = vld [vmem:[#allocation11 + $0x5b0] sm:$0xff]
    %v579 = vld [vmem:[#allocation11 + $0x5b8] sm:$0xff]
    %v580 = vld [vmem:[#allocation11 + $0x5c0] sm:$0xff]
    %v581 = vld [vmem:[#allocation11 + $0x5c8] sm:$0xff]
    %v582 = vld [vmem:[#allocation11 + $0x5d0] sm:$0xff]
    %v583 = vld [vmem:[#allocation11 + $0x5d8] sm:$0xff]
    %v584 = vld [vmem:[#allocation11 + $0x5e0] sm:$0xff]
    %v585 = vld [vmem:[#allocation11 + $0x5e8] sm:$0xff]
    %v586 = vld [vmem:[#allocation11 + $0x5f0] sm:$0xff]
    %v587 = vld [vmem:[#allocation11 + $0x5f8] sm:$0xff]
    %v588 = vld [vmem:[#allocation11 + $0x600] sm:$0xff]
    %v589 = vld [vmem:[#allocation11 + $0x608] sm:$0xff]
    %v590 = vld [vmem:[#allocation11 + $0x610] sm:$0xff]
    %v591 = vld [vmem:[#allocation11 + $0x618] sm:$0xff]
    %v592 = vld [vmem:[#allocation11 + $0x620] sm:$0xff]
    %v593 = vld [vmem:[#allocation11 + $0x628] sm:$0xff]
    %v594 = vld [vmem:[#allocation11 + $0x630] sm:$0xff]
    %v595 = vld [vmem:[#allocation11 + $0x638] sm:$0xff]
    %v596 = vld [vmem:[#allocation11 + $0x640] sm:$0xff]
    %v597 = vld [vmem:[#allocation11 + $0x648] sm:$0xff]
    %v598 = vld [vmem:[#allocation11 + $0x650] sm:$0xff]
    %v599 = vld [vmem:[#allocation11 + $0x658] sm:$0xff]
    %v600 = vld [vmem:[#allocation11 + $0x660] sm:$0xff]
    %v601 = vld [vmem:[#allocation11 + $0x668] sm:$0xff]
    %v602 = vld [vmem:[#allocation11 + $0x670] sm:$0xff]
    %v603 = vld [vmem:[#allocation11 + $0x678] sm:$0xff]
    %v604 = vld [vmem:[#allocation11 + $0x680] sm:$0xff]
    %v605 = vld [vmem:[#allocation11 + $0x688] sm:$0xff]
    %v606 = vld [vmem:[#allocation11 + $0x690] sm:$0xff]
    %v607 = vld [vmem:[#allocation11 + $0x698] sm:$0xff]
    %v608 = vld [vmem:[#allocation11 + $0x6a0] sm:$0xff]
    %v609 = vld [vmem:[#allocation11 + $0x6a8] sm:$0xff]
    %v610 = vld [vmem:[#allocation11 + $0x6b0] sm:$0xff]
    %v611 = vld [vmem:[#allocation11 + $0x6b8] sm:$0xff]
    %v612 = vld [vmem:[#allocation11 + $0x6c0] sm:$0xff]
    %v613 = vld [vmem:[#allocation11 + $0x6c8] sm:$0xff]
    %v614 = vld [vmem:[#allocation11 + $0x6d0] sm:$0xff]
    %v615 = vld [vmem:[#allocation11 + $0x6d8] sm:$0xff]
    %v616 = vld [vmem:[#allocation11 + $0x6e0] sm:$0xff]
    %v617 = vld [vmem:[#allocation11 + $0x6e8] sm:$0xff]
    %v618 = vld [vmem:[#allocation11 + $0x6f0] sm:$0xff]
    %v619 = vld [vmem:[#allocation11 + $0x6f8] sm:$0xff]
    %v620 = vld [vmem:[#allocation11 + $0x700] sm:$0xff]
    %v621 = vld [vmem:[#allocation11 + $0x708] sm:$0xff]
    %v622 = vld [vmem:[#allocation11 + $0x710] sm:$0xff]
    %v623 = vld [vmem:[#allocation11 + $0x718] sm:$0xff]
    %v624 = vld [vmem:[#allocation11 + $0x720] sm:$0xff]
    %v625 = vld [vmem:[#allocation11 + $0x728] sm:$0xff]
    %v626 = vld [vmem:[#allocation11 + $0x730] sm:$0xff]
    %v627 = vld [vmem:[#allocation11 + $0x738] sm:$0xff]
    %v628 = vld [vmem:[#allocation11 + $0x740] sm:$0xff]
    %v629 = vld [vmem:[#allocation11 + $0x748] sm:$0xff]
    %v630 = vld [vmem:[#allocation11 + $0x750] sm:$0xff]
    %v631 = vld [vmem:[#allocation11 + $0x758] sm:$0xff]
    %v632 = vld [vmem:[#allocation11 + $0x760] sm:$0xff]
    %v633 = vld [vmem:[#allocation11 + $0x768] sm:$0xff]
    %v634 = vld [vmem:[#allocation11 + $0x770] sm:$0xff]
    %v635 = vld [vmem:[#allocation11 + $0x778] sm:$0xff]
    %v636 = vld [vmem:[#allocation11 + $0x780] sm:$0xff]
    %v637 = vld [vmem:[#allocation11 + $0x788] sm:$0xff]
    %v638 = vld [vmem:[#allocation11 + $0x790] sm:$0xff]
    %v639 = vld [vmem:[#allocation11 + $0x798] sm:$0xff]
    %v640 = vld [vmem:[#allocation11 + $0x7a0] sm:$0xff]
    %v641 = vld [vmem:[#allocation11 + $0x7a8] sm:$0xff]
    %v642 = vld [vmem:[#allocation11 + $0x7b0] sm:$0xff]
    %v643 = vld [vmem:[#allocation11 + $0x7b8] sm:$0xff]
    %v644 = vld [vmem:[#allocation11 + $0x7c0] sm:$0xff]
    %v645 = vld [vmem:[#allocation11 + $0x7c8] sm:$0xff]
    %v646 = vld [vmem:[#allocation11 + $0x7d0] sm:$0xff]
    %v647 = vld [vmem:[#allocation11 + $0x7d8] sm:$0xff]
    %v648 = vld [vmem:[#allocation11 + $0x7e0] sm:$0xff]
    %v649 = vld [vmem:[#allocation11 + $0x7e8] sm:$0xff]
    %v650 = vld [vmem:[#allocation11 + $0x7f0] sm:$0xff]
    %v651 = vld [vmem:[#allocation11 + $0x7f8] sm:$0xff]
    %v652 = vld [vmem:[#allocation11 + $0x800] sm:$0xff]
    %v653 = vld [vmem:[#allocation11 + $0x808] sm:$0xff]
    %v654 = vld [vmem:[#allocation11 + $0x810] sm:$0xff]
    %v655 = vld [vmem:[#allocation11 + $0x818] sm:$0xff]
    %v656 = vld [vmem:[#allocation11 + $0x820] sm:$0xff]
    %v657 = vld [vmem:[#allocation11 + $0x828] sm:$0xff]
    %v658 = vld [vmem:[#allocation11 + $0x830] sm:$0xff]
    %v659 = vld [vmem:[#allocation11 + $0x838] sm:$0xff]
    %v660 = vld [vmem:[#allocation11 + $0x840] sm:$0xff]
    %v661 = vld [vmem:[#allocation11 + $0x848] sm:$0xff]
    %v662 = vld [vmem:[#allocation11 + $0x850] sm:$0xff]
    %v663 = vld [vmem:[#allocation11 + $0x858] sm:$0xff]
    %v664 = vld [vmem:[#allocation11 + $0x860] sm:$0xff]
    %v665 = vld [vmem:[#allocation11 + $0x868] sm:$0xff]
    %v666 = vld [vmem:[#allocation11 + $0x870] sm:$0xff]
    %v667 = vld [vmem:[#allocation11 + $0x878] sm:$0xff]
    %v668 = vld [vmem:[#allocation11 + $0x880] sm:$0xff]
    %v669 = vld [vmem:[#allocation11 + $0x888] sm:$0xff]
    %v670 = vld [vmem:[#allocation11 + $0x890] sm:$0xff]
    %v671 = vld [vmem:[#allocation11 + $0x898] sm:$0xff]
    %v672 = vld [vmem:[#allocation11 + $0x8a0] sm:$0xff]
    %v673 = vld [vmem:[#allocation11 + $0x8a8] sm:$0xff]
    %v674 = vld [vmem:[#allocation11 + $0x8b0] sm:$0xff]
    %v675 = vld [vmem:[#allocation11 + $0x8b8] sm:$0xff]
    %v676 = vld [vmem:[#allocation11 + $0x8c0] sm:$0xff]
    %v677 = vld [vmem:[#allocation11 + $0x8c8] sm:$0xff]
    %v678 = vld [vmem:[#allocation11 + $0x8d0] sm:$0xff]
    %v679 = vld [vmem:[#allocation11 + $0x8d8] sm:$0xff]
    %v680 = vld [vmem:[#allocation11 + $0x8e0] sm:$0xff]
    %v681 = vld [vmem:[#allocation11 + $0x8e8] sm:$0xff]
    %v682 = vld [vmem:[#allocation11 + $0x8f0] sm:$0xff]
    %v683 = vld [vmem:[#allocation11 + $0x8f8] sm:$0xff]
    %v684 = vld [vmem:[#allocation11 + $0x900] sm:$0xff]
    %v685 = vld [vmem:[#allocation11 + $0x908] sm:$0xff]
    %v686 = vld [vmem:[#allocation11 + $0x910] sm:$0xff]
    %v687 = vld [vmem:[#allocation11 + $0x918] sm:$0xff]
    %v688 = vld [vmem:[#allocation11 + $0x920] sm:$0xff]
    %v689 = vld [vmem:[#allocation11 + $0x928] sm:$0xff]
    %v690 = vld [vmem:[#allocation11 + $0x930] sm:$0xff]
    %v691 = vld [vmem:[#allocation11 + $0x938] sm:$0xff]
    %v692 = vld [vmem:[#allocation11 + $0x940] sm:$0xff]
    %v693 = vld [vmem:[#allocation11 + $0x948] sm:$0xff]
    %v694 = vld [vmem:[#allocation11 + $0x950] sm:$0xff]
    %v695 = vld [vmem:[#allocation11 + $0x958] sm:$0xff]
    %v696 = vld [vmem:[#allocation11 + $0x960] sm:$0xff]
    %v697 = vld [vmem:[#allocation11 + $0x968] sm:$0xff]
    %v698 = vld [vmem:[#allocation11 + $0x970] sm:$0xff]
    %v699 = vld [vmem:[#allocation11 + $0x978] sm:$0xff]
    %v700 = vld [vmem:[#allocation11 + $0x980] sm:$0xff]
    %v701 = vld [vmem:[#allocation11 + $0x988] sm:$0xff]
    %v702 = vld [vmem:[#allocation11 + $0x990] sm:$0xff]
    %v703 = vld [vmem:[#allocation11 + $0x998] sm:$0xff]
    %v704 = vld [vmem:[#allocation11 + $0x9a0] sm:$0xff]
    %v705 = vld [vmem:[#allocation11 + $0x9a8] sm:$0xff]
    %v706 = vld [vmem:[#allocation11 + $0x9b0] sm:$0xff]
    %v707 = vld [vmem:[#allocation11 + $0x9b8] sm:$0xff]
    %v708 = vld [vmem:[#allocation11 + $0x9c0] sm:$0xff]
    %v709 = vld [vmem:[#allocation11 + $0x9c8] sm:$0xff]
    %v710 = vld [vmem:[#allocation11 + $0x9d0] sm:$0xff]
    %v711 = vld [vmem:[#allocation11 + $0x9d8] sm:$0xff]
    %v712 = vld [vmem:[#allocation11 + $0x9e0] sm:$0xff]
    %v713 = vld [vmem:[#allocation11 + $0x9e8] sm:$0xff]
    %v714 = vld [vmem:[#allocation11 + $0x9f0] sm:$0xff]
    %v715 = vld [vmem:[#allocation11 + $0x9f8] sm:$0xff]
    %v716 = vld [vmem:[#allocation11 + $0xa00] sm:$0xff]
    %v717 = vld [vmem:[#allocation11 + $0xa08] sm:$0xff]
    %v718 = vld [vmem:[#allocation11 + $0xa10] sm:$0xff]
    %v719 = vld [vmem:[#allocation11 + $0xa18] sm:$0xff]
    %v720 = vld [vmem:[#allocation11 + $0xa20] sm:$0xff]
    %v721 = vld [vmem:[#allocation11 + $0xa28] sm:$0xff]
    %v722 = vld [vmem:[#allocation11 + $0xa30] sm:$0xff]
    %v723 = vld [vmem:[#allocation11 + $0xa38] sm:$0xff]
    %v724 = vld [vmem:[#allocation11 + $0xa40] sm:$0xff]
    %v725 = vld [vmem:[#allocation11 + $0xa48] sm:$0xff]
    %v726 = vld [vmem:[#allocation11 + $0xa50] sm:$0xff]
    %v727 = vld [vmem:[#allocation11 + $0xa58] sm:$0xff]
    %v728 = vld [vmem:[#allocation11 + $0xa60] sm:$0xff]
    %v729 = vld [vmem:[#allocation11 + $0xa68] sm:$0xff]
    %v730 = vld [vmem:[#allocation11 + $0xa70] sm:$0xff]
    %v731 = vld [vmem:[#allocation11 + $0xa78] sm:$0xff]
    %v732 = vld [vmem:[#allocation11 + $0xa80] sm:$0xff]
    %v733 = vld [vmem:[#allocation11 + $0xa88] sm:$0xff]
    %v734 = vld [vmem:[#allocation11 + $0xa90] sm:$0xff]
    %v735 = vld [vmem:[#allocation11 + $0xa98] sm:$0xff]
    %v736 = vld [vmem:[#allocation11 + $0xaa0] sm:$0xff]
    %v737 = vld [vmem:[#allocation11 + $0xaa8] sm:$0xff]
    %v738 = vld [vmem:[#allocation11 + $0xab0] sm:$0xff]
    %v739 = vld [vmem:[#allocation11 + $0xab8] sm:$0xff]
    %v740 = vld [vmem:[#allocation11 + $0xac0] sm:$0xff]
    %v741 = vld [vmem:[#allocation11 + $0xac8] sm:$0xff]
    %v742 = vld [vmem:[#allocation11 + $0xad0] sm:$0xff]
    %v743 = vld [vmem:[#allocation11 + $0xad8] sm:$0xff]
    %v744 = vld [vmem:[#allocation11 + $0xae0] sm:$0xff]
    %v745 = vld [vmem:[#allocation11 + $0xae8] sm:$0xff]
    %v746 = vld [vmem:[#allocation11 + $0xaf0] sm:$0xff]
    %v747 = vld [vmem:[#allocation11 + $0xaf8] sm:$0xff]
    %v748 = vld [vmem:[#allocation11 + $0xb00] sm:$0xff]
    %v749 = vld [vmem:[#allocation11 + $0xb08] sm:$0xff]
    %v750 = vld [vmem:[#allocation11 + $0xb10] sm:$0xff]
    %v751 = vld [vmem:[#allocation11 + $0xb18] sm:$0xff]
    %v752 = vld [vmem:[#allocation11 + $0xb20] sm:$0xff]
    %v753 = vld [vmem:[#allocation11 + $0xb28] sm:$0xff]
    %v754 = vld [vmem:[#allocation11 + $0xb30] sm:$0xff]
    %v755 = vld [vmem:[#allocation11 + $0xb38] sm:$0xff]
    %v756 = vld [vmem:[#allocation11 + $0xb40] sm:$0xff]
    %v757 = vld [vmem:[#allocation11 + $0xb48] sm:$0xff]
    %v758 = vld [vmem:[#allocation11 + $0xb50] sm:$0xff]
    %v759 = vld [vmem:[#allocation11 + $0xb58] sm:$0xff]
    %v760 = vld [vmem:[#allocation11 + $0xb60] sm:$0xff]
    %v761 = vld [vmem:[#allocation11 + $0xb68] sm:$0xff]
    %v762 = vld [vmem:[#allocation11 + $0xb70] sm:$0xff]
    %v763 = vld [vmem:[#allocation11 + $0xb78] sm:$0xff]
    %v764 = vld [vmem:[#allocation11 + $0xb80] sm:$0xff]
    %v765 = vld [vmem:[#allocation11 + $0xb88] sm:$0xff]
    %v766 = vld [vmem:[#allocation11 + $0xb90] sm:$0xff]
    %v767 = vld [vmem:[#allocation11 + $0xb98] sm:$0xff]
    %v768 = vld [vmem:[#allocation11 + $0xba0] sm:$0xff]
    %v769 = vld [vmem:[#allocation11 + $0xba8] sm:$0xff]
    %v770 = vld [vmem:[#allocation11 + $0xbb0] sm:$0xff]
    %v771 = vld [vmem:[#allocation11 + $0xbb8] sm:$0xff]
    %v772 = vld [vmem:[#allocation11 + $0xbc0] sm:$0xff]
    %v773 = vld [vmem:[#allocation11 + $0xbc8] sm:$0xff]
    %v774 = vld [vmem:[#allocation11 + $0xbd0] sm:$0xff]
    %v775 = vld [vmem:[#allocation11 + $0xbd8] sm:$0xff]
    %v776 = vld [vmem:[#allocation11 + $0xbe0] sm:$0xff]
    %v777 = vld [vmem:[#allocation11 + $0xbe8] sm:$0xff]
    %v778 = vld [vmem:[#allocation11 + $0xbf0] sm:$0xff]
    %v779 = vld [vmem:[#allocation11 + $0xbf8] sm:$0xff]
    %v780 = vld [vmem:[#allocation13] sm:$0x3f]
    %v782 = vperm.slane %v780, 0
    %v783 = vperm.slane %v780, 1
    %v784 = vperm.slane %v780, 2
    %v785 = vperm.slane %v780, 3
    %v786 = vperm.slane %v780, 4
    %v787 = vperm.slane %v780, 5
    %794 = vmatpush.msra.mxu0 %v486
    %795 = vmatpush.msra.mxu0 %v480
    %796 = vmatpush.msra.mxu0 %v474
    %797 = vmatpush.msra.mxu0 %v468
    %798 = vmatpush.msra.mxu0 %v462
    %799 = vmatpush.msra.mxu0 %v456
    %800 = vmatpush.msra.mxu0 %v450
    %801 = vmatpush.msra.mxu0 %v444
    %802 = vmatpush.msra.mxu0 %v438
    %803 = vmatpush.msra.mxu0 %v432
    %804 = vmatpush.msra.mxu0 %v426
    %805 = vmatpush.msra.mxu0 %v420
    %806 = vmatpush.msra.mxu0 %v414
    %807 = vmatpush.msra.mxu0 %v408
    %808 = vmatpush.msra.mxu0 %v402
    %809 = vmatpush.msra.mxu0 %v396
    %810 = vmatmul.f32.gmra.mxu0 %v392
    %v811 = vpop.f32.mrf.mxu0
    %v812 = vadd.f32 %v782, %v811
    %813 = vdwg.mxu0
    %814 = vmatpush.msra.mxu0 %v582
    %815 = vmatpush.msra.mxu0 %v576
    %816 = vmatpush.msra.mxu0 %v570
    %817 = vmatpush.msra.mxu0 %v564
    %818 = vmatpush.msra.mxu0 %v558
    %819 = vmatpush.msra.mxu0 %v552
    %820 = vmatpush.msra.mxu0 %v546
    %821 = vmatpush.msra.mxu0 %v540
    %822 = vmatpush.msra.mxu0 %v534
    %823 = vmatpush.msra.mxu0 %v528
    %824 = vmatpush.msra.mxu0 %v522
    %825 = vmatpush.msra.mxu0 %v516
    %826 = vmatpush.msra.mxu0 %v510
    %827 = vmatpush.msra.mxu0 %v504
    %828 = vmatpush.msra.mxu0 %v498
    %829 = vmatpush.msra.mxu0 %v492
    %830 = vmatmul.f32.gmra.mxu0 %v393
    %v831 = vpop.f32.mrf.mxu0
    %v832 = vadd.f32 %v812, %v831
    %833 = vdwg.mxu0
    %834 = vmatpush.msra.mxu0 %v678
    %835 = vmatpush.msra.mxu0 %v672
    %836 = vmatpush.msra.mxu0 %v666
    %837 = vmatpush.msra.mxu0 %v660
    %838 = vmatpush.msra.mxu0 %v654
    %839 = vmatpush.msra.mxu0 %v648
    %840 = vmatpush.msra.mxu0 %v642
    %841 = vmatpush.msra.mxu0 %v636
    %842 = vmatpush.msra.mxu0 %v630
    %843 = vmatpush.msra.mxu0 %v624
    %844 = vmatpush.msra.mxu0 %v618
    %845 = vmatpush.msra.mxu0 %v612
    %846 = vmatpush.msra.mxu0 %v606
    %847 = vmatpush.msra.mxu0 %v600
    %848 = vmatpush.msra.mxu0 %v594
    %849 = vmatpush.msra.mxu0 %v588
    %850 = vmatmul.f32.gmra.mxu0 %v394
    %v851 = vpop.f32.mrf.mxu0
    %v852 = vadd.f32 %v832, %v851
    %853 = vdwg.mxu0
    %854 = vmatpush.msra.mxu0 %v774
    %855 = vmatpush.msra.mxu0 %v768
    %856 = vmatpush.msra.mxu0 %v762
    %857 = vmatpush.msra.mxu0 %v756
    %858 = vmatpush.msra.mxu0 %v750
    %859 = vmatpush.msra.mxu0 %v744
    %860 = vmatpush.msra.mxu0 %v738
    %861 = vmatpush.msra.mxu0 %v732
    %862 = vmatpush.msra.mxu0 %v726
    %863 = vmatpush.msra.mxu0 %v720
    %864 = vmatpush.msra.mxu0 %v714
    %865 = vmatpush.msra.mxu0 %v708
    %866 = vmatpush.msra.mxu0 %v702
    %867 = vmatpush.msra.mxu0 %v696
    %868 = vmatpush.msra.mxu0 %v690
    %869 = vmatpush.msra.mxu0 %v684
    %870 = vmatmul.f32.gmra.mxu0 %v395
    %v871 = vpop.f32.mrf.mxu0
    %v872 = vadd.f32 %v852, %v871
    %873 = vdwg.mxu0
    %874 = vmatpush.msra.mxu0 %v487
    %875 = vmatpush.msra.mxu0 %v481
    %876 = vmatpush.msra.mxu0 %v475
    %877 = vmatpush.msra.mxu0 %v469
    %878 = vmatpush.msra.mxu0 %v463
    %879 = vmatpush.msra.mxu0 %v457
    %880 = vmatpush.msra.mxu0 %v451
    %881 = vmatpush.msra.mxu0 %v445
    %882 = vmatpush.msra.mxu0 %v439
    %883 = vmatpush.msra.mxu0 %v433
    %884 = vmatpush.msra.mxu0 %v427
    %885 = vmatpush.msra.mxu0 %v421
    %886 = vmatpush.msra.mxu0 %v415
    %887 = vmatpush.msra.mxu0 %v409
    %888 = vmatpush.msra.mxu0 %v403
    %889 = vmatpush.msra.mxu0 %v397
    %890 = vmatmul.f32.gmra.mxu0 %v392
    %v891 = vpop.f32.mrf.mxu0
    %v892 = vadd.f32 %v783, %v891
    %893 = vdwg.mxu0
    %894 = vmatpush.msra.mxu0 %v583
    %895 = vmatpush.msra.mxu0 %v577
    %896 = vmatpush.msra.mxu0 %v571
    %897 = vmatpush.msra.mxu0 %v565
    %898 = vmatpush.msra.mxu0 %v559
    %899 = vmatpush.msra.mxu0 %v553
    %900 = vmatpush.msra.mxu0 %v547
    %901 = vmatpush.msra.mxu0 %v541
    %902 = vmatpush.msra.mxu0 %v535
    %903 = vmatpush.msra.mxu0 %v529
    %904 = vmatpush.msra.mxu0 %v523
    %905 = vmatpush.msra.mxu0 %v517
    %906 = vmatpush.msra.mxu0 %v511
    %907 = vmatpush.msra.mxu0 %v505
    %908 = vmatpush.msra.mxu0 %v499
    %909 = vmatpush.msra.mxu0 %v493
    %910 = vmatmul.f32.gmra.mxu0 %v393
    %v911 = vpop.f32.mrf.mxu0
    %v912 = vadd.f32 %v892, %v911
    %913 = vdwg.mxu0
    %914 = vmatpush.msra.mxu0 %v679
    %915 = vmatpush.msra.mxu0 %v673
    %916 = vmatpush.msra.mxu0 %v667
    %917 = vmatpush.msra.mxu0 %v661
    %918 = vmatpush.msra.mxu0 %v655
    %919 = vmatpush.msra.mxu0 %v649
    %920 = vmatpush.msra.mxu0 %v643
    %921 = vmatpush.msra.mxu0 %v637
    %922 = vmatpush.msra.mxu0 %v631
    %923 = vmatpush.msra.mxu0 %v625
    %924 = vmatpush.msra.mxu0 %v619
    %925 = vmatpush.msra.mxu0 %v613
    %926 = vmatpush.msra.mxu0 %v607
    %927 = vmatpush.msra.mxu0 %v601
    %928 = vmatpush.msra.mxu0 %v595
    %929 = vmatpush.msra.mxu0 %v589
    %930 = vmatmul.f32.gmra.mxu0 %v394
    %v931 = vpop.f32.mrf.mxu0
    %v932 = vadd.f32 %v912, %v931
    %933 = vdwg.mxu0
    %934 = vmatpush.msra.mxu0 %v775
    %935 = vmatpush.msra.mxu0 %v769
    %936 = vmatpush.msra.mxu0 %v763
    %937 = vmatpush.msra.mxu0 %v757
    %938 = vmatpush.msra.mxu0 %v751
    %939 = vmatpush.msra.mxu0 %v745
    %940 = vmatpush.msra.mxu0 %v739
    %941 = vmatpush.msra.mxu0 %v733
    %942 = vmatpush.msra.mxu0 %v727
    %943 = vmatpush.msra.mxu0 %v721
    %944 = vmatpush.msra.mxu0 %v715
    %945 = vmatpush.msra.mxu0 %v709
    %946 = vmatpush.msra.mxu0 %v703
    %947 = vmatpush.msra.mxu0 %v697
    %948 = vmatpush.msra.mxu0 %v691
    %949 = vmatpush.msra.mxu0 %v685
    %950 = vmatmul.f32.gmra.mxu0 %v395
    %v951 = vpop.f32.mrf.mxu0
    %v952 = vadd.f32 %v932, %v951
    %953 = vdwg.mxu0
    %954 = vmatpush.msra.mxu0 %v488
    %955 = vmatpush.msra.mxu0 %v482
    %956 = vmatpush.msra.mxu0 %v476
    %957 = vmatpush.msra.mxu0 %v470
    %958 = vmatpush.msra.mxu0 %v464
    %959 = vmatpush.msra.mxu0 %v458
    %960 = vmatpush.msra.mxu0 %v452
    %961 = vmatpush.msra.mxu0 %v446
    %962 = vmatpush.msra.mxu0 %v440
    %963 = vmatpush.msra.mxu0 %v434
    %964 = vmatpush.msra.mxu0 %v428
    %965 = vmatpush.msra.mxu0 %v422
    %966 = vmatpush.msra.mxu0 %v416
    %967 = vmatpush.msra.mxu0 %v410
    %968 = vmatpush.msra.mxu0 %v404
    %969 = vmatpush.msra.mxu0 %v398
    %970 = vmatmul.f32.gmra.mxu0 %v392
    %v971 = vpop.f32.mrf.mxu0
    %v972 = vadd.f32 %v784, %v971
    %973 = vdwg.mxu0
    %974 = vmatpush.msra.mxu0 %v584
    %975 = vmatpush.msra.mxu0 %v578
    %976 = vmatpush.msra.mxu0 %v572
    %977 = vmatpush.msra.mxu0 %v566
    %978 = vmatpush.msra.mxu0 %v560
    %979 = vmatpush.msra.mxu0 %v554
    %980 = vmatpush.msra.mxu0 %v548
    %981 = vmatpush.msra.mxu0 %v542
    %982 = vmatpush.msra.mxu0 %v536
    %983 = vmatpush.msra.mxu0 %v530
    %984 = vmatpush.msra.mxu0 %v524
    %985 = vmatpush.msra.mxu0 %v518
    %986 = vmatpush.msra.mxu0 %v512
    %987 = vmatpush.msra.mxu0 %v506
    %988 = vmatpush.msra.mxu0 %v500
    %989 = vmatpush.msra.mxu0 %v494
    %990 = vmatmul.f32.gmra.mxu0 %v393
    %v991 = vpop.f32.mrf.mxu0
    %v992 = vadd.f32 %v972, %v991
    %993 = vdwg.mxu0
    %994 = vmatpush.msra.mxu0 %v680
    %995 = vmatpush.msra.mxu0 %v674
    %996 = vmatpush.msra.mxu0 %v668
    %997 = vmatpush.msra.mxu0 %v662
    %998 = vmatpush.msra.mxu0 %v656
    %999 = vmatpush.msra.mxu0 %v650
    %1000 = vmatpush.msra.mxu0 %v644
    %1001 = vmatpush.msra.mxu0 %v638
    %1002 = vmatpush.msra.mxu0 %v632
    %1003 = vmatpush.msra.mxu0 %v626
    %1004 = vmatpush.msra.mxu0 %v620
    %1005 = vmatpush.msra.mxu0 %v614
    %1006 = vmatpush.msra.mxu0 %v608
    %1007 = vmatpush.msra.mxu0 %v602
    %1008 = vmatpush.msra.mxu0 %v596
    %1009 = vmatpush.msra.mxu0 %v590
    %1010 = vmatmul.f32.gmra.mxu0 %v394
    %v1011 = vpop.f32.mrf.mxu0
    %v1012 = vadd.f32 %v992, %v1011
    %1013 = vdwg.mxu0
    %1014 = vmatpush.msra.mxu0 %v776
    %1015 = vmatpush.msra.mxu0 %v770
    %1016 = vmatpush.msra.mxu0 %v764
    %1017 = vmatpush.msra.mxu0 %v758
    %1018 = vmatpush.msra.mxu0 %v752
    %1019 = vmatpush.msra.mxu0 %v746
    %1020 = vmatpush.msra.mxu0 %v740
    %1021 = vmatpush.msra.mxu0 %v734
    %1022 = vmatpush.msra.mxu0 %v728
    %1023 = vmatpush.msra.mxu0 %v722
    %1024 = vmatpush.msra.mxu0 %v716
    %1025 = vmatpush.msra.mxu0 %v710
    %1026 = vmatpush.msra.mxu0 %v704
    %1027 = vmatpush.msra.mxu0 %v698
    %1028 = vmatpush.msra.mxu0 %v692
    %1029 = vmatpush.msra.mxu0 %v686
    %1030 = vmatmul.f32.gmra.mxu0 %v395
    %v1031 = vpop.f32.mrf.mxu0
    %v1032 = vadd.f32 %v1012, %v1031
    %1033 = vdwg.mxu0
    %1034 = vmatpush.msra.mxu0 %v489
    %1035 = vmatpush.msra.mxu0 %v483
    %1036 = vmatpush.msra.mxu0 %v477
    %1037 = vmatpush.msra.mxu0 %v471
    %1038 = vmatpush.msra.mxu0 %v465
    %1039 = vmatpush.msra.mxu0 %v459
    %1040 = vmatpush.msra.mxu0 %v453
    %1041 = vmatpush.msra.mxu0 %v447
    %1042 = vmatpush.msra.mxu0 %v441
    %1043 = vmatpush.msra.mxu0 %v435
    %1044 = vmatpush.msra.mxu0 %v429
    %1045 = vmatpush.msra.mxu0 %v423
    %1046 = vmatpush.msra.mxu0 %v417
    %1047 = vmatpush.msra.mxu0 %v411
    %1048 = vmatpush.msra.mxu0 %v405
    %1049 = vmatpush.msra.mxu0 %v399
    %1050 = vmatmul.f32.gmra.mxu0 %v392
    %v1051 = vpop.f32.mrf.mxu0
    %v1052 = vadd.f32 %v785, %v1051
    %1053 = vdwg.mxu0
    %1054 = vmatpush.msra.mxu0 %v585
    %1055 = vmatpush.msra.mxu0 %v579
    %1056 = vmatpush.msra.mxu0 %v573
    %1057 = vmatpush.msra.mxu0 %v567
    %1058 = vmatpush.msra.mxu0 %v561
    %1059 = vmatpush.msra.mxu0 %v555
    %1060 = vmatpush.msra.mxu0 %v549
    %1061 = vmatpush.msra.mxu0 %v543
    %1062 = vmatpush.msra.mxu0 %v537
    %1063 = vmatpush.msra.mxu0 %v531
    %1064 = vmatpush.msra.mxu0 %v525
    %1065 = vmatpush.msra.mxu0 %v519
    %1066 = vmatpush.msra.mxu0 %v513
    %1067 = vmatpush.msra.mxu0 %v507
    %1068 = vmatpush.msra.mxu0 %v501
    %1069 = vmatpush.msra.mxu0 %v495
    %1070 = vmatmul.f32.gmra.mxu0 %v393
    %v1071 = vpop.f32.mrf.mxu0
    %v1072 = vadd.f32 %v1052, %v1071
    %1073 = vdwg.mxu0
    %1074 = vmatpush.msra.mxu0 %v681
    %1075 = vmatpush.msra.mxu0 %v675
    %1076 = vmatpush.msra.mxu0 %v669
    %1077 = vmatpush.msra.mxu0 %v663
    %1078 = vmatpush.msra.mxu0 %v657
    %1079 = vmatpush.msra.mxu0 %v651
    %1080 = vmatpush.msra.mxu0 %v645
    %1081 = vmatpush.msra.mxu0 %v639
    %1082 = vmatpush.msra.mxu0 %v633
    %1083 = vmatpush.msra.mxu0 %v627
    %1084 = vmatpush.msra.mxu0 %v621
    %1085 = vmatpush.msra.mxu0 %v615
    %1086 = vmatpush.msra.mxu0 %v609
    %1087 = vmatpush.msra.mxu0 %v603
    %1088 = vmatpush.msra.mxu0 %v597
    %1089 = vmatpush.msra.mxu0 %v591
    %1090 = vmatmul.f32.gmra.mxu0 %v394
    %v1091 = vpop.f32.mrf.mxu0
    %v1092 = vadd.f32 %v1072, %v1091
    %1093 = vdwg.mxu0
    %1094 = vmatpush.msra.mxu0 %v777
    %1095 = vmatpush.msra.mxu0 %v771
    %1096 = vmatpush.msra.mxu0 %v765
    %1097 = vmatpush.msra.mxu0 %v759
    %1098 = vmatpush.msra.mxu0 %v753
    %1099 = vmatpush.msra.mxu0 %v747
    %1100 = vmatpush.msra.mxu0 %v741
    %1101 = vmatpush.msra.mxu0 %v735
    %1102 = vmatpush.msra.mxu0 %v729
    %1103 = vmatpush.msra.mxu0 %v723
    %1104 = vmatpush.msra.mxu0 %v717
    %1105 = vmatpush.msra.mxu0 %v711
    %1106 = vmatpush.msra.mxu0 %v705
    %1107 = vmatpush.msra.mxu0 %v699
    %1108 = vmatpush.msra.mxu0 %v693
    %1109 = vmatpush.msra.mxu0 %v687
    %1110 = vmatmul.f32.gmra.mxu0 %v395
    %v1111 = vpop.f32.mrf.mxu0
    %v1112 = vadd.f32 %v1092, %v1111
    %1113 = vdwg.mxu0
    %1114 = vmatpush.msra.mxu0 %v490
    %1115 = vmatpush.msra.mxu0 %v484
    %1116 = vmatpush.msra.mxu0 %v478
    %1117 = vmatpush.msra.mxu0 %v472
    %1118 = vmatpush.msra.mxu0 %v466
    %1119 = vmatpush.msra.mxu0 %v460
    %1120 = vmatpush.msra.mxu0 %v454
    %1121 = vmatpush.msra.mxu0 %v448
    %1122 = vmatpush.msra.mxu0 %v442
    %1123 = vmatpush.msra.mxu0 %v436
    %1124 = vmatpush.msra.mxu0 %v430
    %1125 = vmatpush.msra.mxu0 %v424
    %1126 = vmatpush.msra.mxu0 %v418
    %1127 = vmatpush.msra.mxu0 %v412
    %1128 = vmatpush.msra.mxu0 %v406
    %1129 = vmatpush.msra.mxu0 %v400
    %1130 = vmatmul.f32.gmra.mxu0 %v392
    %v1131 = vpop.f32.mrf.mxu0
    %v1132 = vadd.f32 %v786, %v1131
    %1133 = vdwg.mxu0
    %1134 = vmatpush.msra.mxu0 %v586
    %1135 = vmatpush.msra.mxu0 %v580
    %1136 = vmatpush.msra.mxu0 %v574
    %1137 = vmatpush.msra.mxu0 %v568
    %1138 = vmatpush.msra.mxu0 %v562
    %1139 = vmatpush.msra.mxu0 %v556
    %1140 = vmatpush.msra.mxu0 %v550
    %1141 = vmatpush.msra.mxu0 %v544
    %1142 = vmatpush.msra.mxu0 %v538
    %1143 = vmatpush.msra.mxu0 %v532
    %1144 = vmatpush.msra.mxu0 %v526
    %1145 = vmatpush.msra.mxu0 %v520
    %1146 = vmatpush.msra.mxu0 %v514
    %1147 = vmatpush.msra.mxu0 %v508
    %1148 = vmatpush.msra.mxu0 %v502
    %1149 = vmatpush.msra.mxu0 %v496
    %1150 = vmatmul.f32.gmra.mxu0 %v393
    %v1151 = vpop.f32.mrf.mxu0
    %v1152 = vadd.f32 %v1132, %v1151
    %1153 = vdwg.mxu0
    %1154 = vmatpush.msra.mxu0 %v682
    %1155 = vmatpush.msra.mxu0 %v676
    %1156 = vmatpush.msra.mxu0 %v670
    %1157 = vmatpush.msra.mxu0 %v664
    %1158 = vmatpush.msra.mxu0 %v658
    %1159 = vmatpush.msra.mxu0 %v652
    %1160 = vmatpush.msra.mxu0 %v646
    %1161 = vmatpush.msra.mxu0 %v640
    %1162 = vmatpush.msra.mxu0 %v634
    %1163 = vmatpush.msra.mxu0 %v628
    %1164 = vmatpush.msra.mxu0 %v622
    %1165 = vmatpush.msra.mxu0 %v616
    %1166 = vmatpush.msra.mxu0 %v610
    %1167 = vmatpush.msra.mxu0 %v604
    %1168 = vmatpush.msra.mxu0 %v598
    %1169 = vmatpush.msra.mxu0 %v592
    %1170 = vmatmul.f32.gmra.mxu0 %v394
    %v1171 = vpop.f32.mrf.mxu0
    %v1172 = vadd.f32 %v1152, %v1171
    %1173 = vdwg.mxu0
    %1174 = vmatpush.msra.mxu0 %v778
    %1175 = vmatpush.msra.mxu0 %v772
    %1176 = vmatpush.msra.mxu0 %v766
    %1177 = vmatpush.msra.mxu0 %v760
    %1178 = vmatpush.msra.mxu0 %v754
    %1179 = vmatpush.msra.mxu0 %v748
    %1180 = vmatpush.msra.mxu0 %v742
    %1181 = vmatpush.msra.mxu0 %v736
    %1182 = vmatpush.msra.mxu0 %v730
    %1183 = vmatpush.msra.mxu0 %v724
    %1184 = vmatpush.msra.mxu0 %v718
    %1185 = vmatpush.msra.mxu0 %v712
    %1186 = vmatpush.msra.mxu0 %v706
    %1187 = vmatpush.msra.mxu0 %v700
    %1188 = vmatpush.msra.mxu0 %v694
    %1189 = vmatpush.msra.mxu0 %v688
    %1190 = vmatmul.f32.gmra.mxu0 %v395
    %v1191 = vpop.f32.mrf.mxu0
    %v1192 = vadd.f32 %v1172, %v1191
    %1193 = vdwg.mxu0
    %1194 = vmatpush.msra.mxu0 %v491
    %1195 = vmatpush.msra.mxu0 %v485
    %1196 = vmatpush.msra.mxu0 %v479
    %1197 = vmatpush.msra.mxu0 %v473
    %1198 = vmatpush.msra.mxu0 %v467
    %1199 = vmatpush.msra.mxu0 %v461
    %1200 = vmatpush.msra.mxu0 %v455
    %1201 = vmatpush.msra.mxu0 %v449
    %1202 = vmatpush.msra.mxu0 %v443
    %1203 = vmatpush.msra.mxu0 %v437
    %1204 = vmatpush.msra.mxu0 %v431
    %1205 = vmatpush.msra.mxu0 %v425
    %1206 = vmatpush.msra.mxu0 %v419
    %1207 = vmatpush.msra.mxu0 %v413
    %1208 = vmatpush.msra.mxu0 %v407
    %1209 = vmatpush.msra.mxu0 %v401
    %1210 = vmatmul.f32.gmra.mxu0 %v392
    %v1211 = vpop.f32.mrf.mxu0
    %v1212 = vadd.f32 %v787, %v1211
    %1213 = vdwg.mxu0
    %1214 = vmatpush.msra.mxu0 %v587
    %1215 = vmatpush.msra.mxu0 %v581
    %1216 = vmatpush.msra.mxu0 %v575
    %1217 = vmatpush.msra.mxu0 %v569
    %1218 = vmatpush.msra.mxu0 %v563
    %1219 = vmatpush.msra.mxu0 %v557
    %1220 = vmatpush.msra.mxu0 %v551
    %1221 = vmatpush.msra.mxu0 %v545
    %1222 = vmatpush.msra.mxu0 %v539
    %1223 = vmatpush.msra.mxu0 %v533
    %1224 = vmatpush.msra.mxu0 %v527
    %1225 = vmatpush.msra.mxu0 %v521
    %1226 = vmatpush.msra.mxu0 %v515
    %1227 = vmatpush.msra.mxu0 %v509
    %1228 = vmatpush.msra.mxu0 %v503
    %1229 = vmatpush.msra.mxu0 %v497
    %1230 = vmatmul.f32.gmra.mxu0 %v393
    %v1231 = vpop.f32.mrf.mxu0
    %v1232 = vadd.f32 %v1212, %v1231
    %1233 = vdwg.mxu0
    %1234 = vmatpush.msra.mxu0 %v683
    %1235 = vmatpush.msra.mxu0 %v677
    %1236 = vmatpush.msra.mxu0 %v671
    %1237 = vmatpush.msra.mxu0 %v665
    %1238 = vmatpush.msra.mxu0 %v659
    %1239 = vmatpush.msra.mxu0 %v653
    %1240 = vmatpush.msra.mxu0 %v647
    %1241 = vmatpush.msra.mxu0 %v641
    %1242 = vmatpush.msra.mxu0 %v635
    %1243 = vmatpush.msra.mxu0 %v629
    %1244 = vmatpush.msra.mxu0 %v623
    %1245 = vmatpush.msra.mxu0 %v617
    %1246 = vmatpush.msra.mxu0 %v611
    %1247 = vmatpush.msra.mxu0 %v605
    %1248 = vmatpush.msra.mxu0 %v599
    %1249 = vmatpush.msra.mxu0 %v593
    %1250 = vmatmul.f32.gmra.mxu0 %v394
    %v1251 = vpop.f32.mrf.mxu0
    %v1252 = vadd.f32 %v1232, %v1251
    %1253 = vdwg.mxu0
    %1254 = vmatpush.msra.mxu0 %v779
    %1255 = vmatpush.msra.mxu0 %v773
    %1256 = vmatpush.msra.mxu0 %v767
    %1257 = vmatpush.msra.mxu0 %v761
    %1258 = vmatpush.msra.mxu0 %v755
    %1259 = vmatpush.msra.mxu0 %v749
    %1260 = vmatpush.msra.mxu0 %v743
    %1261 = vmatpush.msra.mxu0 %v737
    %1262 = vmatpush.msra.mxu0 %v731
    %1263 = vmatpush.msra.mxu0 %v725
    %1264 = vmatpush.msra.mxu0 %v719
    %1265 = vmatpush.msra.mxu0 %v713
    %1266 = vmatpush.msra.mxu0 %v707
    %1267 = vmatpush.msra.mxu0 %v701
    %1268 = vmatpush.msra.mxu0 %v695
    %1269 = vmatpush.msra.mxu0 %v689
    %1270 = vmatmul.f32.gmra.mxu0 %v395
    %v1271 = vpop.f32.mrf.mxu0
    %v1272 = vadd.f32 %v1252, %v1271
    %1273 = vdwg.mxu0
    %v1274 = vmax.f32 %v872, 0.0
    %v1275 = vmax.f32 %v952, 0.0
    %v1276 = vmax.f32 %v1032, 0.0
    %v1277 = vmax.f32 %v1112, 0.0
    %v1278 = vmax.f32 %v1192, 0.0
    %v1279 = vmax.f32 %v1272, 0.0
    %v1280 = vld [vmem:[#allocation5] sm:$0xf]
    %v1287 = vrot.slane %v1274, 4
    %v1288 = vrot.slane %v1275, 4
    %v1289 = vrot.slane %v1276, 4
    %v1290 = vrot.slane %v1277, 4
    %v1291 = vrot.slane %v1278, 4
    %v1292 = vrot.slane %v1279, 4
    %v1299 = vld [vmem:[%s8] sm:$0xff]
    %v1300 = vld [vmem:[%s8 + $0x8] sm:$0xff]
    %v1301 = vld [vmem:[%s8 + $0x10] sm:$0xff]
    %v1302 = vld [vmem:[%s8 + $0x18] sm:$0xff]
    %v1303 = vld [vmem:[%s8 + $0x20] sm:$0xff]
    %v1304 = vld [vmem:[%s8 + $0x28] sm:$0xff]
    %v1305 = vld [vmem:[%s8 + $0x30] sm:$0xff]
    %v1306 = vld [vmem:[%s8 + $0x38] sm:$0xff]
    %v1307 = vld [vmem:[%s8 + $0x40] sm:$0xff]
    %v1308 = vld [vmem:[%s8 + $0x48] sm:$0xff]
    %v1309 = vld [vmem:[%s8 + $0x50] sm:$0xff]
    %v1310 = vld [vmem:[%s8 + $0x58] sm:$0xff]
    %v1311 = vld [vmem:[%s8 + $0x60] sm:$0xff]
    %v1312 = vld [vmem:[%s8 + $0x68] sm:$0xff]
    %v1313 = vld [vmem:[%s8 + $0x70] sm:$0xff]
    %v1314 = vld [vmem:[%s8 + $0x78] sm:$0xff]
    %v1315 = vld [vmem:[%s8 + $0x80] sm:$0xff]
    %v1316 = vld [vmem:[%s8 + $0x88] sm:$0xff]
    %v1317 = vld [vmem:[%s8 + $0x90] sm:$0xff]
    %v1318 = vld [vmem:[%s8 + $0x98] sm:$0xff]
    %v1319 = vld [vmem:[%s8 + $0xa0] sm:$0xff]
    %v1320 = vld [vmem:[%s8 + $0xa8] sm:$0xff]
    %v1321 = vld [vmem:[%s8 + $0xb0] sm:$0xff]
    %v1322 = vld [vmem:[%s8 + $0xb8] sm:$0xff]
    %v1323 = vld [vmem:[%s8 + $0xc0] sm:$0xff]
    %v1324 = vld [vmem:[%s8 + $0xc8] sm:$0xff]
    %v1325 = vld [vmem:[%s8 + $0xd0] sm:$0xff]
    %v1326 = vld [vmem:[%s8 + $0xd8] sm:$0xff]
    %v1327 = vld [vmem:[%s8 + $0xe0] sm:$0xff]
    %v1328 = vld [vmem:[%s8 + $0xe8] sm:$0xff]
    %v1329 = vld [vmem:[%s8 + $0xf0] sm:$0xff]
    %v1330 = vld [vmem:[%s8 + $0xf8] sm:$0xff]
    %v1331 = vld [vmem:[%s8 + $0x100] sm:$0xff]
    %v1332 = vld [vmem:[%s8 + $0x108] sm:$0xff]
    %v1333 = vld [vmem:[%s8 + $0x110] sm:$0xff]
    %v1334 = vld [vmem:[%s8 + $0x118] sm:$0xff]
    %v1335 = vld [vmem:[%s8 + $0x120] sm:$0xff]
    %v1336 = vld [vmem:[%s8 + $0x128] sm:$0xff]
    %v1337 = vld [vmem:[%s8 + $0x130] sm:$0xff]
    %v1338 = vld [vmem:[%s8 + $0x138] sm:$0xff]
    %v1339 = vld [vmem:[%s8 + $0x140] sm:$0xff]
    %v1340 = vld [vmem:[%s8 + $0x148] sm:$0xff]
    %v1341 = vld [vmem:[%s8 + $0x150] sm:$0xff]
    %v1342 = vld [vmem:[%s8 + $0x158] sm:$0xff]
    %v1343 = vld [vmem:[%s8 + $0x160] sm:$0xff]
    %v1344 = vld [vmem:[%s8 + $0x168] sm:$0xff]
    %v1345 = vld [vmem:[%s8 + $0x170] sm:$0xff]
    %v1346 = vld [vmem:[%s8 + $0x178] sm:$0xff]
    %v1347 = vld [vmem:[%s8 + $0x180] sm:$0xff]
    %v1348 = vld [vmem:[%s8 + $0x188] sm:$0xff]
    %v1349 = vld [vmem:[%s8 + $0x190] sm:$0xff]
    %v1350 = vld [vmem:[%s8 + $0x198] sm:$0xff]
    %v1351 = vld [vmem:[%s8 + $0x1a0] sm:$0xff]
    %v1352 = vld [vmem:[%s8 + $0x1a8] sm:$0xff]
    %v1353 = vld [vmem:[%s8 + $0x1b0] sm:$0xff]
    %v1354 = vld [vmem:[%s8 + $0x1b8] sm:$0xff]
    %v1355 = vld [vmem:[%s8 + $0x1c0] sm:$0xff]
    %v1356 = vld [vmem:[%s8 + $0x1c8] sm:$0xff]
    %v1357 = vld [vmem:[%s8 + $0x1d0] sm:$0xff]
    %v1358 = vld [vmem:[%s8 + $0x1d8] sm:$0xff]
    %v1359 = vld [vmem:[%s8 + $0x1e0] sm:$0xff]
    %v1360 = vld [vmem:[%s8 + $0x1e8] sm:$0xff]
    %v1361 = vld [vmem:[%s8 + $0x1f0] sm:$0xff]
    %v1362 = vld [vmem:[%s8 + $0x1f8] sm:$0xff]
    %v1363 = vld [vmem:[%s8 + $0x200] sm:$0xff]
    %v1364 = vld [vmem:[%s8 + $0x208] sm:$0xff]
    %v1365 = vld [vmem:[%s8 + $0x210] sm:$0xff]
    %v1366 = vld [vmem:[%s8 + $0x218] sm:$0xff]
    %v1367 = vld [vmem:[%s8 + $0x220] sm:$0xff]
    %v1368 = vld [vmem:[%s8 + $0x228] sm:$0xff]
    %v1369 = vld [vmem:[%s8 + $0x230] sm:$0xff]
    %v1370 = vld [vmem:[%s8 + $0x238] sm:$0xff]
    %v1371 = vld [vmem:[%s8 + $0x240] sm:$0xff]
    %v1372 = vld [vmem:[%s8 + $0x248] sm:$0xff]
    %v1373 = vld [vmem:[%s8 + $0x250] sm:$0xff]
    %v1374 = vld [vmem:[%s8 + $0x258] sm:$0xff]
    %v1375 = vld [vmem:[%s8 + $0x260] sm:$0xff]
    %v1376 = vld [vmem:[%s8 + $0x268] sm:$0xff]
    %v1377 = vld [vmem:[%s8 + $0x270] sm:$0xff]
    %v1378 = vld [vmem:[%s8 + $0x278] sm:$0xff]
    %v1379 = vld [vmem:[%s8 + $0x280] sm:$0xff]
    %v1380 = vld [vmem:[%s8 + $0x288] sm:$0xff]
    %v1381 = vld [vmem:[%s8 + $0x290] sm:$0xff]
    %v1382 = vld [vmem:[%s8 + $0x298] sm:$0xff]
    %v1383 = vld [vmem:[%s8 + $0x2a0] sm:$0xff]
    %v1384 = vld [vmem:[%s8 + $0x2a8] sm:$0xff]
    %v1385 = vld [vmem:[%s8 + $0x2b0] sm:$0xff]
    %v1386 = vld [vmem:[%s8 + $0x2b8] sm:$0xff]
    %v1387 = vld [vmem:[%s8 + $0x2c0] sm:$0xff]
    %v1388 = vld [vmem:[%s8 + $0x2c8] sm:$0xff]
    %v1389 = vld [vmem:[%s8 + $0x2d0] sm:$0xff]
    %v1390 = vld [vmem:[%s8 + $0x2d8] sm:$0xff]
    %v1391 = vld [vmem:[%s8 + $0x2e0] sm:$0xff]
    %v1392 = vld [vmem:[%s8 + $0x2e8] sm:$0xff]
    %v1393 = vld [vmem:[%s8 + $0x2f0] sm:$0xff]
    %v1394 = vld [vmem:[%s8 + $0x2f8] sm:$0xff]
    %v1395 = vld [vmem:[%s8 + $0x300] sm:$0xff]
    %v1396 = vld [vmem:[%s8 + $0x308] sm:$0xff]
    %v1397 = vld [vmem:[%s8 + $0x310] sm:$0xff]
    %v1398 = vld [vmem:[%s8 + $0x318] sm:$0xff]
    %v1399 = vld [vmem:[%s8 + $0x320] sm:$0xff]
    %v1400 = vld [vmem:[%s8 + $0x328] sm:$0xff]
    %v1401 = vld [vmem:[%s8 + $0x330] sm:$0xff]
    %v1402 = vld [vmem:[%s8 + $0x338] sm:$0xff]
    %v1403 = vld [vmem:[%s8 + $0x340] sm:$0xff]
    %v1404 = vld [vmem:[%s8 + $0x348] sm:$0xff]
    %v1405 = vld [vmem:[%s8 + $0x350] sm:$0xff]
    %v1406 = vld [vmem:[%s8 + $0x358] sm:$0xff]
    %v1407 = vld [vmem:[%s8 + $0x360] sm:$0xff]
    %v1408 = vld [vmem:[%s8 + $0x368] sm:$0xff]
    %v1409 = vld [vmem:[%s8 + $0x370] sm:$0xff]
    %v1410 = vld [vmem:[%s8 + $0x378] sm:$0xff]
    %v1411 = vld [vmem:[%s8 + $0x380] sm:$0xff]
    %v1412 = vld [vmem:[%s8 + $0x388] sm:$0xff]
    %v1413 = vld [vmem:[%s8 + $0x390] sm:$0xff]
    %v1414 = vld [vmem:[%s8 + $0x398] sm:$0xff]
    %v1415 = vld [vmem:[%s8 + $0x3a0] sm:$0xff]
    %v1416 = vld [vmem:[%s8 + $0x3a8] sm:$0xff]
    %v1417 = vld [vmem:[%s8 + $0x3b0] sm:$0xff]
    %v1418 = vld [vmem:[%s8 + $0x3b8] sm:$0xff]
    %v1419 = vld [vmem:[%s8 + $0x3c0] sm:$0xff]
    %v1420 = vld [vmem:[%s8 + $0x3c8] sm:$0xff]
    %v1421 = vld [vmem:[%s8 + $0x3d0] sm:$0xff]
    %v1422 = vld [vmem:[%s8 + $0x3d8] sm:$0xff]
    %v1423 = vld [vmem:[%s8 + $0x3e0] sm:$0xff]
    %v1424 = vld [vmem:[%s8 + $0x3e8] sm:$0xff]
    %v1425 = vld [vmem:[%s8 + $0x3f0] sm:$0xff]
    %v1426 = vld [vmem:[%s8 + $0x3f8] sm:$0xff]
    %v1427 = vld [vmem:[%s8 + $0x400] sm:$0xff]
    %v1428 = vld [vmem:[%s8 + $0x408] sm:$0xff]
    %v1429 = vld [vmem:[%s8 + $0x410] sm:$0xff]
    %v1430 = vld [vmem:[%s8 + $0x418] sm:$0xff]
    %v1431 = vld [vmem:[%s8 + $0x420] sm:$0xff]
    %v1432 = vld [vmem:[%s8 + $0x428] sm:$0xff]
    %v1433 = vld [vmem:[%s8 + $0x430] sm:$0xff]
    %v1434 = vld [vmem:[%s8 + $0x438] sm:$0xff]
    %v1435 = vld [vmem:[%s8 + $0x440] sm:$0xff]
    %v1436 = vld [vmem:[%s8 + $0x448] sm:$0xff]
    %v1437 = vld [vmem:[%s8 + $0x450] sm:$0xff]
    %v1438 = vld [vmem:[%s8 + $0x458] sm:$0xff]
    %v1439 = vld [vmem:[%s8 + $0x460] sm:$0xff]
    %v1440 = vld [vmem:[%s8 + $0x468] sm:$0xff]
    %v1441 = vld [vmem:[%s8 + $0x470] sm:$0xff]
    %v1442 = vld [vmem:[%s8 + $0x478] sm:$0xff]
    %v1443 = vld [vmem:[%s8 + $0x480] sm:$0xff]
    %v1444 = vld [vmem:[%s8 + $0x488] sm:$0xff]
    %v1445 = vld [vmem:[%s8 + $0x490] sm:$0xff]
    %v1446 = vld [vmem:[%s8 + $0x498] sm:$0xff]
    %v1447 = vld [vmem:[%s8 + $0x4a0] sm:$0xff]
    %v1448 = vld [vmem:[%s8 + $0x4a8] sm:$0xff]
    %v1449 = vld [vmem:[%s8 + $0x4b0] sm:$0xff]
    %v1450 = vld [vmem:[%s8 + $0x4b8] sm:$0xff]
    %v1451 = vld [vmem:[%s8 + $0x4c0] sm:$0xff]
    %v1452 = vld [vmem:[%s8 + $0x4c8] sm:$0xff]
    %v1453 = vld [vmem:[%s8 + $0x4d0] sm:$0xff]
    %v1454 = vld [vmem:[%s8 + $0x4d8] sm:$0xff]
    %v1455 = vld [vmem:[%s8 + $0x4e0] sm:$0xff]
    %v1456 = vld [vmem:[%s8 + $0x4e8] sm:$0xff]
    %v1457 = vld [vmem:[%s8 + $0x4f0] sm:$0xff]
    %v1458 = vld [vmem:[%s8 + $0x4f8] sm:$0xff]
    %v1459 = vld [vmem:[%s8 + $0x500] sm:$0xff]
    %v1460 = vld [vmem:[%s8 + $0x508] sm:$0xff]
    %v1461 = vld [vmem:[%s8 + $0x510] sm:$0xff]
    %v1462 = vld [vmem:[%s8 + $0x518] sm:$0xff]
    %v1463 = vld [vmem:[%s8 + $0x520] sm:$0xff]
    %v1464 = vld [vmem:[%s8 + $0x528] sm:$0xff]
    %v1465 = vld [vmem:[%s8 + $0x530] sm:$0xff]
    %v1466 = vld [vmem:[%s8 + $0x538] sm:$0xff]
    %v1467 = vld [vmem:[%s8 + $0x540] sm:$0xff]
    %v1468 = vld [vmem:[%s8 + $0x548] sm:$0xff]
    %v1469 = vld [vmem:[%s8 + $0x550] sm:$0xff]
    %v1470 = vld [vmem:[%s8 + $0x558] sm:$0xff]
    %v1471 = vld [vmem:[%s8 + $0x560] sm:$0xff]
    %v1472 = vld [vmem:[%s8 + $0x568] sm:$0xff]
    %v1473 = vld [vmem:[%s8 + $0x570] sm:$0xff]
    %v1474 = vld [vmem:[%s8 + $0x578] sm:$0xff]
    %v1475 = vld [vmem:[%s8 + $0x580] sm:$0xff]
    %v1476 = vld [vmem:[%s8 + $0x588] sm:$0xff]
    %v1477 = vld [vmem:[%s8 + $0x590] sm:$0xff]
    %v1478 = vld [vmem:[%s8 + $0x598] sm:$0xff]
    %v1479 = vld [vmem:[%s8 + $0x5a0] sm:$0xff]
    %v1480 = vld [vmem:[%s8 + $0x5a8] sm:$0xff]
    %v1481 = vld [vmem:[%s8 + $0x5b0] sm:$0xff]
    %v1482 = vld [vmem:[%s8 + $0x5b8] sm:$0xff]
    %v1483 = vld [vmem:[%s8 + $0x5c0] sm:$0xff]
    %v1484 = vld [vmem:[%s8 + $0x5c8] sm:$0xff]
    %v1485 = vld [vmem:[%s8 + $0x5d0] sm:$0xff]
    %v1486 = vld [vmem:[%s8 + $0x5d8] sm:$0xff]
    %v1487 = vld [vmem:[%s8 + $0x5e0] sm:$0xff]
    %v1488 = vld [vmem:[%s8 + $0x5e8] sm:$0xff]
    %v1489 = vld [vmem:[%s8 + $0x5f0] sm:$0xff]
    %v1490 = vld [vmem:[%s8 + $0x5f8] sm:$0xff]
    %v1491 = vld [vmem:[%s8 + $0x600] sm:$0xff]
    %v1492 = vld [vmem:[%s8 + $0x608] sm:$0xff]
    %v1493 = vld [vmem:[%s8 + $0x610] sm:$0xff]
    %v1494 = vld [vmem:[%s8 + $0x618] sm:$0xff]
    %v1495 = vld [vmem:[%s8 + $0x620] sm:$0xff]
    %v1496 = vld [vmem:[%s8 + $0x628] sm:$0xff]
    %v1497 = vld [vmem:[%s8 + $0x630] sm:$0xff]
    %v1498 = vld [vmem:[%s8 + $0x638] sm:$0xff]
    %v1499 = vld [vmem:[%s8 + $0x640] sm:$0xff]
    %v1500 = vld [vmem:[%s8 + $0x648] sm:$0xff]
    %v1501 = vld [vmem:[%s8 + $0x650] sm:$0xff]
    %v1502 = vld [vmem:[%s8 + $0x658] sm:$0xff]
    %v1503 = vld [vmem:[%s8 + $0x660] sm:$0xff]
    %v1504 = vld [vmem:[%s8 + $0x668] sm:$0xff]
    %v1505 = vld [vmem:[%s8 + $0x670] sm:$0xff]
    %v1506 = vld [vmem:[%s8 + $0x678] sm:$0xff]
    %v1507 = vld [vmem:[#allocation14] sm:$0x1]
    %v1509 = vperm.slane %v1507, 0
    %1511 = vmatpush.msra.mxu0 %v1314
    %1512 = vmatpush.msra.mxu0 %v1313
    %1513 = vmatpush.msra.mxu0 %v1312
    %1514 = vmatpush.msra.mxu0 %v1311
    %1515 = vmatpush.msra.mxu0 %v1310
    %1516 = vmatpush.msra.mxu0 %v1309
    %1517 = vmatpush.msra.mxu0 %v1308
    %1518 = vmatpush.msra.mxu0 %v1307
    %1519 = vmatpush.msra.mxu0 %v1306
    %1520 = vmatpush.msra.mxu0 %v1305
    %1521 = vmatpush.msra.mxu0 %v1304
    %1522 = vmatpush.msra.mxu0 %v1303
    %1523 = vmatpush.msra.mxu0 %v1302
    %1524 = vmatpush.msra.mxu0 %v1301
    %1525 = vmatpush.msra.mxu0 %v1300
    %1526 = vmatpush.msra.mxu0 %v1299
    %1527 = vmatmul.f32.gmra.mxu0 %v1280
    %v1528 = vpop.f32.mrf.mxu0
    %v1529 = vadd.f32 %v1509, %v1528
    %1530 = vdwg.mxu0
    %1531 = vmatpush.msra.mxu0 %v1330
    %1532 = vmatpush.msra.mxu0 %v1329
    %1533 = vmatpush.msra.mxu0 %v1328
    %1534 = vmatpush.msra.mxu0 %v1327
    %1535 = vmatpush.msra.mxu0 %v1326
    %1536 = vmatpush.msra.mxu0 %v1325
    %1537 = vmatpush.msra.mxu0 %v1324
    %1538 = vmatpush.msra.mxu0 %v1323
    %1539 = vmatpush.msra.mxu0 %v1322
    %1540 = vmatpush.msra.mxu0 %v1321
    %1541 = vmatpush.msra.mxu0 %v1320
    %1542 = vmatpush.msra.mxu0 %v1319
    %1543 = vmatpush.msra.mxu0 %v1318
    %1544 = vmatpush.msra.mxu0 %v1317
    %1545 = vmatpush.msra.mxu0 %v1316
    %1546 = vmatpush.msra.mxu0 %v1315
    %1547 = vmatmul.f32.gmra.mxu0 %v1274
    %v1548 = vpop.f32.mrf.mxu0
    %v1549 = vadd.f32 %v1529, %v1548
    %1550 = vdwg.mxu0
    %1551 = vmatpush.msra.mxu0 %v1346
    %1552 = vmatpush.msra.mxu0 %v1345
    %1553 = vmatpush.msra.mxu0 %v1344
    %1554 = vmatpush.msra.mxu0 %v1343
    %1555 = vmatpush.msra.mxu0 %v1342
    %1556 = vmatpush.msra.mxu0 %v1341
    %1557 = vmatpush.msra.mxu0 %v1340
    %1558 = vmatpush.msra.mxu0 %v1339
    %1559 = vmatpush.msra.mxu0 %v1338
    %1560 = vmatpush.msra.mxu0 %v1337
    %1561 = vmatpush.msra.mxu0 %v1336
    %1562 = vmatpush.msra.mxu0 %v1335
    %1563 = vmatpush.msra.mxu0 %v1334
    %1564 = vmatpush.msra.mxu0 %v1333
    %1565 = vmatpush.msra.mxu0 %v1332
    %1566 = vmatpush.msra.mxu0 %v1331
    %1567 = vmatmul.f32.gmra.mxu0 %v1275
    %v1568 = vpop.f32.mrf.mxu0
    %v1569 = vadd.f32 %v1549, %v1568
    %1570 = vdwg.mxu0
    %1571 = vmatpush.msra.mxu0 %v1362
    %1572 = vmatpush.msra.mxu0 %v1361
    %1573 = vmatpush.msra.mxu0 %v1360
    %1574 = vmatpush.msra.mxu0 %v1359
    %1575 = vmatpush.msra.mxu0 %v1358
    %1576 = vmatpush.msra.mxu0 %v1357
    %1577 = vmatpush.msra.mxu0 %v1356
    %1578 = vmatpush.msra.mxu0 %v1355
    %1579 = vmatpush.msra.mxu0 %v1354
    %1580 = vmatpush.msra.mxu0 %v1353
    %1581 = vmatpush.msra.mxu0 %v1352
    %1582 = vmatpush.msra.mxu0 %v1351
    %1583 = vmatpush.msra.mxu0 %v1350
    %1584 = vmatpush.msra.mxu0 %v1349
    %1585 = vmatpush.msra.mxu0 %v1348
    %1586 = vmatpush.msra.mxu0 %v1347
    %1587 = vmatmul.f32.gmra.mxu0 %v1276
    %v1588 = vpop.f32.mrf.mxu0
    %v1589 = vadd.f32 %v1569, %v1588
    %1590 = vdwg.mxu0
    %1591 = vmatpush.msra.mxu0 %v1378
    %1592 = vmatpush.msra.mxu0 %v1377
    %1593 = vmatpush.msra.mxu0 %v1376
    %1594 = vmatpush.msra.mxu0 %v1375
    %1595 = vmatpush.msra.mxu0 %v1374
    %1596 = vmatpush.msra.mxu0 %v1373
    %1597 = vmatpush.msra.mxu0 %v1372
    %1598 = vmatpush.msra.mxu0 %v1371
    %1599 = vmatpush.msra.mxu0 %v1370
    %1600 = vmatpush.msra.mxu0 %v1369
    %1601 = vmatpush.msra.mxu0 %v1368
    %1602 = vmatpush.msra.mxu0 %v1367
    %1603 = vmatpush.msra.mxu0 %v1366
    %1604 = vmatpush.msra.mxu0 %v1365
    %1605 = vmatpush.msra.mxu0 %v1364
    %1606 = vmatpush.msra.mxu0 %v1363
    %1607 = vmatmul.f32.gmra.mxu0 %v1277
    %v1608 = vpop.f32.mrf.mxu0
    %v1609 = vadd.f32 %v1589, %v1608
    %1610 = vdwg.mxu0
    %1611 = vmatpush.msra.mxu0 %v1394
    %1612 = vmatpush.msra.mxu0 %v1393
    %1613 = vmatpush.msra.mxu0 %v1392
    %1614 = vmatpush.msra.mxu0 %v1391
    %1615 = vmatpush.msra.mxu0 %v1390
    %1616 = vmatpush.msra.mxu0 %v1389
    %1617 = vmatpush.msra.mxu0 %v1388
    %1618 = vmatpush.msra.mxu0 %v1387
    %1619 = vmatpush.msra.mxu0 %v1386
    %1620 = vmatpush.msra.mxu0 %v1385
    %1621 = vmatpush.msra.mxu0 %v1384
    %1622 = vmatpush.msra.mxu0 %v1383
    %1623 = vmatpush.msra.mxu0 %v1382
    %1624 = vmatpush.msra.mxu0 %v1381
    %1625 = vmatpush.msra.mxu0 %v1380
    %1626 = vmatpush.msra.mxu0 %v1379
    %1627 = vmatmul.f32.gmra.mxu0 %v1278
    %v1628 = vpop.f32.mrf.mxu0
    %v1629 = vadd.f32 %v1609, %v1628
    %1630 = vdwg.mxu0
    %1631 = vmatpush.msra.mxu0 %v1410
    %1632 = vmatpush.msra.mxu0 %v1409
    %1633 = vmatpush.msra.mxu0 %v1408
    %1634 = vmatpush.msra.mxu0 %v1407
    %1635 = vmatpush.msra.mxu0 %v1406
    %1636 = vmatpush.msra.mxu0 %v1405
    %1637 = vmatpush.msra.mxu0 %v1404
    %1638 = vmatpush.msra.mxu0 %v1403
    %1639 = vmatpush.msra.mxu0 %v1402
    %1640 = vmatpush.msra.mxu0 %v1401
    %1641 = vmatpush.msra.mxu0 %v1400
    %1642 = vmatpush.msra.mxu0 %v1399
    %1643 = vmatpush.msra.mxu0 %v1398
    %1644 = vmatpush.msra.mxu0 %v1397
    %1645 = vmatpush.msra.mxu0 %v1396
    %1646 = vmatpush.msra.mxu0 %v1395
    %1647 = vmatmul.f32.gmra.mxu0 %v1279
    %v1648 = vpop.f32.mrf.mxu0
    %v1649 = vadd.f32 %v1629, %v1648
    %1650 = vdwg.mxu0
    %1651 = vmatpush.msra.mxu0 %v1426
    %1652 = vmatpush.msra.mxu0 %v1425
    %1653 = vmatpush.msra.mxu0 %v1424
    %1654 = vmatpush.msra.mxu0 %v1423
    %1655 = vmatpush.msra.mxu0 %v1422
    %1656 = vmatpush.msra.mxu0 %v1421
    %1657 = vmatpush.msra.mxu0 %v1420
    %1658 = vmatpush.msra.mxu0 %v1419
    %1659 = vmatpush.msra.mxu0 %v1418
    %1660 = vmatpush.msra.mxu0 %v1417
    %1661 = vmatpush.msra.mxu0 %v1416
    %1662 = vmatpush.msra.mxu0 %v1415
    %1663 = vmatpush.msra.mxu0 %v1414
    %1664 = vmatpush.msra.mxu0 %v1413
    %1665 = vmatpush.msra.mxu0 %v1412
    %1666 = vmatpush.msra.mxu0 %v1411
    %1667 = vmatmul.f32.gmra.mxu0 %v1287
    %v1668 = vpop.f32.mrf.mxu0
    %v1669 = vadd.f32 %v1649, %v1668
    %1670 = vdwg.mxu0
    %1671 = vmatpush.msra.mxu0 %v1442
    %1672 = vmatpush.msra.mxu0 %v1441
    %1673 = vmatpush.msra.mxu0 %v1440
    %1674 = vmatpush.msra.mxu0 %v1439
    %1675 = vmatpush.msra.mxu0 %v1438
    %1676 = vmatpush.msra.mxu0 %v1437
    %1677 = vmatpush.msra.mxu0 %v1436
    %1678 = vmatpush.msra.mxu0 %v1435
    %1679 = vmatpush.msra.mxu0 %v1434
    %1680 = vmatpush.msra.mxu0 %v1433
    %1681 = vmatpush.msra.mxu0 %v1432
    %1682 = vmatpush.msra.mxu0 %v1431
    %1683 = vmatpush.msra.mxu0 %v1430
    %1684 = vmatpush.msra.mxu0 %v1429
    %1685 = vmatpush.msra.mxu0 %v1428
    %1686 = vmatpush.msra.mxu0 %v1427
    %1687 = vmatmul.f32.gmra.mxu0 %v1288
    %v1688 = vpop.f32.mrf.mxu0
    %v1689 = vadd.f32 %v1669, %v1688
    %1690 = vdwg.mxu0
    %1691 = vmatpush.msra.mxu0 %v1458
    %1692 = vmatpush.msra.mxu0 %v1457
    %1693 = vmatpush.msra.mxu0 %v1456
    %1694 = vmatpush.msra.mxu0 %v1455
    %1695 = vmatpush.msra.mxu0 %v1454
    %1696 = vmatpush.msra.mxu0 %v1453
    %1697 = vmatpush.msra.mxu0 %v1452
    %1698 = vmatpush.msra.mxu0 %v1451
    %1699 = vmatpush.msra.mxu0 %v1450
    %1700 = vmatpush.msra.mxu0 %v1449
    %1701 = vmatpush.msra.mxu0 %v1448
    %1702 = vmatpush.msra.mxu0 %v1447
    %1703 = vmatpush.msra.mxu0 %v1446
    %1704 = vmatpush.msra.mxu0 %v1445
    %1705 = vmatpush.msra.mxu0 %v1444
    %1706 = vmatpush.msra.mxu0 %v1443
    %1707 = vmatmul.f32.gmra.mxu0 %v1289
    %v1708 = vpop.f32.mrf.mxu0
    %v1709 = vadd.f32 %v1689, %v1708
    %1710 = vdwg.mxu0
    %1711 = vmatpush.msra.mxu0 %v1474
    %1712 = vmatpush.msra.mxu0 %v1473
    %1713 = vmatpush.msra.mxu0 %v1472
    %1714 = vmatpush.msra.mxu0 %v1471
    %1715 = vmatpush.msra.mxu0 %v1470
    %1716 = vmatpush.msra.mxu0 %v1469
    %1717 = vmatpush.msra.mxu0 %v1468
    %1718 = vmatpush.msra.mxu0 %v1467
    %1719 = vmatpush.msra.mxu0 %v1466
    %1720 = vmatpush.msra.mxu0 %v1465
    %1721 = vmatpush.msra.mxu0 %v1464
    %1722 = vmatpush.msra.mxu0 %v1463
    %1723 = vmatpush.msra.mxu0 %v1462
    %1724 = vmatpush.msra.mxu0 %v1461
    %1725 = vmatpush.msra.mxu0 %v1460
    %1726 = vmatpush.msra.mxu0 %v1459
    %1727 = vmatmul.f32.gmra.mxu0 %v1290
    %v1728 = vpop.f32.mrf.mxu0
    %v1729 = vadd.f32 %v1709, %v1728
    %1730 = vdwg.mxu0
    %1731 = vmatpush.msra.mxu0 %v1490
    %1732 = vmatpush.msra.mxu0 %v1489
    %1733 = vmatpush.msra.mxu0 %v1488
    %1734 = vmatpush.msra.mxu0 %v1487
    %1735 = vmatpush.msra.mxu0 %v1486
    %1736 = vmatpush.msra.mxu0 %v1485
    %1737 = vmatpush.msra.mxu0 %v1484
    %1738 = vmatpush.msra.mxu0 %v1483
    %1739 = vmatpush.msra.mxu0 %v1482
    %1740 = vmatpush.msra.mxu0 %v1481
    %1741 = vmatpush.msra.mxu0 %v1480
    %1742 = vmatpush.msra.mxu0 %v1479
    %1743 = vmatpush.msra.mxu0 %v1478
    %1744 = vmatpush.msra.mxu0 %v1477
    %1745 = vmatpush.msra.mxu0 %v1476
    %1746 = vmatpush.msra.mxu0 %v1475
    %1747 = vmatmul.f32.gmra.mxu0 %v1291
    %v1748 = vpop.f32.mrf.mxu0
    %v1749 = vadd.f32 %v1729, %v1748
    %1750 = vdwg.mxu0
    %1751 = vmatpush.msra.mxu0 %v1506
    %1752 = vmatpush.msra.mxu0 %v1505
    %1753 = vmatpush.msra.mxu0 %v1504
    %1754 = vmatpush.msra.mxu0 %v1503
    %1755 = vmatpush.msra.mxu0 %v1502
    %1756 = vmatpush.msra.mxu0 %v1501
    %1757 = vmatpush.msra.mxu0 %v1500
    %1758 = vmatpush.msra.mxu0 %v1499
    %1759 = vmatpush.msra.mxu0 %v1498
    %1760 = vmatpush.msra.mxu0 %v1497
    %1761 = vmatpush.msra.mxu0 %v1496
    %1762 = vmatpush.msra.mxu0 %v1495
    %1763 = vmatpush.msra.mxu0 %v1494
    %1764 = vmatpush.msra.mxu0 %v1493
    %1765 = vmatpush.msra.mxu0 %v1492
    %1766 = vmatpush.msra.mxu0 %v1491
    %1767 = vmatmul.f32.gmra.mxu0 %v1292
    %v1768 = vpop.f32.mrf.mxu0
    %v1769 = vadd.f32 %v1749, %v1768
    %1770 = vdwg.mxu0
    %v1771 = vmax.f32 %v1769, 0.0
    %v1772 = vld [vmem:[%s10] sm:$0xff]
    %v1773 = vld [vmem:[%s10 + $0x8] sm:$0xff]
    %v1774 = vld [vmem:[%s10 + $0x10] sm:$0xff]
    %v1775 = vld [vmem:[%s10 + $0x18] sm:$0xff]
    %v1776 = vld [vmem:[%s10 + $0x20] sm:$0xff]
    %v1777 = vld [vmem:[%s10 + $0x28] sm:$0xff]
    %v1778 = vld [vmem:[%s10 + $0x30] sm:$0xff]
    %v1779 = vld [vmem:[%s10 + $0x38] sm:$0xff]
    %v1780 = vld [vmem:[#allocation16] sm:$0x1]
    %v1782 = vperm.slane %v1780, 0
    %vm1784 = vcmask 523264
    %v1786 = vsel %vm1784, %v1771, 0
    %1788 = vmatpush.msra.mxu0 0.0
    %1789 = vmatpush.msra.mxu0 0.0
    %1790 = vmatpush.msra.mxu0 0.0
    %1791 = vmatpush.msra.mxu0 0.0
    %1792 = vmatpush.msra.mxu0 0.0
    %1793 = vmatpush.msra.mxu0 0.0
    %1794 = vmatpush.msra.mxu0 0.0
    %1795 = vmatpush.msra.mxu0 0.0
    %1796 = vmatpush.msra.mxu0 %v1779
    %1797 = vmatpush.msra.mxu0 %v1778
    %1798 = vmatpush.msra.mxu0 %v1777
    %1799 = vmatpush.msra.mxu0 %v1776
    %1800 = vmatpush.msra.mxu0 %v1775
    %1801 = vmatpush.msra.mxu0 %v1774
    %1802 = vmatpush.msra.mxu0 %v1773
    %1803 = vmatpush.msra.mxu0 %v1772
    %1804 = vmatmul.f32.gmra.mxu0 %v1786
    %v1805 = vpop.f32.mrf.mxu0
    %v1806 = vadd.f32 %v1782, %v1805
    %1807 = vdwg.mxu0
    %v1808 = vmax.f32 %v1806, 0.0
    %v1809 = vld [vmem:[%s12] sm:$0xff]
    %v1810 = vld [vmem:[%s12 + $0x8] sm:$0xff]
    %v1811 = vld [vmem:[%s12 + $0x10] sm:$0xff]
    %v1812 = vld [vmem:[%s12 + $0x18] sm:$0xff]
    %v1813 = vld [vmem:[#allocation17] sm:$0x1]
    %v1815 = vperm.slane %v1813, 0
    %vm1817 = vcmask 261120
    %v1819 = vsel %vm1817, %v1808, 0
    %1821 = vmatpush.msra.mxu0 0.0
    %1822 = vmatpush.msra.mxu0 0.0
    %1823 = vmatpush.msra.mxu0 0.0
    %1824 = vmatpush.msra.mxu0 0.0
    %1825 = vmatpush.msra.mxu0 0.0
    %1826 = vmatpush.msra.mxu0 0.0
    %1827 = vmatpush.msra.mxu0 0.0
    %1828 = vmatpush.msra.mxu0 0.0
    %1829 = vmatpush.msra.mxu0 0.0
    %1830 = vmatpush.msra.mxu0 0.0
    %1831 = vmatpush.msra.mxu0 0.0
    %1832 = vmatpush.msra.mxu0 0.0
    %1833 = vmatpush.msra.mxu0 %v1812
    %1834 = vmatpush.msra.mxu0 %v1811
    %1835 = vmatpush.msra.mxu0 %v1810
    %1836 = vmatpush.msra.mxu0 %v1809
    %1837 = vmatmul.f32.gmra.mxu0 %v1819
    %v1838 = vpop.f32.mrf.mxu0
    %v1839 = vadd.f32 %v1815, %v1838
    %1840 = vdwg.mxu0
    %v1841 = vld [vmem:[#allocation7] sm:$0xf]
    %v1842 = vlaneseq
    %v1843 = vand.u32 %v1842, 127
    %1844 = vset.pattern.permute.xlu0 0
    %1845 = vperm.xlu0 %1844, %v1841
    %v1846 = vpop.permute.xlu0 %1845
    %vm1847 = vcmp.eq.s32.totalorder %v1843, %v1846
    %v1848 = vsel %vm1847, 1, 0
    %v1849 = vcvt.s32.f32 %v1848
    %1850 = vset.pattern.permute.xlu0 1
    %1851 = vperm.xlu0 %1850, %v1841
    %v1852 = vpop.permute.xlu0 %1851
    %vm1853 = vcmp.eq.s32.totalorder %v1843, %v1852
    %v1854 = vsel %vm1853, 1, 0
    %v1855 = vcvt.s32.f32 %v1854
    %1856 = vset.pattern.permute.xlu0 2
    %1857 = vperm.xlu0 %1856, %v1841
    %v1858 = vpop.permute.xlu0 %1857
    %vm1859 = vcmp.eq.s32.totalorder %v1843, %v1858
    %v1860 = vsel %vm1859, 1, 0
    %v1861 = vcvt.s32.f32 %v1860
    %1862 = vset.pattern.permute.xlu0 3
    %1863 = vperm.xlu0 %1862, %v1841
    %v1864 = vpop.permute.xlu0 %1863
    %vm1865 = vcmp.eq.s32.totalorder %v1843, %v1864
    %v1866 = vsel %vm1865, 1, 0
    %v1867 = vcvt.s32.f32 %v1866
    %1868 = vset.pattern.permute.xlu0 4
    %1869 = vperm.xlu0 %1868, %v1841
    %v1870 = vpop.permute.xlu0 %1869
    %vm1871 = vcmp.eq.s32.totalorder %v1843, %v1870
    %v1872 = vsel %vm1871, 1, 0
    %v1873 = vcvt.s32.f32 %v1872
    %1874 = vset.pattern.permute.xlu0 5
    %1875 = vperm.xlu0 %1874, %v1841
    %v1876 = vpop.permute.xlu0 %1875
    %vm1877 = vcmp.eq.s32.totalorder %v1843, %v1876
    %v1878 = vsel %vm1877, 1, 0
    %v1879 = vcvt.s32.f32 %v1878
    %1880 = vset.pattern.permute.xlu0 6
    %1881 = vperm.xlu0 %1880, %v1841
    %v1882 = vpop.permute.xlu0 %1881
    %vm1883 = vcmp.eq.s32.totalorder %v1843, %v1882
    %v1884 = vsel %vm1883, 1, 0
    %v1885 = vcvt.s32.f32 %v1884
    %1886 = vset.pattern.permute.xlu0 7
    %1887 = vperm.xlu0 %1886, %v1841
    %v1888 = vpop.permute.xlu0 %1887
    %vm1889 = vcmp.eq.s32.totalorder %v1843, %v1888
    %v1890 = vsel %vm1889, 1, 0
    %v1891 = vcvt.s32.f32 %v1890
    %1892 = vset.pattern.permute.xlu0 8
    %1893 = vperm.xlu0 %1892, %v1841
    %v1894 = vpop.permute.xlu0 %1893
    %vm1895 = vcmp.eq.s32.totalorder %v1843, %v1894
    %v1896 = vsel %vm1895, 1, 0
    %v1897 = vcvt.s32.f32 %v1896
    %1898 = vset.pattern.permute.xlu0 9
    %1899 = vperm.xlu0 %1898, %v1841
    %v1900 = vpop.permute.xlu0 %1899
    %vm1901 = vcmp.eq.s32.totalorder %v1843, %v1900
    %v1902 = vsel %vm1901, 1, 0
    %v1903 = vcvt.s32.f32 %v1902
    %1904 = vset.pattern.permute.xlu0 10
    %1905 = vperm.xlu0 %1904, %v1841
    %v1906 = vpop.permute.xlu0 %1905
    %vm1907 = vcmp.eq.s32.totalorder %v1843, %v1906
    %v1908 = vsel %vm1907, 1, 0
    %v1909 = vcvt.s32.f32 %v1908
    %v1911 = vrot.slane %v1855, 4
    %v1914 = vrot.slane %v1867, 4
    %v1917 = vrot.slane %v1879, 4
    %v1920 = vrot.slane %v1891, 4
    %v1923 = vrot.slane %v1903, 4
    %vm1925 = vcmask 1043456
    %v1926 = vsel %vm1925, %v1849, %v1911
    %v1927 = vsel %vm1925, %v1861, %v1914
    %v1928 = vsel %vm1925, %v1873, %v1917
    %v1929 = vsel %vm1925, %v1885, %v1920
    %v1930 = vsel %vm1925, %v1897, %v1923
    %v1931 = vld [vmem:[#allocation19] sm:$0xff]
    %v1932 = vld [vmem:[#allocation19 + $0x8] sm:$0xff]
    %v1933 = vld [vmem:[#allocation19 + $0x10] sm:$0xff]
    %v1934 = vld [vmem:[#allocation19 + $0x18] sm:$0xff]
    %v1936 = vsel %vm1817, %v1926, 0
    %v1939 = vsel %vm1817, %v1927, 0
    %v1942 = vsel %vm1817, %v1928, 0
    %v1945 = vsel %vm1817, %v1929, 0
    %v1948 = vsel %vm1817, %v1930, 0
    %v1951 = vsel %vm1817, %v1909, 0
    %1953 = vmatpush.msra.mxu0 0.0
    %1954 = vmatpush.msra.mxu0 0.0
    %1955 = vmatpush.msra.mxu0 0.0
    %1956 = vmatpush.msra.mxu0 0.0
    %1957 = vmatpush.msra.mxu0 0.0
    %1958 = vmatpush.msra.mxu0 0.0
    %1959 = vmatpush.msra.mxu0 0.0
    %1960 = vmatpush.msra.mxu0 0.0
    %1961 = vmatpush.msra.mxu0 0.0
    %1962 = vmatpush.msra.mxu0 0.0
    %1963 = vmatpush.msra.mxu0 0.0
    %1964 = vmatpush.msra.mxu0 0.0
    %1965 = vmatpush.msra.mxu0 %v1934
    %1966 = vmatpush.msra.mxu0 %v1933
    %1967 = vmatpush.msra.mxu0 %v1932
    %1968 = vmatpush.msra.mxu0 %v1931
    %1969 = vmatmul.f32.gmra.mxu0 %v1936
    %v1970 = vpop.f32.mrf.mxu0
    %v1971 = vadd.f32 0.0, %v1970
    %1972 = vmatmul.f32.gmra.mxu0 %v1939
    %v1973 = vpop.f32.mrf.mxu0
    %v1974 = vadd.f32 0.0, %v1973
    %1975 = vmatmul.f32.gmra.mxu0 %v1942
    %v1976 = vpop.f32.mrf.mxu0
    %v1977 = vadd.f32 0.0, %v1976
    %1978 = vmatmul.f32.gmra.mxu0 %v1945
    %v1979 = vpop.f32.mrf.mxu0
    %v1980 = vadd.f32 0.0, %v1979
    %1981 = vmatmul.f32.gmra.mxu0 %v1948
    %v1982 = vpop.f32.mrf.mxu0
    %v1983 = vadd.f32 0.0, %v1982
    %1984 = vmatmul.f32.gmra.mxu0 %v1951
    %v1985 = vpop.f32.mrf.mxu0
    %v1986 = vadd.f32 0.0, %v1985
    %1987 = vdwg.mxu0
    %v1988 = vld [vmem:[#allocation20] sm:$0xff]
    %v1989 = vld [vmem:[#allocation20 + $0x8] sm:$0xff]
    %vm1990 = vcmask 130048
    %v1992 = vsel %vm1990, 0.0, 0
    %1994 = vmatpush.msra.mxu0 0.0
    %1995 = vmatpush.msra.mxu0 0.0
    %1996 = vmatpush.msra.mxu0 0.0
    %1997 = vmatpush.msra.mxu0 0.0
    %1998 = vmatpush.msra.mxu0 0.0
    %1999 = vmatpush.msra.mxu0 0.0
    %2000 = vmatpush.msra.mxu0 0.0
    %2001 = vmatpush.msra.mxu0 0.0
    %2002 = vmatpush.msra.mxu0 0.0
    %2003 = vmatpush.msra.mxu0 0.0
    %2004 = vmatpush.msra.mxu0 0.0
    %2005 = vmatpush.msra.mxu0 0.0
    %2006 = vmatpush.msra.mxu0 0.0
    %2007 = vmatpush.msra.mxu0 0.0
    %2008 = vmatpush.msra.mxu0 %v1989
    %2009 = vmatpush.msra.mxu0 %v1988
    %2010 = vmatmul.f32.gmra.mxu0 %v1992
    %v2011 = vpop.f32.mrf.mxu0
    %v2012 = vadd.f32 0.0, %v2011
    %2013 = vdwg.mxu0
    %v2014 = vadd.f32 %v1971, %v2012
    %v2015 = vtanh.pop %v2014
    %v2016 = vmul.f32 %v2015, 0.5
    %v2017 = vadd.f32 %v2016, 0.5
    %v2018 = vmul.f32 %v2017, 0.0
    %2020 = vrot.lane.b32.xlu0 %v2015, 96
    %v2021 = vpop.permute.xlu0 %2020
    %v2023 = vmul.f32 %v2017, %v2021
    %2025 = vrot.lane.b32.xlu0 %v2023, 16
    %v2026 = vpop.permute.xlu0 %2025
    %v2028 = vadd.f32 %v2018, %v2026
    %v2029 = vtanh.pop %v2028
    %2031 = vrot.lane.b32.xlu0 %v2029, 32
    %v2032 = vpop.permute.xlu0 %2031
    %v2034 = vmul.f32 %v2017, %v2032
    %2036 = vrot.lane.b32.xlu0 %v2034, 80
    %v2037 = vpop.permute.xlu0 %2036
    %v2038 = vsel %vm1990, %v2037, 0
    %2040 = vmatpush.msra.mxu0 0.0
    %2041 = vmatpush.msra.mxu0 0.0
    %2042 = vmatpush.msra.mxu0 0.0
    %2043 = vmatpush.msra.mxu0 0.0
    %2044 = vmatpush.msra.mxu0 0.0
    %2045 = vmatpush.msra.mxu0 0.0
    %2046 = vmatpush.msra.mxu0 0.0
    %2047 = vmatpush.msra.mxu0 0.0
    %2048 = vmatpush.msra.mxu0 0.0
    %2049 = vmatpush.msra.mxu0 0.0
    %2050 = vmatpush.msra.mxu0 0.0
    %2051 = vmatpush.msra.mxu0 0.0
    %2052 = vmatpush.msra.mxu0 0.0
    %2053 = vmatpush.msra.mxu0 0.0
    %2054 = vmatpush.msra.mxu0 %v1989
    %2055 = vmatpush.msra.mxu0 %v1988
    %2056 = vmatmul.f32.gmra.mxu0 %v2038
    %v2057 = vpop.f32.mrf.mxu0
    %v2058 = vadd.f32 0.0, %v2057
    %2059 = vdwg.mxu0
    %v2061 = vrot.slane %v2058, 4
    %v2063 = vadd.f32 %v1971, %v2061
    %v2064 = vtanh.pop %v2063
    %v2065 = vmul.f32 %v2064, 0.5
    %v2066 = vadd.f32 %v2065, 0.5
    %v2068 = vrot.slane %v2028, 4
    %v2070 = vmul.f32 %v2066, %v2068
    %2072 = vrot.lane.b32.xlu0 %v2064, 96
    %v2073 = vpop.permute.xlu0 %2072
    %v2075 = vmul.f32 %v2066, %v2073
    %2077 = vrot.lane.b32.xlu0 %v2075, 16
    %v2078 = vpop.permute.xlu0 %2077
    %v2080 = vadd.f32 %v2070, %v2078
    %v2081 = vtanh.pop %v2080
    %2083 = vrot.lane.b32.xlu0 %v2081, 32
    %v2084 = vpop.permute.xlu0 %2083
    %v2086 = vmul.f32 %v2066, %v2084
    %v2088 = vrot.slane %v2086, 4
    %2089 = vrot.lane.b32.xlu0 %v2088, 80
    %v2090 = vpop.permute.xlu0 %2089
    %v2091 = vsel %vm1990, %v2090, 0
    %2093 = vmatpush.msra.mxu0 0.0
    %2094 = vmatpush.msra.mxu0 0.0
    %2095 = vmatpush.msra.mxu0 0.0
    %2096 = vmatpush.msra.mxu0 0.0
    %2097 = vmatpush.msra.mxu0 0.0
    %2098 = vmatpush.msra.mxu0 0.0
    %2099 = vmatpush.msra.mxu0 0.0
    %2100 = vmatpush.msra.mxu0 0.0
    %2101 = vmatpush.msra.mxu0 0.0
    %2102 = vmatpush.msra.mxu0 0.0
    %2103 = vmatpush.msra.mxu0 0.0
    %2104 = vmatpush.msra.mxu0 0.0
    %2105 = vmatpush.msra.mxu0 0.0
    %2106 = vmatpush.msra.mxu0 0.0
    %2107 = vmatpush.msra.mxu0 %v1989
    %2108 = vmatpush.msra.mxu0 %v1988
    %2109 = vmatmul.f32.gmra.mxu0 %v2091
    %v2110 = vpop.f32.mrf.mxu0
    %v2111 = vadd.f32 0.0, %v2110
    %2112 = vdwg.mxu0
    %v2113 = vadd.f32 %v1974, %v2111
    %v2114 = vtanh.pop %v2113
    %v2115 = vmul.f32 %v2114, 0.5
    %v2116 = vadd.f32 %v2115, 0.5
    %v2118 = vrot.slane %v2080, 4
    %v2120 = vmul.f32 %v2116, %v2118
    %2122 = vrot.lane.b32.xlu0 %v2114, 96
    %v2123 = vpop.permute.xlu0 %2122
    %v2125 = vmul.f32 %v2116, %v2123
    %2127 = vrot.lane.b32.xlu0 %v2125, 16
    %v2128 = vpop.permute.xlu0 %2127
    %v2130 = vadd.f32 %v2120, %v2128
    %v2131 = vtanh.pop %v2130
    %2133 = vrot.lane.b32.xlu0 %v2131, 32
    %v2134 = vpop.permute.xlu0 %2133
    %v2136 = vmul.f32 %v2116, %v2134
    %2138 = vrot.lane.b32.xlu0 %v2136, 80
    %v2139 = vpop.permute.xlu0 %2138
    %v2140 = vsel %vm1990, %v2139, 0
    %2142 = vmatpush.msra.mxu0 0.0
    %2143 = vmatpush.msra.mxu0 0.0
    %2144 = vmatpush.msra.mxu0 0.0
    %2145 = vmatpush.msra.mxu0 0.0
    %2146 = vmatpush.msra.mxu0 0.0
    %2147 = vmatpush.msra.mxu0 0.0
    %2148 = vmatpush.msra.mxu0 0.0
    %2149 = vmatpush.msra.mxu0 0.0
    %2150 = vmatpush.msra.mxu0 0.0
    %2151 = vmatpush.msra.mxu0 0.0
    %2152 = vmatpush.msra.mxu0 0.0
    %2153 = vmatpush.msra.mxu0 0.0
    %2154 = vmatpush.msra.mxu0 0.0
    %2155 = vmatpush.msra.mxu0 0.0
    %2156 = vmatpush.msra.mxu0 %v1989
    %2157 = vmatpush.msra.mxu0 %v1988
    %2158 = vmatmul.f32.gmra.mxu0 %v2140
    %v2159 = vpop.f32.mrf.mxu0
    %v2160 = vadd.f32 0.0, %v2159
    %2161 = vdwg.mxu0
    %v2163 = vrot.slane %v2160, 4
    %v2165 = vadd.f32 %v1974, %v2163
    %v2166 = vtanh.pop %v2165
    %v2167 = vmul.f32 %v2166, 0.5
    %v2168 = vadd.f32 %v2167, 0.5
    %v2170 = vrot.slane %v2130, 4
    %v2172 = vmul.f32 %v2168, %v2170
    %2174 = vrot.lane.b32.xlu0 %v2166, 96
    %v2175 = vpop.permute.xlu0 %2174
    %v2177 = vmul.f32 %v2168, %v2175
    %2179 = vrot.lane.b32.xlu0 %v2177, 16
    %v2180 = vpop.permute.xlu0 %2179
    %v2182 = vadd.f32 %v2172, %v2180
    %v2183 = vtanh.pop %v2182
    %2185 = vrot.lane.b32.xlu0 %v2183, 32
    %v2186 = vpop.permute.xlu0 %2185
    %v2188 = vmul.f32 %v2168, %v2186
    %v2190 = vrot.slane %v2188, 4
    %2191 = vrot.lane.b32.xlu0 %v2190, 80
    %v2192 = vpop.permute.xlu0 %2191
    %v2193 = vsel %vm1990, %v2192, 0
    %2195 = vmatpush.msra.mxu0 0.0
    %2196 = vmatpush.msra.mxu0 0.0
    %2197 = vmatpush.msra.mxu0 0.0
    %2198 = vmatpush.msra.mxu0 0.0
    %2199 = vmatpush.msra.mxu0 0.0
    %2200 = vmatpush.msra.mxu0 0.0
    %2201 = vmatpush.msra.mxu0 0.0
    %2202 = vmatpush.msra.mxu0 0.0
    %2203 = vmatpush.msra.mxu0 0.0
    %2204 = vmatpush.msra.mxu0 0.0
    %2205 = vmatpush.msra.mxu0 0.0
    %2206 = vmatpush.msra.mxu0 0.0
    %2207 = vmatpush.msra.mxu0 0.0
    %2208 = vmatpush.msra.mxu0 0.0
    %2209 = vmatpush.msra.mxu0 %v1989
    %2210 = vmatpush.msra.mxu0 %v1988
    %2211 = vmatmul.f32.gmra.mxu0 %v2193
    %v2212 = vpop.f32.mrf.mxu0
    %v2213 = vadd.f32 0.0, %v2212
    %2214 = vdwg.mxu0
    %v2215 = vadd.f32 %v1977, %v2213
    %v2216 = vtanh.pop %v2215
    %v2217 = vmul.f32 %v2216, 0.5
    %v2218 = vadd.f32 %v2217, 0.5
    %v2220 = vrot.slane %v2182, 4
    %v2222 = vmul.f32 %v2218, %v2220
    %2224 = vrot.lane.b32.xlu0 %v2216, 96
    %v2225 = vpop.permute.xlu0 %2224
    %v2227 = vmul.f32 %v2218, %v2225
    %2229 = vrot.lane.b32.xlu0 %v2227, 16
    %v2230 = vpop.permute.xlu0 %2229
    %v2232 = vadd.f32 %v2222, %v2230
    %v2233 = vtanh.pop %v2232
    %2235 = vrot.lane.b32.xlu0 %v2233, 32
    %v2236 = vpop.permute.xlu0 %2235
    %v2238 = vmul.f32 %v2218, %v2236
    %2240 = vrot.lane.b32.xlu0 %v2238, 80
    %v2241 = vpop.permute.xlu0 %2240
    %v2242 = vsel %vm1990, %v2241, 0
    %2244 = vmatpush.msra.mxu0 0.0
    %2245 = vmatpush.msra.mxu0 0.0
    %2246 = vmatpush.msra.mxu0 0.0
    %2247 = vmatpush.msra.mxu0 0.0
    %2248 = vmatpush.msra.mxu0 0.0
    %2249 = vmatpush.msra.mxu0 0.0
    %2250 = vmatpush.msra.mxu0 0.0
    %2251 = vmatpush.msra.mxu0 0.0
    %2252 = vmatpush.msra.mxu0 0.0
    %2253 = vmatpush.msra.mxu0 0.0
    %2254 = vmatpush.msra.mxu0 0.0
    %2255 = vmatpush.msra.mxu0 0.0
    %2256 = vmatpush.msra.mxu0 0.0
    %2257 = vmatpush.msra.mxu0 0.0
    %2258 = vmatpush.msra.mxu0 %v1989
    %2259 = vmatpush.msra.mxu0 %v1988
    %2260 = vmatmul.f32.gmra.mxu0 %v2242
    %v2261 = vpop.f32.mrf.mxu0
    %v2262 = vadd.f32 0.0, %v2261
    %2263 = vdwg.mxu0
    %v2265 = vrot.slane %v2262, 4
    %v2267 = vadd.f32 %v1977, %v2265
    %v2268 = vtanh.pop %v2267
    %v2269 = vmul.f32 %v2268, 0.5
    %v2270 = vadd.f32 %v2269, 0.5
    %v2272 = vrot.slane %v2232, 4
    %v2274 = vmul.f32 %v2270, %v2272
    %2276 = vrot.lane.b32.xlu0 %v2268, 96
    %v2277 = vpop.permute.xlu0 %2276
    %v2279 = vmul.f32 %v2270, %v2277
    %2281 = vrot.lane.b32.xlu0 %v2279, 16
    %v2282 = vpop.permute.xlu0 %2281
    %v2284 = vadd.f32 %v2274, %v2282
    %v2285 = vtanh.pop %v2284
    %2287 = vrot.lane.b32.xlu0 %v2285, 32
    %v2288 = vpop.permute.xlu0 %2287
    %v2290 = vmul.f32 %v2270, %v2288
    %v2292 = vrot.slane %v2290, 4
    %2293 = vrot.lane.b32.xlu0 %v2292, 80
    %v2294 = vpop.permute.xlu0 %2293
    %v2295 = vsel %vm1990, %v2294, 0
    %2297 = vmatpush.msra.mxu0 0.0
    %2298 = vmatpush.msra.mxu0 0.0
    %2299 = vmatpush.msra.mxu0 0.0
    %2300 = vmatpush.msra.mxu0 0.0
    %2301 = vmatpush.msra.mxu0 0.0
    %2302 = vmatpush.msra.mxu0 0.0
    %2303 = vmatpush.msra.mxu0 0.0
    %2304 = vmatpush.msra.mxu0 0.0
    %2305 = vmatpush.msra.mxu0 0.0
    %2306 = vmatpush.msra.mxu0 0.0
    %2307 = vmatpush.msra.mxu0 0.0
    %2308 = vmatpush.msra.mxu0 0.0
    %2309 = vmatpush.msra.mxu0 0.0
    %2310 = vmatpush.msra.mxu0 0.0
    %2311 = vmatpush.msra.mxu0 %v1989
    %2312 = vmatpush.msra.mxu0 %v1988
    %2313 = vmatmul.f32.gmra.mxu0 %v2295
    %v2314 = vpop.f32.mrf.mxu0
    %v2315 = vadd.f32 0.0, %v2314
    %2316 = vdwg.mxu0
    %v2317 = vadd.f32 %v1980, %v2315
    %v2318 = vtanh.pop %v2317
    %v2319 = vmul.f32 %v2318, 0.5
    %v2320 = vadd.f32 %v2319, 0.5
    %v2322 = vrot.slane %v2284, 4
    %v2324 = vmul.f32 %v2320, %v2322
    %2326 = vrot.lane.b32.xlu0 %v2318, 96
    %v2327 = vpop.permute.xlu0 %2326
    %v2329 = vmul.f32 %v2320, %v2327
    %2331 = vrot.lane.b32.xlu0 %v2329, 16
    %v2332 = vpop.permute.xlu0 %2331
    %v2334 = vadd.f32 %v2324, %v2332
    %v2335 = vtanh.pop %v2334
    %2337 = vrot.lane.b32.xlu0 %v2335, 32
    %v2338 = vpop.permute.xlu0 %2337
    %v2340 = vmul.f32 %v2320, %v2338
    %2342 = vrot.lane.b32.xlu0 %v2340, 80
    %v2343 = vpop.permute.xlu0 %2342
    %v2344 = vsel %vm1990, %v2343, 0
    %2346 = vmatpush.msra.mxu0 0.0
    %2347 = vmatpush.msra.mxu0 0.0
    %2348 = vmatpush.msra.mxu0 0.0
    %2349 = vmatpush.msra.mxu0 0.0
    %2350 = vmatpush.msra.mxu0 0.0
    %2351 = vmatpush.msra.mxu0 0.0
    %2352 = vmatpush.msra.mxu0 0.0
    %2353 = vmatpush.msra.mxu0 0.0
    %2354 = vmatpush.msra.mxu0 0.0
    %2355 = vmatpush.msra.mxu0 0.0
    %2356 = vmatpush.msra.mxu0 0.0
    %2357 = vmatpush.msra.mxu0 0.0
    %2358 = vmatpush.msra.mxu0 0.0
    %2359 = vmatpush.msra.mxu0 0.0
    %2360 = vmatpush.msra.mxu0 %v1989
    %2361 = vmatpush.msra.mxu0 %v1988
    %2362 = vmatmul.f32.gmra.mxu0 %v2344
    %v2363 = vpop.f32.mrf.mxu0
    %v2364 = vadd.f32 0.0, %v2363
    %2365 = vdwg.mxu0
    %v2367 = vrot.slane %v2364, 4
    %v2369 = vadd.f32 %v1980, %v2367
    %v2370 = vtanh.pop %v2369
    %v2371 = vmul.f32 %v2370, 0.5
    %v2372 = vadd.f32 %v2371, 0.5
    %v2374 = vrot.slane %v2334, 4
    %v2376 = vmul.f32 %v2372, %v2374
    %2378 = vrot.lane.b32.xlu0 %v2370, 96
    %v2379 = vpop.permute.xlu0 %2378
    %v2381 = vmul.f32 %v2372, %v2379
    %2383 = vrot.lane.b32.xlu0 %v2381, 16
    %v2384 = vpop.permute.xlu0 %2383
    %v2386 = vadd.f32 %v2376, %v2384
    %v2387 = vtanh.pop %v2386
    %2389 = vrot.lane.b32.xlu0 %v2387, 32
    %v2390 = vpop.permute.xlu0 %2389
    %v2392 = vmul.f32 %v2372, %v2390
    %v2394 = vrot.slane %v2392, 4
    %2395 = vrot.lane.b32.xlu0 %v2394, 80
    %v2396 = vpop.permute.xlu0 %2395
    %v2397 = vsel %vm1990, %v2396, 0
    %2399 = vmatpush.msra.mxu0 0.0
    %2400 = vmatpush.msra.mxu0 0.0
    %2401 = vmatpush.msra.mxu0 0.0
    %2402 = vmatpush.msra.mxu0 0.0
    %2403 = vmatpush.msra.mxu0 0.0
    %2404 = vmatpush.msra.mxu0 0.0
    %2405 = vmatpush.msra.mxu0 0.0
    %2406 = vmatpush.msra.mxu0 0.0
    %2407 = vmatpush.msra.mxu0 0.0
    %2408 = vmatpush.msra.mxu0 0.0
    %2409 = vmatpush.msra.mxu0 0.0
    %2410 = vmatpush.msra.mxu0 0.0
    %2411 = vmatpush.msra.mxu0 0.0
    %2412 = vmatpush.msra.mxu0 0.0
    %2413 = vmatpush.msra.mxu0 %v1989
    %2414 = vmatpush.msra.mxu0 %v1988
    %2415 = vmatmul.f32.gmra.mxu0 %v2397
    %v2416 = vpop.f32.mrf.mxu0
    %v2417 = vadd.f32 0.0, %v2416
    %2418 = vdwg.mxu0
    %v2419 = vadd.f32 %v1983, %v2417
    %v2420 = vtanh.pop %v2419
    %v2421 = vmul.f32 %v2420, 0.5
    %v2422 = vadd.f32 %v2421, 0.5
    %v2424 = vrot.slane %v2386, 4
    %v2426 = vmul.f32 %v2422, %v2424
    %2428 = vrot.lane.b32.xlu0 %v2420, 96
    %v2429 = vpop.permute.xlu0 %2428
    %v2431 = vmul.f32 %v2422, %v2429
    %2433 = vrot.lane.b32.xlu0 %v2431, 16
    %v2434 = vpop.permute.xlu0 %2433
    %v2436 = vadd.f32 %v2426, %v2434
    %v2437 = vtanh.pop %v2436
    %2439 = vrot.lane.b32.xlu0 %v2437, 32
    %v2440 = vpop.permute.xlu0 %2439
    %v2442 = vmul.f32 %v2422, %v2440
    %2444 = vrot.lane.b32.xlu0 %v2442, 80
    %v2445 = vpop.permute.xlu0 %2444
    %v2446 = vsel %vm1990, %v2445, 0
    %2448 = vmatpush.msra.mxu0 0.0
    %2449 = vmatpush.msra.mxu0 0.0
    %2450 = vmatpush.msra.mxu0 0.0
    %2451 = vmatpush.msra.mxu0 0.0
    %2452 = vmatpush.msra.mxu0 0.0
    %2453 = vmatpush.msra.mxu0 0.0
    %2454 = vmatpush.msra.mxu0 0.0
    %2455 = vmatpush.msra.mxu0 0.0
    %2456 = vmatpush.msra.mxu0 0.0
    %2457 = vmatpush.msra.mxu0 0.0
    %2458 = vmatpush.msra.mxu0 0.0
    %2459 = vmatpush.msra.mxu0 0.0
    %2460 = vmatpush.msra.mxu0 0.0
    %2461 = vmatpush.msra.mxu0 0.0
    %2462 = vmatpush.msra.mxu0 %v1989
    %2463 = vmatpush.msra.mxu0 %v1988
    %2464 = vmatmul.f32.gmra.mxu0 %v2446
    %v2465 = vpop.f32.mrf.mxu0
    %v2466 = vadd.f32 0.0, %v2465
    %2467 = vdwg.mxu0
    %v2469 = vrot.slane %v2466, 4
    %v2471 = vadd.f32 %v1983, %v2469
    %v2472 = vtanh.pop %v2471
    %v2473 = vmul.f32 %v2472, 0.5
    %v2474 = vadd.f32 %v2473, 0.5
    %v2476 = vrot.slane %v2436, 4
    %v2478 = vmul.f32 %v2474, %v2476
    %2480 = vrot.lane.b32.xlu0 %v2472, 96
    %v2481 = vpop.permute.xlu0 %2480
    %v2483 = vmul.f32 %v2474, %v2481
    %2485 = vrot.lane.b32.xlu0 %v2483, 16
    %v2486 = vpop.permute.xlu0 %2485
    %v2488 = vadd.f32 %v2478, %v2486
    %v2489 = vtanh.pop %v2488
    %2491 = vrot.lane.b32.xlu0 %v2489, 32
    %v2492 = vpop.permute.xlu0 %2491
    %v2494 = vmul.f32 %v2474, %v2492
    %v2496 = vrot.slane %v2494, 4
    %2497 = vrot.lane.b32.xlu0 %v2496, 80
    %v2498 = vpop.permute.xlu0 %2497
    %v2499 = vsel %vm1990, %v2498, 0
    %2501 = vmatpush.msra.mxu0 0.0
    %2502 = vmatpush.msra.mxu0 0.0
    %2503 = vmatpush.msra.mxu0 0.0
    %2504 = vmatpush.msra.mxu0 0.0
    %2505 = vmatpush.msra.mxu0 0.0
    %2506 = vmatpush.msra.mxu0 0.0
    %2507 = vmatpush.msra.mxu0 0.0
    %2508 = vmatpush.msra.mxu0 0.0
    %2509 = vmatpush.msra.mxu0 0.0
    %2510 = vmatpush.msra.mxu0 0.0
    %2511 = vmatpush.msra.mxu0 0.0
    %2512 = vmatpush.msra.mxu0 0.0
    %2513 = vmatpush.msra.mxu0 0.0
    %2514 = vmatpush.msra.mxu0 0.0
    %2515 = vmatpush.msra.mxu0 %v1989
    %2516 = vmatpush.msra.mxu0 %v1988
    %2517 = vmatmul.f32.gmra.mxu0 %v2499
    %v2518 = vpop.f32.mrf.mxu0
    %v2519 = vadd.f32 0.0, %v2518
    %2520 = vdwg.mxu0
    %v2521 = vadd.f32 %v1986, %v2519
    %v2522 = vtanh.pop %v2521
    %v2523 = vmul.f32 %v2522, 0.5
    %v2524 = vadd.f32 %v2523, 0.5
    %v2526 = vrot.slane %v2488, 4
    %v2528 = vmul.f32 %v2524, %v2526
    %2530 = vrot.lane.b32.xlu0 %v2522, 96
    %v2531 = vpop.permute.xlu0 %2530
    %v2533 = vmul.f32 %v2524, %v2531
    %2535 = vrot.lane.b32.xlu0 %v2533, 16
    %v2536 = vpop.permute.xlu0 %2535
    %v2538 = vadd.f32 %v2528, %v2536
    %v2539 = vtanh.pop %v2538
    %2541 = vrot.lane.b32.xlu0 %v2539, 32
    %v2542 = vpop.permute.xlu0 %2541
    %v2544 = vmul.f32 %v2524, %v2542
    %v2545 = vmax.f32 %v2544, 0.0
    %2547 = vrot.lane.b32.xlu0 %v2545, 96
    %v2548 = vpop.permute.xlu0 %2547
    %v2550 = vsel %vm1990, %v1839, %v2548
    %v2551 = vsel %vm1817, %v2550, 0.0
    %2552 = vst [vmem:[#allocation22] sm:$0xf] %v2551
    // Predicated region
    $region114: #{tpu_custom_call.1} parent=1 // pred_check
      _
    $region115: #{tpu_custom_call.1} parent=1 // pred_check_branch
      %2554 = sbr.rel (0) target = $region117
    $region116: #{tpu_custom_call.1} parent=1 // pred_region
      %2556 = vsyncadd [#allocation4], 0
      %s2558 = sshll.u32 [#allocation22], 4
      %s2559 = int_to_ptr.vmem [resolvable:$true] %s2558
      %s2560 = sshll.u32 %s16, 4
      %s2561 = int_to_ptr.hbm [resolvable:$true] %s2560
      %2563 = dma.vmem_to_hbm [thread:$0]  %s2559, 64, %s2561, [#allocation4]
    $region117: #{tpu_custom_call.1} parent=1 // pred_fallthru
      _
    // Predicated region
    $region118: #{tpu_custom_call.1} parent=1 // pred_check
      _
    $region119: #{tpu_custom_call.1} parent=1 // pred_check_branch
      %2565 = sbr.rel (0) target = $region121
    $region120: #{tpu_custom_call.1} parent=1 // pred_region
      %2567 = dma.done [#allocation4], 64
    $region121: #{tpu_custom_call.1} parent=1 // pred_fallthru
      _
    %2568 = vsyncpa [#allocation3], 1
    %2569 = vsyncpa [#allocation6], 1
    %2570 = vsyncpa [#allocation9], 1
    %2571 = vsyncpa [#allocation12], 1
    %2572 = vsyncpa [#allocation15], 1
    %2573 = vsyncpa [#allocation18], 1
    %2574 = vsyncpa [#allocation21], 1
    %2575 = vsyncpa [#allocation4], 1

</llo_original>
